<compile_context>
chip_gen: v7x
topology: tpu7x:2x2x1
jax: 0.10.0
libtpu: 0.0.40
codegen_flags: <defaults>
</compile_context>

<pallas_src>
import functools

import jax
import jax.numpy as jnp
from jax.experimental import pallas as pl
from jax.experimental.pallas import tpu as pltpu


def _pre_diagnosis_kernel(x_ref, wt_ref, o_ref, acc_ref, *,
                          mean_flag: bool, T: int, TT: int,
                          lane_acc: bool, needs_mask: bool):
    # x_ref  : (TB, D, TT) input tile, native dtype, (batch, feature, time) layout
    # wt_ref : (D, C_pad)  transposed classifier weight (1/T folded for mean)
    # o_ref  : (TB, C_pad) output tile (written only on the last T step)
    # acc_ref: (TB, D, 128) f32 if lane_acc else (TB, D) f32; persists over T steps
    t = pl.program_id(1)
    nt = pl.num_programs(1)
    fill = 0.0 if mean_flag else -jnp.inf

    @pl.when(t == 0)
    def _init():
        if mean_flag:
            acc_ref[...] = jnp.zeros(acc_ref.shape, acc_ref.dtype)
        else:
            acc_ref[...] = jnp.full(acc_ref.shape, -jnp.inf, acc_ref.dtype)

    if lane_acc:
        # Lane-dense accumulation: VPU-only per step, no per-step XLU reduce.
        n_chunks = TT // 128
        rem = (T % TT) if needs_mask else TT      # valid elements in the last tile
        base_iota = None
        part = acc_ref[...]                       # (TB, D, 128) f32
        for c in range(n_chunks):
            sl = x_ref[:, :, c * 128:(c + 1) * 128].astype(jnp.float32)
            if needs_mask and (c + 1) * 128 > rem:
                if base_iota is None:
                    base_iota = jax.lax.broadcasted_iota(jnp.int32, sl.shape, 2)
                gidx = base_iota + (t * TT + c * 128)
                sl = jnp.where(gidx < T, sl, fill)
            if mean_flag:
                part = part + sl
            else:
                part = jnp.maximum(part, sl)
        acc_ref[...] = part
    else:
        # Single T step (TT == T, exact block): direct reduce.
        x = x_ref[...].astype(jnp.float32)        # (TB, D, TT)
        if mean_flag:
            acc_ref[...] += jnp.sum(x, axis=-1)
        else:
            acc_ref[...] = jnp.maximum(acc_ref[...], jnp.max(x, axis=-1))

    @pl.when(t == nt - 1)
    def _finalize():
        if lane_acc:
            if mean_flag:
                pooled = jnp.sum(acc_ref[...], axis=-1)     # (TB, D)
            else:
                pooled = jnp.max(acc_ref[...], axis=-1)
        else:
            pooled = acc_ref[...]
        o_ref[...] = jnp.dot(pooled, wt_ref[...],
                             preferred_element_type=jnp.float32).astype(o_ref.dtype)


def _vmem_capacity_bytes() -> int:
    try:
        return int(pltpu.get_tpu_info().vmem_capacity_bytes)
    except Exception:
        return 64 * 1024 * 1024        # conservative (v7x-sized) fallback


def _select_tiles(B: int, D: int, T: int, itemsize: int, budget: int):
    """Pick (TB, TT) so the x tile honours `budget` even at the 8-row floor."""
    tb_floor = 8 if B > 8 else B
    row_bytes = D * itemsize                       # bytes per (batch row, time step)

    if tb_floor * row_bytes * T <= budget:
        TT = T                                     # whole temporal extent, exact block
    else:
        # Tile the temporal (lane) axis; keep the 8-row floor within budget by
        # shrinking TT (not by rounding TB up past the budget).
        max_tt = budget // (tb_floor * row_bytes)
        TT = max(128, (max_tt // 128) * 128)
        if T % 128 == 0:
            while TT > 128 and T % TT != 0:        # prefer exact divisor: no tail mask
                TT -= 128

    if B <= 8:
        TB = B                                     # full batch extent (exact block)
    else:
        max_tb = max(8, budget // (row_bytes * TT))
        TB = min(B, 256, max_tb)
        TB = max(8, (TB // 8) * 8)                 # 8-aligned partial batch tiles
        if B >= 16 and TB >= B:
            # Keep >= 2 batch tiles so the "parallel" axis can span both TCs on v7x.
            TB = max(8, ((B // 2) // 8) * 8)
    # TODO(synk): for B < 16 on v7x, split the T reduction across the two cores
    # with a small cross-core combine instead of leaving one core idle.
    return TB, TT


def pre_diagnosis_forward(x_bdt, weight_cd, *, mean_flag: bool = True,
                          _x_tile_budget_bytes=None):
    """x_bdt: (B, D=512, T) like the PyTorch input; weight_cd: (class_num, D)."""
    B, D, T = x_bdt.shape
    C = weight_cd.shape[0]
    C_pad = 128 * pl.cdiv(C, 128)                  # lane-dense output width

    # Weight prep (tiny, XLA side): transpose to (D, C), fold 1/T for the mean
    # branch, pad the class dim to a full lane width with zeros.
    w_dc = jnp.transpose(weight_cd, (1, 0)).astype(jnp.float32)
    if mean_flag:
        w_dc = w_dc * jnp.float32(1.0 / T)
    w_dc = jnp.pad(w_dc, ((0, 0), (0, C_pad - C)))

    itemsize = jnp.dtype(x_bdt.dtype).itemsize     # real bytes/elem (bf16 stays bf16)
    vmem_cap = _vmem_capacity_bytes()
    budget = (_x_tile_budget_bytes if _x_tile_budget_bytes is not None
              else int(min(16 << 20, max(4 << 20, vmem_cap // 8))))

    TB, TT = _select_tiles(B, D, T, itemsize, budget)
    nb = pl.cdiv(B, TB)
    nt = pl.cdiv(T, TT)
    lane_acc = nt > 1                      # tiled T => TT % 128 == 0 by construction
    needs_mask = (T % TT) != 0
    acc_shape = (TB, D, 128) if lane_acc else (TB, D)

    # Explicit VMEM limit: double-buffered x tiles + weight + output + scratch
    # + headroom for Mosaic-internal staging of the f32 cast.
    x_tile_bytes = TB * D * TT * itemsize
    f32_stage = TB * D * (128 if lane_acc else TT) * 4
    acc_bytes = TB * D * (128 if lane_acc else 1) * 4
    needed = (2 * x_tile_bytes + 2 * D * C_pad * 4 + 2 * TB * C_pad * 4
              + acc_bytes + 2 * f32_stage + (4 << 20))
    vmem_limit = int(min(vmem_cap - (8 << 20), max(24 << 20, needed)))

    kernel = functools.partial(_pre_diagnosis_kernel, mean_flag=mean_flag,
                               T=T, TT=TT, lane_acc=lane_acc, needs_mask=needs_mask)

    out_padded = pl.pallas_call(
        kernel,
        out_shape=jax.ShapeDtypeStruct((B, C_pad), jnp.float32),
        grid=(nb, nt),
        in_specs=[
            # x: native (B, D, T); tiled over batch and temporal axes.
            pl.BlockSpec((TB, D, TT), lambda b, t: (b, 0, t)),
            # weight: constant block index -> fetched once, VMEM-resident.
            pl.BlockSpec((D, C_pad), lambda b, t: (0, 0)),
        ],
        out_specs=pl.BlockSpec((TB, C_pad), lambda b, t: (b, 0)),
        scratch_shapes=[pltpu.VMEM(acc_shape, jnp.float32)],
        compiler_params=pltpu.CompilerParams(
            dimension_semantics=("parallel", "arbitrary"),
            vmem_limit_bytes=vmem_limit,
        ),
        cost_estimate=pl.CostEstimate(
            flops=int(B * D * T + 2 * B * D * C_pad),
            transcendentals=0,
            bytes_accessed=int(itemsize * B * D * T + 4 * (D * C_pad + B * C_pad)),
        ),
    )(x_bdt, w_dc)

    return out_padded[:, :C]


def _reference(x_bdt, weight_cd, *, mean_flag: bool = True):
    pooled = jnp.mean(x_bdt, axis=-1) if mean_flag else jnp.max(x_bdt, axis=-1)
    return pooled @ weight_cd.T


if __name__ == "__main__":
    class_num = 10
    in_dim = 512      # the module asserts the feature dim must be 512
    B, T = 2, 8

    key = jax.random.PRNGKey(0)
    kx, kw, kx2 = jax.random.split(key, 3)

    # Deterministic synthetic input / parameters (no checkpoint load).
    x = jax.random.normal(kx, (B, in_dim, T), dtype=jnp.float32)
    bound = 1.0 / (in_dim ** 0.5)   # nn.Linear default init scale
    weight = jax.random.uniform(kw, (class_num, in_dim), dtype=jnp.float32,
                                minval=-bound, maxval=bound)

    # mean / max branches on the small shape (single-T-step path).
    for flag in (True, False):
        out = jax.block_until_ready(pre_diagnosis_forward(x, weight, mean_flag=flag))
        ref = _reference(x, weight, mean_flag=flag)
        assert out.shape == (B, class_num)
        assert jnp.allclose(out, ref, atol=1e-3, rtol=1e-3), \
            f"mismatch (mean_flag={flag})"

    # Also exercise the tiled + tail-masked lane-accumulator path by forcing a
    # tiny x-tile budget (T=200 is not a multiple of 128).
    T2 = 200
    x2 = jax.random.normal(kx2, (B, in_dim, T2), dtype=jnp.float32)
    for flag in (True, False):
        out = jax.block_until_ready(
            pre_diagnosis_forward(x2, weight, mean_flag=flag,
                                  _x_tile_budget_bytes=256 * 1024))
        ref = _reference(x2, weight, mean_flag=flag)
        assert jnp.allclose(out, ref, atol=1e-3, rtol=1e-3), \
            f"tiled-path mismatch (mean_flag={flag})"

    print("KERNEL_OK")
</pallas_src>

<mosaic_0001>
module attributes {stable_mosaic.version = 11 : i64} {
  func.func @_pre_diagnosis_kernel(%arg0: i32, %arg1: i32, %arg2: memref<2x512x8xf32, #tpu.memory_space<vmem>>, %arg3: memref<512x128xf32, #tpu.memory_space<vmem>>, %arg4: memref<2x128xf32, #tpu.memory_space<vmem>>, %arg5: memref<2x512xf32, #tpu.memory_space<vmem>>) attributes {dimension_semantics = [#tpu.dimension_semantics<parallel>, #tpu.dimension_semantics<arbitrary>], iteration_bounds = array<i64: 1, 1>, scalar_prefetch = 0 : i64, scratch_operands = 1 : i64, tpu.core_type = #tpu.core_type<tc>, window_params = [{transform_indices = @transform_0, window_bounds = array<i64: 2, 512, 8>}, {pipeline_mode = #tpu.pipeline_mode<synchronous>, transform_indices = @transform_1, window_bounds = array<i64: 512, 128>}, {transform_indices = @transform_2, window_bounds = array<i64: 2, 128>}]} {
    %c0_i32 = arith.constant 0 : i32
    %0 = arith.cmpi eq, %arg1, %c0_i32 : i32
    %1 = arith.extui %0 : i1 to i32
    %c0_i32_0 = arith.constant 0 : i32
    %2 = arith.cmpi ne, %1, %c0_i32_0 : i32
    scf.if %2 {
      %cst_9 = arith.constant 0.000000e+00 : f32
      %11 = vector.broadcast %cst_9 : f32 to vector<2x512xf32>
      %c0_10 = arith.constant 0 : index
      %c0_11 = arith.constant 0 : index
      %12 = vector.load %arg5[%c0_10, %c0_11] : memref<2x512xf32, #tpu.memory_space<vmem>>, vector<2x512xf32>
      tpu.vector_store %arg5[%c0_10, %c0_11], %11 {strides = array<i32>} : memref<2x512xf32, #tpu.memory_space<vmem>>, vector<2x512xf32>,
    } else {
    }
    %c0 = arith.constant 0 : index
    %c0_1 = arith.constant 0 : index
    %c0_2 = arith.constant 0 : index
    %3 = vector.load %arg2[%c0, %c0_1, %c0_2] : memref<2x512x8xf32, #tpu.memory_space<vmem>>, vector<2x512x8xf32>
    %c0_3 = arith.constant 0 : index
    %c0_4 = arith.constant 0 : index
    %4 = vector.load %arg5[%c0_3, %c0_4] : memref<2x512xf32, #tpu.memory_space<vmem>>, vector<2x512xf32>
    %cst = arith.constant dense<0.000000e+00> : vector<2x512xf32>
    %5 = vector.multi_reduction <add>, %3, %cst [2] : vector<2x512x8xf32> to vector<2x512xf32>
    %6 = arith.addf %4, %5 : vector<2x512xf32>
    %c0_5 = arith.constant 0 : index
    %c0_6 = arith.constant 0 : index
    %7 = vector.load %arg5[%c0_5, %c0_6] : memref<2x512xf32, #tpu.memory_space<vmem>>, vector<2x512xf32>
    tpu.vector_store %arg5[%c0_5, %c0_6], %6 {strides = array<i32>} : memref<2x512xf32, #tpu.memory_space<vmem>>, vector<2x512xf32>,
    %c0_i32_7 = arith.constant 0 : i32
    %8 = arith.cmpi eq, %arg1, %c0_i32_7 : i32
    %9 = arith.extui %8 : i1 to i32
    %c0_i32_8 = arith.constant 0 : i32
    %10 = arith.cmpi ne, %9, %c0_i32_8 : i32
    scf.if %10 {
      %c0_9 = arith.constant 0 : index
      %c0_10 = arith.constant 0 : index
      %11 = vector.load %arg5[%c0_9, %c0_10] : memref<2x512xf32, #tpu.memory_space<vmem>>, vector<2x512xf32>
      %c0_11 = arith.constant 0 : index
      %c0_12 = arith.constant 0 : index
      %12 = vector.load %arg3[%c0_11, %c0_12] : memref<512x128xf32, #tpu.memory_space<vmem>>, vector<512x128xf32>
      %cst_13 = arith.constant dense<0.000000e+00> : vector<2x128xf32>
      %13 = tpu.matmul %11, %12, %cst_13 {dimension_numbers = #tpu.dot_dimension_numbers<[1], [0], [0], [1], [0, 0, 1, 1], [], []>} : vector<2x512xf32>, vector<512x128xf32>, vector<2x128xf32> -> vector<2x128xf32>
      %c0_14 = arith.constant 0 : index
      %c0_15 = arith.constant 0 : index
      %14 = vector.load %arg4[%c0_14, %c0_15] : memref<2x128xf32, #tpu.memory_space<vmem>>, vector<2x128xf32>
      tpu.vector_store %arg4[%c0_14, %c0_15], %13 {strides = array<i32>} : memref<2x128xf32, #tpu.memory_space<vmem>>, vector<2x128xf32>,
    } else {
    }
    return
  }
  func.func @transform_0(%arg0: i32, %arg1: i32) -> (i32, i32, i32) {
    %c0_i32 = arith.constant 0 : i32
    %c0_i32_0 = arith.constant 0 : i32
    return %arg0, %c0_i32, %arg1 : i32, i32, i32
  }
  func.func @transform_1(%arg0: i32, %arg1: i32) -> (i32, i32) {
    %c0_i32 = arith.constant 0 : i32
    %c0_i32_0 = arith.constant 0 : i32
    %c0_i32_1 = arith.constant 0 : i32
    return %c0_i32, %c0_i32_0 : i32, i32
  }
  func.func @transform_2(%arg0: i32, %arg1: i32) -> (i32, i32) {
    %c0_i32 = arith.constant 0 : i32
    %c0_i32_0 = arith.constant 0 : i32
    return %arg0, %c0_i32 : i32, i32
  }
}

</mosaic_0001>

<llo_original>
// kernel: tpu_custom_call.1
$region0: #{tpu_custom_call.1}
  #allocation0 [shape = 'u32[]', space=smem, size = 0x4, offset = 0x4, fixed_abs, tag = 'smem constant byte address 0x4 - core index']
  #allocation1 [shape = 'u32[144,128]{1,0:T(1,128)}', space=vmem, size = 0x12000, scoped, tag = 'internal scratch']
  #allocation2 [shape = 'f32[2,512]{1,0:T(2,128)}', space=vmem, size = 0x1000, scoped, tag = 'scratch operand']
  %s0 = inlined_call_operand.vmem [shape: f32[2,512,8], index: 0, kind: input, shape index: {}]
  %s1 = inlined_call_operand.vmem [shape: f32[512,128], index: 1, kind: input, shape index: {}]
  %s2 = inlined_call_operand.hbm [shape: f32[2,128], index: 2, kind: output, shape index: {}]
  %s3 = sld [smem:[#allocation0]]
  $region26: #{tpu_custom_call.1} parent=0
    _
  %s5 = ssub.s32 1, %s3
  %s6 = scalar_select 0, %s5, %s3
  $region1: #{tpu_custom_call.1} parent=0
    #allocation3 [shape = 'u8[1024]{0}', space=vmem, size = 0x400, scoped, tag = 'output window, operand 0, single buffered']
    #allocation4 [shape = 's32[1]{0}', space=sflag, size = 0x4, scoped, tag = 'scoped memory for tpu_custom_call.1']
    %7 = vsyncpa [#allocation4], 0
    // Predicated region
    $region2: #{tpu_custom_call.1} parent=1 // pred_check
      _
    $region3: #{tpu_custom_call.1} parent=1 // pred_check_branch
      %9 = sbr.rel (0) target = $region5
    $region4: #{tpu_custom_call.1} parent=1 // pred_region
      _
    $region5: #{tpu_custom_call.1} parent=1 // pred_fallthru
      _
    // Predicated region
    $region6: #{tpu_custom_call.1} parent=1 // pred_check
      _
    $region7: #{tpu_custom_call.1} parent=1 // pred_check_branch
      %11 = sbr.rel (0) target = $region9
    $region8: #{tpu_custom_call.1} parent=1 // pred_region
      _
    $region9: #{tpu_custom_call.1} parent=1 // pred_fallthru
      _
    %p12 = scmp.eq.s32.totalorder 0, 0
    // Predicated region
    $region10: #{tpu_custom_call.1} parent=1 // pred_check
      %p13 = pneg %p12
    $region11: #{tpu_custom_call.1} parent=1 // pred_check_branch
      %15 = sbr.rel (%p13) target = $region13
    $region12: #{tpu_custom_call.1} parent=1 // pred_region
      %16 = vst [vmem:[#allocation2] sm:$0xff] 0.0
    $region13: #{tpu_custom_call.1} parent=1 // pred_fallthru
      _
    %v17 = vld [vmem:[%s0] sm:$0xff]
    %v18 = vld [vmem:[%s0 + $0x8] sm:$0xff]
    %v19 = vld [vmem:[%s0 + $0x10] sm:$0xff]
    %v20 = vld [vmem:[%s0 + $0x18] sm:$0xff]
    %v21 = vld [vmem:[%s0 + $0x20] sm:$0xff]
    %v22 = vld [vmem:[%s0 + $0x28] sm:$0xff]
    %v23 = vld [vmem:[%s0 + $0x30] sm:$0xff]
    %v24 = vld [vmem:[%s0 + $0x38] sm:$0xff]
    %v25 = vld [vmem:[%s0 + $0x40] sm:$0xff]
    %v26 = vld [vmem:[%s0 + $0x48] sm:$0xff]
    %v27 = vld [vmem:[%s0 + $0x50] sm:$0xff]
    %v28 = vld [vmem:[%s0 + $0x58] sm:$0xff]
    %v29 = vld [vmem:[%s0 + $0x60] sm:$0xff]
    %v30 = vld [vmem:[%s0 + $0x68] sm:$0xff]
    %v31 = vld [vmem:[%s0 + $0x70] sm:$0xff]
    %v32 = vld [vmem:[%s0 + $0x78] sm:$0xff]
    %v33 = vld [vmem:[%s0 + $0x80] sm:$0xff]
    %v34 = vld [vmem:[%s0 + $0x88] sm:$0xff]
    %v35 = vld [vmem:[%s0 + $0x90] sm:$0xff]
    %v36 = vld [vmem:[%s0 + $0x98] sm:$0xff]
    %v37 = vld [vmem:[%s0 + $0xa0] sm:$0xff]
    %v38 = vld [vmem:[%s0 + $0xa8] sm:$0xff]
    %v39 = vld [vmem:[%s0 + $0xb0] sm:$0xff]
    %v40 = vld [vmem:[%s0 + $0xb8] sm:$0xff]
    %v41 = vld [vmem:[%s0 + $0xc0] sm:$0xff]
    %v42 = vld [vmem:[%s0 + $0xc8] sm:$0xff]
    %v43 = vld [vmem:[%s0 + $0xd0] sm:$0xff]
    %v44 = vld [vmem:[%s0 + $0xd8] sm:$0xff]
    %v45 = vld [vmem:[%s0 + $0xe0] sm:$0xff]
    %v46 = vld [vmem:[%s0 + $0xe8] sm:$0xff]
    %v47 = vld [vmem:[%s0 + $0xf0] sm:$0xff]
    %v48 = vld [vmem:[%s0 + $0xf8] sm:$0xff]
    %v49 = vld [vmem:[%s0 + $0x100] sm:$0xff]
    %v50 = vld [vmem:[%s0 + $0x108] sm:$0xff]
    %v51 = vld [vmem:[%s0 + $0x110] sm:$0xff]
    %v52 = vld [vmem:[%s0 + $0x118] sm:$0xff]
    %v53 = vld [vmem:[%s0 + $0x120] sm:$0xff]
    %v54 = vld [vmem:[%s0 + $0x128] sm:$0xff]
    %v55 = vld [vmem:[%s0 + $0x130] sm:$0xff]
    %v56 = vld [vmem:[%s0 + $0x138] sm:$0xff]
    %v57 = vld [vmem:[%s0 + $0x140] sm:$0xff]
    %v58 = vld [vmem:[%s0 + $0x148] sm:$0xff]
    %v59 = vld [vmem:[%s0 + $0x150] sm:$0xff]
    %v60 = vld [vmem:[%s0 + $0x158] sm:$0xff]
    %v61 = vld [vmem:[%s0 + $0x160] sm:$0xff]
    %v62 = vld [vmem:[%s0 + $0x168] sm:$0xff]
    %v63 = vld [vmem:[%s0 + $0x170] sm:$0xff]
    %v64 = vld [vmem:[%s0 + $0x178] sm:$0xff]
    %v65 = vld [vmem:[%s0 + $0x180] sm:$0xff]
    %v66 = vld [vmem:[%s0 + $0x188] sm:$0xff]
    %v67 = vld [vmem:[%s0 + $0x190] sm:$0xff]
    %v68 = vld [vmem:[%s0 + $0x198] sm:$0xff]
    %v69 = vld [vmem:[%s0 + $0x1a0] sm:$0xff]
    %v70 = vld [vmem:[%s0 + $0x1a8] sm:$0xff]
    %v71 = vld [vmem:[%s0 + $0x1b0] sm:$0xff]
    %v72 = vld [vmem:[%s0 + $0x1b8] sm:$0xff]
    %v73 = vld [vmem:[%s0 + $0x1c0] sm:$0xff]
    %v74 = vld [vmem:[%s0 + $0x1c8] sm:$0xff]
    %v75 = vld [vmem:[%s0 + $0x1d0] sm:$0xff]
    %v76 = vld [vmem:[%s0 + $0x1d8] sm:$0xff]
    %v77 = vld [vmem:[%s0 + $0x1e0] sm:$0xff]
    %v78 = vld [vmem:[%s0 + $0x1e8] sm:$0xff]
    %v79 = vld [vmem:[%s0 + $0x1f0] sm:$0xff]
    %v80 = vld [vmem:[%s0 + $0x1f8] sm:$0xff]
    %v81 = vld [vmem:[%s0 + $0x200] sm:$0xff]
    %v82 = vld [vmem:[%s0 + $0x208] sm:$0xff]
    %v83 = vld [vmem:[%s0 + $0x210] sm:$0xff]
    %v84 = vld [vmem:[%s0 + $0x218] sm:$0xff]
    %v85 = vld [vmem:[%s0 + $0x220] sm:$0xff]
    %v86 = vld [vmem:[%s0 + $0x228] sm:$0xff]
    %v87 = vld [vmem:[%s0 + $0x230] sm:$0xff]
    %v88 = vld [vmem:[%s0 + $0x238] sm:$0xff]
    %v89 = vld [vmem:[%s0 + $0x240] sm:$0xff]
    %v90 = vld [vmem:[%s0 + $0x248] sm:$0xff]
    %v91 = vld [vmem:[%s0 + $0x250] sm:$0xff]
    %v92 = vld [vmem:[%s0 + $0x258] sm:$0xff]
    %v93 = vld [vmem:[%s0 + $0x260] sm:$0xff]
    %v94 = vld [vmem:[%s0 + $0x268] sm:$0xff]
    %v95 = vld [vmem:[%s0 + $0x270] sm:$0xff]
    %v96 = vld [vmem:[%s0 + $0x278] sm:$0xff]
    %v97 = vld [vmem:[%s0 + $0x280] sm:$0xff]
    %v98 = vld [vmem:[%s0 + $0x288] sm:$0xff]
    %v99 = vld [vmem:[%s0 + $0x290] sm:$0xff]
    %v100 = vld [vmem:[%s0 + $0x298] sm:$0xff]
    %v101 = vld [vmem:[%s0 + $0x2a0] sm:$0xff]
    %v102 = vld [vmem:[%s0 + $0x2a8] sm:$0xff]
    %v103 = vld [vmem:[%s0 + $0x2b0] sm:$0xff]
    %v104 = vld [vmem:[%s0 + $0x2b8] sm:$0xff]
    %v105 = vld [vmem:[%s0 + $0x2c0] sm:$0xff]
    %v106 = vld [vmem:[%s0 + $0x2c8] sm:$0xff]
    %v107 = vld [vmem:[%s0 + $0x2d0] sm:$0xff]
    %v108 = vld [vmem:[%s0 + $0x2d8] sm:$0xff]
    %v109 = vld [vmem:[%s0 + $0x2e0] sm:$0xff]
    %v110 = vld [vmem:[%s0 + $0x2e8] sm:$0xff]
    %v111 = vld [vmem:[%s0 + $0x2f0] sm:$0xff]
    %v112 = vld [vmem:[%s0 + $0x2f8] sm:$0xff]
    %v113 = vld [vmem:[%s0 + $0x300] sm:$0xff]
    %v114 = vld [vmem:[%s0 + $0x308] sm:$0xff]
    %v115 = vld [vmem:[%s0 + $0x310] sm:$0xff]
    %v116 = vld [vmem:[%s0 + $0x318] sm:$0xff]
    %v117 = vld [vmem:[%s0 + $0x320] sm:$0xff]
    %v118 = vld [vmem:[%s0 + $0x328] sm:$0xff]
    %v119 = vld [vmem:[%s0 + $0x330] sm:$0xff]
    %v120 = vld [vmem:[%s0 + $0x338] sm:$0xff]
    %v121 = vld [vmem:[%s0 + $0x340] sm:$0xff]
    %v122 = vld [vmem:[%s0 + $0x348] sm:$0xff]
    %v123 = vld [vmem:[%s0 + $0x350] sm:$0xff]
    %v124 = vld [vmem:[%s0 + $0x358] sm:$0xff]
    %v125 = vld [vmem:[%s0 + $0x360] sm:$0xff]
    %v126 = vld [vmem:[%s0 + $0x368] sm:$0xff]
    %v127 = vld [vmem:[%s0 + $0x370] sm:$0xff]
    %v128 = vld [vmem:[%s0 + $0x378] sm:$0xff]
    %v129 = vld [vmem:[%s0 + $0x380] sm:$0xff]
    %v130 = vld [vmem:[%s0 + $0x388] sm:$0xff]
    %v131 = vld [vmem:[%s0 + $0x390] sm:$0xff]
    %v132 = vld [vmem:[%s0 + $0x398] sm:$0xff]
    %v133 = vld [vmem:[%s0 + $0x3a0] sm:$0xff]
    %v134 = vld [vmem:[%s0 + $0x3a8] sm:$0xff]
    %v135 = vld [vmem:[%s0 + $0x3b0] sm:$0xff]
    %v136 = vld [vmem:[%s0 + $0x3b8] sm:$0xff]
    %v137 = vld [vmem:[%s0 + $0x3c0] sm:$0xff]
    %v138 = vld [vmem:[%s0 + $0x3c8] sm:$0xff]
    %v139 = vld [vmem:[%s0 + $0x3d0] sm:$0xff]
    %v140 = vld [vmem:[%s0 + $0x3d8] sm:$0xff]
    %v141 = vld [vmem:[%s0 + $0x3e0] sm:$0xff]
    %v142 = vld [vmem:[%s0 + $0x3e8] sm:$0xff]
    %v143 = vld [vmem:[%s0 + $0x3f0] sm:$0xff]
    %v144 = vld [vmem:[%s0 + $0x3f8] sm:$0xff]
    %v145 = vld [vmem:[#allocation2] sm:$0xff]
    %vm146 = vcmask 64512
    %v147 = vsel %vm146, %v17, 0.0
    %148 = vadd.xlane.f32.xlu0 %v147
    %v149 = vpop.xlane.xlu0 %148
    %v150 = vsel %vm146, %v18, 0.0
    %151 = vadd.xlane.f32.xlu0 %v150
    %v152 = vpop.xlane.xlu0 %151
    %v153 = vsel %vm146, %v19, 0.0
    %154 = vadd.xlane.f32.xlu0 %v153
    %v155 = vpop.xlane.xlu0 %154
    %v156 = vsel %vm146, %v20, 0.0
    %157 = vadd.xlane.f32.xlu0 %v156
    %v158 = vpop.xlane.xlu0 %157
    %v159 = vsel %vm146, %v21, 0.0
    %160 = vadd.xlane.f32.xlu0 %v159
    %v161 = vpop.xlane.xlu0 %160
    %v162 = vsel %vm146, %v22, 0.0
    %163 = vadd.xlane.f32.xlu0 %v162
    %v164 = vpop.xlane.xlu0 %163
    %v165 = vsel %vm146, %v23, 0.0
    %166 = vadd.xlane.f32.xlu0 %v165
    %v167 = vpop.xlane.xlu0 %166
    %v168 = vsel %vm146, %v24, 0.0
    %169 = vadd.xlane.f32.xlu0 %v168
    %v170 = vpop.xlane.xlu0 %169
    %v171 = vsel %vm146, %v25, 0.0
    %172 = vadd.xlane.f32.xlu0 %v171
    %v173 = vpop.xlane.xlu0 %172
    %v174 = vsel %vm146, %v26, 0.0
    %175 = vadd.xlane.f32.xlu0 %v174
    %v176 = vpop.xlane.xlu0 %175
    %v177 = vsel %vm146, %v27, 0.0
    %178 = vadd.xlane.f32.xlu0 %v177
    %v179 = vpop.xlane.xlu0 %178
    %v180 = vsel %vm146, %v28, 0.0
    %181 = vadd.xlane.f32.xlu0 %v180
    %v182 = vpop.xlane.xlu0 %181
    %v183 = vsel %vm146, %v29, 0.0
    %184 = vadd.xlane.f32.xlu0 %v183
    %v185 = vpop.xlane.xlu0 %184
    %v186 = vsel %vm146, %v30, 0.0
    %187 = vadd.xlane.f32.xlu0 %v186
    %v188 = vpop.xlane.xlu0 %187
    %v189 = vsel %vm146, %v31, 0.0
    %190 = vadd.xlane.f32.xlu0 %v189
    %v191 = vpop.xlane.xlu0 %190
    %v192 = vsel %vm146, %v32, 0.0
    %193 = vadd.xlane.f32.xlu0 %v192
    %v194 = vpop.xlane.xlu0 %193
    %v195 = vsel %vm146, %v33, 0.0
    %196 = vadd.xlane.f32.xlu0 %v195
    %v197 = vpop.xlane.xlu0 %196
    %v198 = vsel %vm146, %v34, 0.0
    %199 = vadd.xlane.f32.xlu0 %v198
    %v200 = vpop.xlane.xlu0 %199
    %v201 = vsel %vm146, %v35, 0.0
    %202 = vadd.xlane.f32.xlu0 %v201
    %v203 = vpop.xlane.xlu0 %202
    %v204 = vsel %vm146, %v36, 0.0
    %205 = vadd.xlane.f32.xlu0 %v204
    %v206 = vpop.xlane.xlu0 %205
    %v207 = vsel %vm146, %v37, 0.0
    %208 = vadd.xlane.f32.xlu0 %v207
    %v209 = vpop.xlane.xlu0 %208
    %v210 = vsel %vm146, %v38, 0.0
    %211 = vadd.xlane.f32.xlu0 %v210
    %v212 = vpop.xlane.xlu0 %211
    %v213 = vsel %vm146, %v39, 0.0
    %214 = vadd.xlane.f32.xlu0 %v213
    %v215 = vpop.xlane.xlu0 %214
    %v216 = vsel %vm146, %v40, 0.0
    %217 = vadd.xlane.f32.xlu0 %v216
    %v218 = vpop.xlane.xlu0 %217
    %v219 = vsel %vm146, %v41, 0.0
    %220 = vadd.xlane.f32.xlu0 %v219
    %v221 = vpop.xlane.xlu0 %220
    %v222 = vsel %vm146, %v42, 0.0
    %223 = vadd.xlane.f32.xlu0 %v222
    %v224 = vpop.xlane.xlu0 %223
    %v225 = vsel %vm146, %v43, 0.0
    %226 = vadd.xlane.f32.xlu0 %v225
    %v227 = vpop.xlane.xlu0 %226
    %v228 = vsel %vm146, %v44, 0.0
    %229 = vadd.xlane.f32.xlu0 %v228
    %v230 = vpop.xlane.xlu0 %229
    %v231 = vsel %vm146, %v45, 0.0
    %232 = vadd.xlane.f32.xlu0 %v231
    %v233 = vpop.xlane.xlu0 %232
    %v234 = vsel %vm146, %v46, 0.0
    %235 = vadd.xlane.f32.xlu0 %v234
    %v236 = vpop.xlane.xlu0 %235
    %v237 = vsel %vm146, %v47, 0.0
    %238 = vadd.xlane.f32.xlu0 %v237
    %v239 = vpop.xlane.xlu0 %238
    %v240 = vsel %vm146, %v48, 0.0
    %241 = vadd.xlane.f32.xlu0 %v240
    %v242 = vpop.xlane.xlu0 %241
    %v243 = vsel %vm146, %v49, 0.0
    %244 = vadd.xlane.f32.xlu0 %v243
    %v245 = vpop.xlane.xlu0 %244
    %v246 = vsel %vm146, %v50, 0.0
    %247 = vadd.xlane.f32.xlu0 %v246
    %v248 = vpop.xlane.xlu0 %247
    %v249 = vsel %vm146, %v51, 0.0
    %250 = vadd.xlane.f32.xlu0 %v249
    %v251 = vpop.xlane.xlu0 %250
    %v252 = vsel %vm146, %v52, 0.0
    %253 = vadd.xlane.f32.xlu0 %v252
    %v254 = vpop.xlane.xlu0 %253
    %v255 = vsel %vm146, %v53, 0.0
    %256 = vadd.xlane.f32.xlu0 %v255
    %v257 = vpop.xlane.xlu0 %256
    %v258 = vsel %vm146, %v54, 0.0
    %259 = vadd.xlane.f32.xlu0 %v258
    %v260 = vpop.xlane.xlu0 %259
    %v261 = vsel %vm146, %v55, 0.0
    %262 = vadd.xlane.f32.xlu0 %v261
    %v263 = vpop.xlane.xlu0 %262
    %v264 = vsel %vm146, %v56, 0.0
    %265 = vadd.xlane.f32.xlu0 %v264
    %v266 = vpop.xlane.xlu0 %265
    %v267 = vsel %vm146, %v57, 0.0
    %268 = vadd.xlane.f32.xlu0 %v267
    %v269 = vpop.xlane.xlu0 %268
    %v270 = vsel %vm146, %v58, 0.0
    %271 = vadd.xlane.f32.xlu0 %v270
    %v272 = vpop.xlane.xlu0 %271
    %v273 = vsel %vm146, %v59, 0.0
    %274 = vadd.xlane.f32.xlu0 %v273
    %v275 = vpop.xlane.xlu0 %274
    %v276 = vsel %vm146, %v60, 0.0
    %277 = vadd.xlane.f32.xlu0 %v276
    %v278 = vpop.xlane.xlu0 %277
    %v279 = vsel %vm146, %v61, 0.0
    %280 = vadd.xlane.f32.xlu0 %v279
    %v281 = vpop.xlane.xlu0 %280
    %v282 = vsel %vm146, %v62, 0.0
    %283 = vadd.xlane.f32.xlu0 %v282
    %v284 = vpop.xlane.xlu0 %283
    %v285 = vsel %vm146, %v63, 0.0
    %286 = vadd.xlane.f32.xlu0 %v285
    %v287 = vpop.xlane.xlu0 %286
    %v288 = vsel %vm146, %v64, 0.0
    %289 = vadd.xlane.f32.xlu0 %v288
    %v290 = vpop.xlane.xlu0 %289
    %v291 = vsel %vm146, %v65, 0.0
    %292 = vadd.xlane.f32.xlu0 %v291
    %v293 = vpop.xlane.xlu0 %292
    %v294 = vsel %vm146, %v66, 0.0
    %295 = vadd.xlane.f32.xlu0 %v294
    %v296 = vpop.xlane.xlu0 %295
    %v297 = vsel %vm146, %v67, 0.0
    %298 = vadd.xlane.f32.xlu0 %v297
    %v299 = vpop.xlane.xlu0 %298
    %v300 = vsel %vm146, %v68, 0.0
    %301 = vadd.xlane.f32.xlu0 %v300
    %v302 = vpop.xlane.xlu0 %301
    %v303 = vsel %vm146, %v69, 0.0
    %304 = vadd.xlane.f32.xlu0 %v303
    %v305 = vpop.xlane.xlu0 %304
    %v306 = vsel %vm146, %v70, 0.0
    %307 = vadd.xlane.f32.xlu0 %v306
    %v308 = vpop.xlane.xlu0 %307
    %v309 = vsel %vm146, %v71, 0.0
    %310 = vadd.xlane.f32.xlu0 %v309
    %v311 = vpop.xlane.xlu0 %310
    %v312 = vsel %vm146, %v72, 0.0
    %313 = vadd.xlane.f32.xlu0 %v312
    %v314 = vpop.xlane.xlu0 %313
    %v315 = vsel %vm146, %v73, 0.0
    %316 = vadd.xlane.f32.xlu0 %v315
    %v317 = vpop.xlane.xlu0 %316
    %v318 = vsel %vm146, %v74, 0.0
    %319 = vadd.xlane.f32.xlu0 %v318
    %v320 = vpop.xlane.xlu0 %319
    %v321 = vsel %vm146, %v75, 0.0
    %322 = vadd.xlane.f32.xlu0 %v321
    %v323 = vpop.xlane.xlu0 %322
    %v324 = vsel %vm146, %v76, 0.0
    %325 = vadd.xlane.f32.xlu0 %v324
    %v326 = vpop.xlane.xlu0 %325
    %v327 = vsel %vm146, %v77, 0.0
    %328 = vadd.xlane.f32.xlu0 %v327
    %v329 = vpop.xlane.xlu0 %328
    %v330 = vsel %vm146, %v78, 0.0
    %331 = vadd.xlane.f32.xlu0 %v330
    %v332 = vpop.xlane.xlu0 %331
    %v333 = vsel %vm146, %v79, 0.0
    %334 = vadd.xlane.f32.xlu0 %v333
    %v335 = vpop.xlane.xlu0 %334
    %v336 = vsel %vm146, %v80, 0.0
    %337 = vadd.xlane.f32.xlu0 %v336
    %v338 = vpop.xlane.xlu0 %337
    %v339 = vsel %vm146, %v81, 0.0
    %340 = vadd.xlane.f32.xlu0 %v339
    %v341 = vpop.xlane.xlu0 %340
    %v342 = vsel %vm146, %v82, 0.0
    %343 = vadd.xlane.f32.xlu0 %v342
    %v344 = vpop.xlane.xlu0 %343
    %v345 = vsel %vm146, %v83, 0.0
    %346 = vadd.xlane.f32.xlu0 %v345
    %v347 = vpop.xlane.xlu0 %346
    %v348 = vsel %vm146, %v84, 0.0
    %349 = vadd.xlane.f32.xlu0 %v348
    %v350 = vpop.xlane.xlu0 %349
    %v351 = vsel %vm146, %v85, 0.0
    %352 = vadd.xlane.f32.xlu0 %v351
    %v353 = vpop.xlane.xlu0 %352
    %v354 = vsel %vm146, %v86, 0.0
    %355 = vadd.xlane.f32.xlu0 %v354
    %v356 = vpop.xlane.xlu0 %355
    %v357 = vsel %vm146, %v87, 0.0
    %358 = vadd.xlane.f32.xlu0 %v357
    %v359 = vpop.xlane.xlu0 %358
    %v360 = vsel %vm146, %v88, 0.0
    %361 = vadd.xlane.f32.xlu0 %v360
    %v362 = vpop.xlane.xlu0 %361
    %v363 = vsel %vm146, %v89, 0.0
    %364 = vadd.xlane.f32.xlu0 %v363
    %v365 = vpop.xlane.xlu0 %364
    %v366 = vsel %vm146, %v90, 0.0
    %367 = vadd.xlane.f32.xlu0 %v366
    %v368 = vpop.xlane.xlu0 %367
    %v369 = vsel %vm146, %v91, 0.0
    %370 = vadd.xlane.f32.xlu0 %v369
    %v371 = vpop.xlane.xlu0 %370
    %v372 = vsel %vm146, %v92, 0.0
    %373 = vadd.xlane.f32.xlu0 %v372
    %v374 = vpop.xlane.xlu0 %373
    %v375 = vsel %vm146, %v93, 0.0
    %376 = vadd.xlane.f32.xlu0 %v375
    %v377 = vpop.xlane.xlu0 %376
    %v378 = vsel %vm146, %v94, 0.0
    %379 = vadd.xlane.f32.xlu0 %v378
    %v380 = vpop.xlane.xlu0 %379
    %v381 = vsel %vm146, %v95, 0.0
    %382 = vadd.xlane.f32.xlu0 %v381
    %v383 = vpop.xlane.xlu0 %382
    %v384 = vsel %vm146, %v96, 0.0
    %385 = vadd.xlane.f32.xlu0 %v384
    %v386 = vpop.xlane.xlu0 %385
    %v387 = vsel %vm146, %v97, 0.0
    %388 = vadd.xlane.f32.xlu0 %v387
    %v389 = vpop.xlane.xlu0 %388
    %v390 = vsel %vm146, %v98, 0.0
    %391 = vadd.xlane.f32.xlu0 %v390
    %v392 = vpop.xlane.xlu0 %391
    %v393 = vsel %vm146, %v99, 0.0
    %394 = vadd.xlane.f32.xlu0 %v393
    %v395 = vpop.xlane.xlu0 %394
    %v396 = vsel %vm146, %v100, 0.0
    %397 = vadd.xlane.f32.xlu0 %v396
    %v398 = vpop.xlane.xlu0 %397
    %v399 = vsel %vm146, %v101, 0.0
    %400 = vadd.xlane.f32.xlu0 %v399
    %v401 = vpop.xlane.xlu0 %400
    %v402 = vsel %vm146, %v102, 0.0
    %403 = vadd.xlane.f32.xlu0 %v402
    %v404 = vpop.xlane.xlu0 %403
    %v405 = vsel %vm146, %v103, 0.0
    %406 = vadd.xlane.f32.xlu0 %v405
    %v407 = vpop.xlane.xlu0 %406
    %v408 = vsel %vm146, %v104, 0.0
    %409 = vadd.xlane.f32.xlu0 %v408
    %v410 = vpop.xlane.xlu0 %409
    %v411 = vsel %vm146, %v105, 0.0
    %412 = vadd.xlane.f32.xlu0 %v411
    %v413 = vpop.xlane.xlu0 %412
    %v414 = vsel %vm146, %v106, 0.0
    %415 = vadd.xlane.f32.xlu0 %v414
    %v416 = vpop.xlane.xlu0 %415
    %v417 = vsel %vm146, %v107, 0.0
    %418 = vadd.xlane.f32.xlu0 %v417
    %v419 = vpop.xlane.xlu0 %418
    %v420 = vsel %vm146, %v108, 0.0
    %421 = vadd.xlane.f32.xlu0 %v420
    %v422 = vpop.xlane.xlu0 %421
    %v423 = vsel %vm146, %v109, 0.0
    %424 = vadd.xlane.f32.xlu0 %v423
    %v425 = vpop.xlane.xlu0 %424
    %v426 = vsel %vm146, %v110, 0.0
    %427 = vadd.xlane.f32.xlu0 %v426
    %v428 = vpop.xlane.xlu0 %427
    %v429 = vsel %vm146, %v111, 0.0
    %430 = vadd.xlane.f32.xlu0 %v429
    %v431 = vpop.xlane.xlu0 %430
    %v432 = vsel %vm146, %v112, 0.0
    %433 = vadd.xlane.f32.xlu0 %v432
    %v434 = vpop.xlane.xlu0 %433
    %v435 = vsel %vm146, %v113, 0.0
    %436 = vadd.xlane.f32.xlu0 %v435
    %v437 = vpop.xlane.xlu0 %436
    %v438 = vsel %vm146, %v114, 0.0
    %439 = vadd.xlane.f32.xlu0 %v438
    %v440 = vpop.xlane.xlu0 %439
    %v441 = vsel %vm146, %v115, 0.0
    %442 = vadd.xlane.f32.xlu0 %v441
    %v443 = vpop.xlane.xlu0 %442
    %v444 = vsel %vm146, %v116, 0.0
    %445 = vadd.xlane.f32.xlu0 %v444
    %v446 = vpop.xlane.xlu0 %445
    %v447 = vsel %vm146, %v117, 0.0
    %448 = vadd.xlane.f32.xlu0 %v447
    %v449 = vpop.xlane.xlu0 %448
    %v450 = vsel %vm146, %v118, 0.0
    %451 = vadd.xlane.f32.xlu0 %v450
    %v452 = vpop.xlane.xlu0 %451
    %v453 = vsel %vm146, %v119, 0.0
    %454 = vadd.xlane.f32.xlu0 %v453
    %v455 = vpop.xlane.xlu0 %454
    %v456 = vsel %vm146, %v120, 0.0
    %457 = vadd.xlane.f32.xlu0 %v456
    %v458 = vpop.xlane.xlu0 %457
    %v459 = vsel %vm146, %v121, 0.0
    %460 = vadd.xlane.f32.xlu0 %v459
    %v461 = vpop.xlane.xlu0 %460
    %v462 = vsel %vm146, %v122, 0.0
    %463 = vadd.xlane.f32.xlu0 %v462
    %v464 = vpop.xlane.xlu0 %463
    %v465 = vsel %vm146, %v123, 0.0
    %466 = vadd.xlane.f32.xlu0 %v465
    %v467 = vpop.xlane.xlu0 %466
    %v468 = vsel %vm146, %v124, 0.0
    %469 = vadd.xlane.f32.xlu0 %v468
    %v470 = vpop.xlane.xlu0 %469
    %v471 = vsel %vm146, %v125, 0.0
    %472 = vadd.xlane.f32.xlu0 %v471
    %v473 = vpop.xlane.xlu0 %472
    %v474 = vsel %vm146, %v126, 0.0
    %475 = vadd.xlane.f32.xlu0 %v474
    %v476 = vpop.xlane.xlu0 %475
    %v477 = vsel %vm146, %v127, 0.0
    %478 = vadd.xlane.f32.xlu0 %v477
    %v479 = vpop.xlane.xlu0 %478
    %v480 = vsel %vm146, %v128, 0.0
    %481 = vadd.xlane.f32.xlu0 %v480
    %v482 = vpop.xlane.xlu0 %481
    %v483 = vsel %vm146, %v129, 0.0
    %484 = vadd.xlane.f32.xlu0 %v483
    %v485 = vpop.xlane.xlu0 %484
    %v486 = vsel %vm146, %v130, 0.0
    %487 = vadd.xlane.f32.xlu0 %v486
    %v488 = vpop.xlane.xlu0 %487
    %v489 = vsel %vm146, %v131, 0.0
    %490 = vadd.xlane.f32.xlu0 %v489
    %v491 = vpop.xlane.xlu0 %490
    %v492 = vsel %vm146, %v132, 0.0
    %493 = vadd.xlane.f32.xlu0 %v492
    %v494 = vpop.xlane.xlu0 %493
    %v495 = vsel %vm146, %v133, 0.0
    %496 = vadd.xlane.f32.xlu0 %v495
    %v497 = vpop.xlane.xlu0 %496
    %v498 = vsel %vm146, %v134, 0.0
    %499 = vadd.xlane.f32.xlu0 %v498
    %v500 = vpop.xlane.xlu0 %499
    %v501 = vsel %vm146, %v135, 0.0
    %502 = vadd.xlane.f32.xlu0 %v501
    %v503 = vpop.xlane.xlu0 %502
    %v504 = vsel %vm146, %v136, 0.0
    %505 = vadd.xlane.f32.xlu0 %v504
    %v506 = vpop.xlane.xlu0 %505
    %v507 = vsel %vm146, %v137, 0.0
    %508 = vadd.xlane.f32.xlu0 %v507
    %v509 = vpop.xlane.xlu0 %508
    %v510 = vsel %vm146, %v138, 0.0
    %511 = vadd.xlane.f32.xlu0 %v510
    %v512 = vpop.xlane.xlu0 %511
    %v513 = vsel %vm146, %v139, 0.0
    %514 = vadd.xlane.f32.xlu0 %v513
    %v515 = vpop.xlane.xlu0 %514
    %v516 = vsel %vm146, %v140, 0.0
    %517 = vadd.xlane.f32.xlu0 %v516
    %v518 = vpop.xlane.xlu0 %517
    %v519 = vsel %vm146, %v141, 0.0
    %520 = vadd.xlane.f32.xlu0 %v519
    %v521 = vpop.xlane.xlu0 %520
    %v522 = vsel %vm146, %v142, 0.0
    %523 = vadd.xlane.f32.xlu0 %v522
    %v524 = vpop.xlane.xlu0 %523
    %v525 = vsel %vm146, %v143, 0.0
    %526 = vadd.xlane.f32.xlu0 %v525
    %v527 = vpop.xlane.xlu0 %526
    %v528 = vsel %vm146, %v144, 0.0
    %529 = vadd.xlane.f32.xlu0 %v528
    %v530 = vpop.xlane.xlu0 %529
    %v660 = vunpack.c.l.s4 269488144
    %v661 = vunpack.c.0.s8 %v660
    %v662 = vlaneseq
    %v663 = vshrl.u32 %v662, 7
    %v664 = vsub.s32 %v661, %v663
    %v665 = vrot.slane %v149, %v664
    %v667 = vunpack.c.l.s4 842150450
    %v668 = vunpack.c.0.s8 %v667
    %v669 = vlaneseq
    %v670 = vshrl.u32 %v669, 7
    %v671 = vsub.s32 %v668, %v670
    %v672 = vrot.slane %v149, %v671
    %v674 = vunpack.c.l.s4 1414812756
    %v675 = vunpack.c.0.s8 %v674
    %v676 = vlaneseq
    %v677 = vshrl.u32 %v676, 7
    %v678 = vsub.s32 %v675, %v677
    %v679 = vrot.slane %v149, %v678
    %v681 = vunpack.c.l.s4 1987475062
    %v682 = vunpack.c.0.s8 %v681
    %v683 = vlaneseq
    %v684 = vshrl.u32 %v683, 7
    %v685 = vsub.s32 %v682, %v684
    %v686 = vrot.slane %v149, %v685
    %v688 = vunpack.c.l.s4 269488144
    %v689 = vunpack.c.0.s8 %v688
    %v690 = vlaneseq
    %v691 = vshrl.u32 %v690, 7
    %v692 = vsub.s32 %v689, %v691
    %v693 = vrot.slane %v152, %v692
    %v695 = vunpack.c.l.s4 842150450
    %v696 = vunpack.c.0.s8 %v695
    %v697 = vlaneseq
    %v698 = vshrl.u32 %v697, 7
    %v699 = vsub.s32 %v696, %v698
    %v700 = vrot.slane %v152, %v699
    %v702 = vunpack.c.l.s4 1414812756
    %v703 = vunpack.c.0.s8 %v702
    %v704 = vlaneseq
    %v705 = vshrl.u32 %v704, 7
    %v706 = vsub.s32 %v703, %v705
    %v707 = vrot.slane %v152, %v706
    %v709 = vunpack.c.l.s4 1987475062
    %v710 = vunpack.c.0.s8 %v709
    %v711 = vlaneseq
    %v712 = vshrl.u32 %v711, 7
    %v713 = vsub.s32 %v710, %v712
    %v714 = vrot.slane %v152, %v713
    %v716 = vunpack.c.l.s4 269488144
    %v717 = vunpack.c.0.s8 %v716
    %v718 = vlaneseq
    %v719 = vshrl.u32 %v718, 7
    %v720 = vsub.s32 %v717, %v719
    %v721 = vrot.slane %v155, %v720
    %v723 = vunpack.c.l.s4 842150450
    %v724 = vunpack.c.0.s8 %v723
    %v725 = vlaneseq
    %v726 = vshrl.u32 %v725, 7
    %v727 = vsub.s32 %v724, %v726
    %v728 = vrot.slane %v155, %v727
    %v730 = vunpack.c.l.s4 1414812756
    %v731 = vunpack.c.0.s8 %v730
    %v732 = vlaneseq
    %v733 = vshrl.u32 %v732, 7
    %v734 = vsub.s32 %v731, %v733
    %v735 = vrot.slane %v155, %v734
    %v737 = vunpack.c.l.s4 1987475062
    %v738 = vunpack.c.0.s8 %v737
    %v739 = vlaneseq
    %v740 = vshrl.u32 %v739, 7
    %v741 = vsub.s32 %v738, %v740
    %v742 = vrot.slane %v155, %v741
    %v744 = vunpack.c.l.s4 269488144
    %v745 = vunpack.c.0.s8 %v744
    %v746 = vlaneseq
    %v747 = vshrl.u32 %v746, 7
    %v748 = vsub.s32 %v745, %v747
    %v749 = vrot.slane %v158, %v748
    %v751 = vunpack.c.l.s4 842150450
    %v752 = vunpack.c.0.s8 %v751
    %v753 = vlaneseq
    %v754 = vshrl.u32 %v753, 7
    %v755 = vsub.s32 %v752, %v754
    %v756 = vrot.slane %v158, %v755
    %v758 = vunpack.c.l.s4 1414812756
    %v759 = vunpack.c.0.s8 %v758
    %v760 = vlaneseq
    %v761 = vshrl.u32 %v760, 7
    %v762 = vsub.s32 %v759, %v761
    %v763 = vrot.slane %v158, %v762
    %v765 = vunpack.c.l.s4 1987475062
    %v766 = vunpack.c.0.s8 %v765
    %v767 = vlaneseq
    %v768 = vshrl.u32 %v767, 7
    %v769 = vsub.s32 %v766, %v768
    %v770 = vrot.slane %v158, %v769
    %v772 = vunpack.c.l.s4 269488144
    %v773 = vunpack.c.0.s8 %v772
    %v774 = vlaneseq
    %v775 = vshrl.u32 %v774, 7
    %v776 = vsub.s32 %v773, %v775
    %v777 = vrot.slane %v161, %v776
    %v779 = vunpack.c.l.s4 842150450
    %v780 = vunpack.c.0.s8 %v779
    %v781 = vlaneseq
    %v782 = vshrl.u32 %v781, 7
    %v783 = vsub.s32 %v780, %v782
    %v784 = vrot.slane %v161, %v783
    %v786 = vunpack.c.l.s4 1414812756
    %v787 = vunpack.c.0.s8 %v786
    %v788 = vlaneseq
    %v789 = vshrl.u32 %v788, 7
    %v790 = vsub.s32 %v787, %v789
    %v791 = vrot.slane %v161, %v790
    %v793 = vunpack.c.l.s4 1987475062
    %v794 = vunpack.c.0.s8 %v793
    %v795 = vlaneseq
    %v796 = vshrl.u32 %v795, 7
    %v797 = vsub.s32 %v794, %v796
    %v798 = vrot.slane %v161, %v797
    %v800 = vunpack.c.l.s4 269488144
    %v801 = vunpack.c.0.s8 %v800
    %v802 = vlaneseq
    %v803 = vshrl.u32 %v802, 7
    %v804 = vsub.s32 %v801, %v803
    %v805 = vrot.slane %v164, %v804
    %v807 = vunpack.c.l.s4 842150450
    %v808 = vunpack.c.0.s8 %v807
    %v809 = vlaneseq
    %v810 = vshrl.u32 %v809, 7
    %v811 = vsub.s32 %v808, %v810
    %v812 = vrot.slane %v164, %v811
    %v814 = vunpack.c.l.s4 1414812756
    %v815 = vunpack.c.0.s8 %v814
    %v816 = vlaneseq
    %v817 = vshrl.u32 %v816, 7
    %v818 = vsub.s32 %v815, %v817
    %v819 = vrot.slane %v164, %v818
    %v821 = vunpack.c.l.s4 1987475062
    %v822 = vunpack.c.0.s8 %v821
    %v823 = vlaneseq
    %v824 = vshrl.u32 %v823, 7
    %v825 = vsub.s32 %v822, %v824
    %v826 = vrot.slane %v164, %v825
    %v828 = vunpack.c.l.s4 269488144
    %v829 = vunpack.c.0.s8 %v828
    %v830 = vlaneseq
    %v831 = vshrl.u32 %v830, 7
    %v832 = vsub.s32 %v829, %v831
    %v833 = vrot.slane %v167, %v832
    %v835 = vunpack.c.l.s4 842150450
    %v836 = vunpack.c.0.s8 %v835
    %v837 = vlaneseq
    %v838 = vshrl.u32 %v837, 7
    %v839 = vsub.s32 %v836, %v838
    %v840 = vrot.slane %v167, %v839
    %v842 = vunpack.c.l.s4 1414812756
    %v843 = vunpack.c.0.s8 %v842
    %v844 = vlaneseq
    %v845 = vshrl.u32 %v844, 7
    %v846 = vsub.s32 %v843, %v845
    %v847 = vrot.slane %v167, %v846
    %v849 = vunpack.c.l.s4 1987475062
    %v850 = vunpack.c.0.s8 %v849
    %v851 = vlaneseq
    %v852 = vshrl.u32 %v851, 7
    %v853 = vsub.s32 %v850, %v852
    %v854 = vrot.slane %v167, %v853
    %v856 = vunpack.c.l.s4 269488144
    %v857 = vunpack.c.0.s8 %v856
    %v858 = vlaneseq
    %v859 = vshrl.u32 %v858, 7
    %v860 = vsub.s32 %v857, %v859
    %v861 = vrot.slane %v170, %v860
    %v863 = vunpack.c.l.s4 842150450
    %v864 = vunpack.c.0.s8 %v863
    %v865 = vlaneseq
    %v866 = vshrl.u32 %v865, 7
    %v867 = vsub.s32 %v864, %v866
    %v868 = vrot.slane %v170, %v867
    %v870 = vunpack.c.l.s4 1414812756
    %v871 = vunpack.c.0.s8 %v870
    %v872 = vlaneseq
    %v873 = vshrl.u32 %v872, 7
    %v874 = vsub.s32 %v871, %v873
    %v875 = vrot.slane %v170, %v874
    %v877 = vunpack.c.l.s4 1987475062
    %v878 = vunpack.c.0.s8 %v877
    %v879 = vlaneseq
    %v880 = vshrl.u32 %v879, 7
    %v881 = vsub.s32 %v878, %v880
    %v882 = vrot.slane %v170, %v881
    %v884 = vunpack.c.l.s4 269488144
    %v885 = vunpack.c.0.s8 %v884
    %v886 = vlaneseq
    %v887 = vshrl.u32 %v886, 7
    %v888 = vsub.s32 %v885, %v887
    %v889 = vrot.slane %v173, %v888
    %v891 = vunpack.c.l.s4 842150450
    %v892 = vunpack.c.0.s8 %v891
    %v893 = vlaneseq
    %v894 = vshrl.u32 %v893, 7
    %v895 = vsub.s32 %v892, %v894
    %v896 = vrot.slane %v173, %v895
    %v898 = vunpack.c.l.s4 1414812756
    %v899 = vunpack.c.0.s8 %v898
    %v900 = vlaneseq
    %v901 = vshrl.u32 %v900, 7
    %v902 = vsub.s32 %v899, %v901
    %v903 = vrot.slane %v173, %v902
    %v905 = vunpack.c.l.s4 1987475062
    %v906 = vunpack.c.0.s8 %v905
    %v907 = vlaneseq
    %v908 = vshrl.u32 %v907, 7
    %v909 = vsub.s32 %v906, %v908
    %v910 = vrot.slane %v173, %v909
    %v912 = vunpack.c.l.s4 269488144
    %v913 = vunpack.c.0.s8 %v912
    %v914 = vlaneseq
    %v915 = vshrl.u32 %v914, 7
    %v916 = vsub.s32 %v913, %v915
    %v917 = vrot.slane %v176, %v916
    %v919 = vunpack.c.l.s4 842150450
    %v920 = vunpack.c.0.s8 %v919
    %v921 = vlaneseq
    %v922 = vshrl.u32 %v921, 7
    %v923 = vsub.s32 %v920, %v922
    %v924 = vrot.slane %v176, %v923
    %v926 = vunpack.c.l.s4 1414812756
    %v927 = vunpack.c.0.s8 %v926
    %v928 = vlaneseq
    %v929 = vshrl.u32 %v928, 7
    %v930 = vsub.s32 %v927, %v929
    %v931 = vrot.slane %v176, %v930
    %v933 = vunpack.c.l.s4 1987475062
    %v934 = vunpack.c.0.s8 %v933
    %v935 = vlaneseq
    %v936 = vshrl.u32 %v935, 7
    %v937 = vsub.s32 %v934, %v936
    %v938 = vrot.slane %v176, %v937
    %v940 = vunpack.c.l.s4 269488144
    %v941 = vunpack.c.0.s8 %v940
    %v942 = vlaneseq
    %v943 = vshrl.u32 %v942, 7
    %v944 = vsub.s32 %v941, %v943
    %v945 = vrot.slane %v179, %v944
    %v947 = vunpack.c.l.s4 842150450
    %v948 = vunpack.c.0.s8 %v947
    %v949 = vlaneseq
    %v950 = vshrl.u32 %v949, 7
    %v951 = vsub.s32 %v948, %v950
    %v952 = vrot.slane %v179, %v951
    %v954 = vunpack.c.l.s4 1414812756
    %v955 = vunpack.c.0.s8 %v954
    %v956 = vlaneseq
    %v957 = vshrl.u32 %v956, 7
    %v958 = vsub.s32 %v955, %v957
    %v959 = vrot.slane %v179, %v958
    %v961 = vunpack.c.l.s4 1987475062
    %v962 = vunpack.c.0.s8 %v961
    %v963 = vlaneseq
    %v964 = vshrl.u32 %v963, 7
    %v965 = vsub.s32 %v962, %v964
    %v966 = vrot.slane %v179, %v965
    %v968 = vunpack.c.l.s4 269488144
    %v969 = vunpack.c.0.s8 %v968
    %v970 = vlaneseq
    %v971 = vshrl.u32 %v970, 7
    %v972 = vsub.s32 %v969, %v971
    %v973 = vrot.slane %v182, %v972
    %v975 = vunpack.c.l.s4 842150450
    %v976 = vunpack.c.0.s8 %v975
    %v977 = vlaneseq
    %v978 = vshrl.u32 %v977, 7
    %v979 = vsub.s32 %v976, %v978
    %v980 = vrot.slane %v182, %v979
    %v982 = vunpack.c.l.s4 1414812756
    %v983 = vunpack.c.0.s8 %v982
    %v984 = vlaneseq
    %v985 = vshrl.u32 %v984, 7
    %v986 = vsub.s32 %v983, %v985
    %v987 = vrot.slane %v182, %v986
    %v989 = vunpack.c.l.s4 1987475062
    %v990 = vunpack.c.0.s8 %v989
    %v991 = vlaneseq
    %v992 = vshrl.u32 %v991, 7
    %v993 = vsub.s32 %v990, %v992
    %v994 = vrot.slane %v182, %v993
    %v996 = vunpack.c.l.s4 269488144
    %v997 = vunpack.c.0.s8 %v996
    %v998 = vlaneseq
    %v999 = vshrl.u32 %v998, 7
    %v1000 = vsub.s32 %v997, %v999
    %v1001 = vrot.slane %v185, %v1000
    %v1003 = vunpack.c.l.s4 842150450
    %v1004 = vunpack.c.0.s8 %v1003
    %v1005 = vlaneseq
    %v1006 = vshrl.u32 %v1005, 7
    %v1007 = vsub.s32 %v1004, %v1006
    %v1008 = vrot.slane %v185, %v1007
    %v1010 = vunpack.c.l.s4 1414812756
    %v1011 = vunpack.c.0.s8 %v1010
    %v1012 = vlaneseq
    %v1013 = vshrl.u32 %v1012, 7
    %v1014 = vsub.s32 %v1011, %v1013
    %v1015 = vrot.slane %v185, %v1014
    %v1017 = vunpack.c.l.s4 1987475062
    %v1018 = vunpack.c.0.s8 %v1017
    %v1019 = vlaneseq
    %v1020 = vshrl.u32 %v1019, 7
    %v1021 = vsub.s32 %v1018, %v1020
    %v1022 = vrot.slane %v185, %v1021
    %v1024 = vunpack.c.l.s4 269488144
    %v1025 = vunpack.c.0.s8 %v1024
    %v1026 = vlaneseq
    %v1027 = vshrl.u32 %v1026, 7
    %v1028 = vsub.s32 %v1025, %v1027
    %v1029 = vrot.slane %v188, %v1028
    %v1031 = vunpack.c.l.s4 842150450
    %v1032 = vunpack.c.0.s8 %v1031
    %v1033 = vlaneseq
    %v1034 = vshrl.u32 %v1033, 7
    %v1035 = vsub.s32 %v1032, %v1034
    %v1036 = vrot.slane %v188, %v1035
    %v1038 = vunpack.c.l.s4 1414812756
    %v1039 = vunpack.c.0.s8 %v1038
    %v1040 = vlaneseq
    %v1041 = vshrl.u32 %v1040, 7
    %v1042 = vsub.s32 %v1039, %v1041
    %v1043 = vrot.slane %v188, %v1042
    %v1045 = vunpack.c.l.s4 1987475062
    %v1046 = vunpack.c.0.s8 %v1045
    %v1047 = vlaneseq
    %v1048 = vshrl.u32 %v1047, 7
    %v1049 = vsub.s32 %v1046, %v1048
    %v1050 = vrot.slane %v188, %v1049
    %v1052 = vunpack.c.l.s4 269488144
    %v1053 = vunpack.c.0.s8 %v1052
    %v1054 = vlaneseq
    %v1055 = vshrl.u32 %v1054, 7
    %v1056 = vsub.s32 %v1053, %v1055
    %v1057 = vrot.slane %v191, %v1056
    %v1059 = vunpack.c.l.s4 842150450
    %v1060 = vunpack.c.0.s8 %v1059
    %v1061 = vlaneseq
    %v1062 = vshrl.u32 %v1061, 7
    %v1063 = vsub.s32 %v1060, %v1062
    %v1064 = vrot.slane %v191, %v1063
    %v1066 = vunpack.c.l.s4 1414812756
    %v1067 = vunpack.c.0.s8 %v1066
    %v1068 = vlaneseq
    %v1069 = vshrl.u32 %v1068, 7
    %v1070 = vsub.s32 %v1067, %v1069
    %v1071 = vrot.slane %v191, %v1070
    %v1073 = vunpack.c.l.s4 1987475062
    %v1074 = vunpack.c.0.s8 %v1073
    %v1075 = vlaneseq
    %v1076 = vshrl.u32 %v1075, 7
    %v1077 = vsub.s32 %v1074, %v1076
    %v1078 = vrot.slane %v191, %v1077
    %v1080 = vunpack.c.l.s4 269488144
    %v1081 = vunpack.c.0.s8 %v1080
    %v1082 = vlaneseq
    %v1083 = vshrl.u32 %v1082, 7
    %v1084 = vsub.s32 %v1081, %v1083
    %v1085 = vrot.slane %v194, %v1084
    %v1087 = vunpack.c.l.s4 842150450
    %v1088 = vunpack.c.0.s8 %v1087
    %v1089 = vlaneseq
    %v1090 = vshrl.u32 %v1089, 7
    %v1091 = vsub.s32 %v1088, %v1090
    %v1092 = vrot.slane %v194, %v1091
    %v1094 = vunpack.c.l.s4 1414812756
    %v1095 = vunpack.c.0.s8 %v1094
    %v1096 = vlaneseq
    %v1097 = vshrl.u32 %v1096, 7
    %v1098 = vsub.s32 %v1095, %v1097
    %v1099 = vrot.slane %v194, %v1098
    %v1101 = vunpack.c.l.s4 1987475062
    %v1102 = vunpack.c.0.s8 %v1101
    %v1103 = vlaneseq
    %v1104 = vshrl.u32 %v1103, 7
    %v1105 = vsub.s32 %v1102, %v1104
    %v1106 = vrot.slane %v194, %v1105
    %v1108 = vunpack.c.l.s4 269488144
    %v1109 = vunpack.c.0.s8 %v1108
    %v1110 = vlaneseq
    %v1111 = vshrl.u32 %v1110, 7
    %v1112 = vsub.s32 %v1109, %v1111
    %v1113 = vrot.slane %v197, %v1112
    %v1115 = vunpack.c.l.s4 842150450
    %v1116 = vunpack.c.0.s8 %v1115
    %v1117 = vlaneseq
    %v1118 = vshrl.u32 %v1117, 7
    %v1119 = vsub.s32 %v1116, %v1118
    %v1120 = vrot.slane %v197, %v1119
    %v1122 = vunpack.c.l.s4 1414812756
    %v1123 = vunpack.c.0.s8 %v1122
    %v1124 = vlaneseq
    %v1125 = vshrl.u32 %v1124, 7
    %v1126 = vsub.s32 %v1123, %v1125
    %v1127 = vrot.slane %v197, %v1126
    %v1129 = vunpack.c.l.s4 1987475062
    %v1130 = vunpack.c.0.s8 %v1129
    %v1131 = vlaneseq
    %v1132 = vshrl.u32 %v1131, 7
    %v1133 = vsub.s32 %v1130, %v1132
    %v1134 = vrot.slane %v197, %v1133
    %v1136 = vunpack.c.l.s4 269488144
    %v1137 = vunpack.c.0.s8 %v1136
    %v1138 = vlaneseq
    %v1139 = vshrl.u32 %v1138, 7
    %v1140 = vsub.s32 %v1137, %v1139
    %v1141 = vrot.slane %v200, %v1140
    %v1143 = vunpack.c.l.s4 842150450
    %v1144 = vunpack.c.0.s8 %v1143
    %v1145 = vlaneseq
    %v1146 = vshrl.u32 %v1145, 7
    %v1147 = vsub.s32 %v1144, %v1146
    %v1148 = vrot.slane %v200, %v1147
    %v1150 = vunpack.c.l.s4 1414812756
    %v1151 = vunpack.c.0.s8 %v1150
    %v1152 = vlaneseq
    %v1153 = vshrl.u32 %v1152, 7
    %v1154 = vsub.s32 %v1151, %v1153
    %v1155 = vrot.slane %v200, %v1154
    %v1157 = vunpack.c.l.s4 1987475062
    %v1158 = vunpack.c.0.s8 %v1157
    %v1159 = vlaneseq
    %v1160 = vshrl.u32 %v1159, 7
    %v1161 = vsub.s32 %v1158, %v1160
    %v1162 = vrot.slane %v200, %v1161
    %v1164 = vunpack.c.l.s4 269488144
    %v1165 = vunpack.c.0.s8 %v1164
    %v1166 = vlaneseq
    %v1167 = vshrl.u32 %v1166, 7
    %v1168 = vsub.s32 %v1165, %v1167
    %v1169 = vrot.slane %v203, %v1168
    %v1171 = vunpack.c.l.s4 842150450
    %v1172 = vunpack.c.0.s8 %v1171
    %v1173 = vlaneseq
    %v1174 = vshrl.u32 %v1173, 7
    %v1175 = vsub.s32 %v1172, %v1174
    %v1176 = vrot.slane %v203, %v1175
    %v1178 = vunpack.c.l.s4 1414812756
    %v1179 = vunpack.c.0.s8 %v1178
    %v1180 = vlaneseq
    %v1181 = vshrl.u32 %v1180, 7
    %v1182 = vsub.s32 %v1179, %v1181
    %v1183 = vrot.slane %v203, %v1182
    %v1185 = vunpack.c.l.s4 1987475062
    %v1186 = vunpack.c.0.s8 %v1185
    %v1187 = vlaneseq
    %v1188 = vshrl.u32 %v1187, 7
    %v1189 = vsub.s32 %v1186, %v1188
    %v1190 = vrot.slane %v203, %v1189
    %v1192 = vunpack.c.l.s4 269488144
    %v1193 = vunpack.c.0.s8 %v1192
    %v1194 = vlaneseq
    %v1195 = vshrl.u32 %v1194, 7
    %v1196 = vsub.s32 %v1193, %v1195
    %v1197 = vrot.slane %v206, %v1196
    %v1199 = vunpack.c.l.s4 842150450
    %v1200 = vunpack.c.0.s8 %v1199
    %v1201 = vlaneseq
    %v1202 = vshrl.u32 %v1201, 7
    %v1203 = vsub.s32 %v1200, %v1202
    %v1204 = vrot.slane %v206, %v1203
    %v1206 = vunpack.c.l.s4 1414812756
    %v1207 = vunpack.c.0.s8 %v1206
    %v1208 = vlaneseq
    %v1209 = vshrl.u32 %v1208, 7
    %v1210 = vsub.s32 %v1207, %v1209
    %v1211 = vrot.slane %v206, %v1210
    %v1213 = vunpack.c.l.s4 1987475062
    %v1214 = vunpack.c.0.s8 %v1213
    %v1215 = vlaneseq
    %v1216 = vshrl.u32 %v1215, 7
    %v1217 = vsub.s32 %v1214, %v1216
    %v1218 = vrot.slane %v206, %v1217
    %v1220 = vunpack.c.l.s4 269488144
    %v1221 = vunpack.c.0.s8 %v1220
    %v1222 = vlaneseq
    %v1223 = vshrl.u32 %v1222, 7
    %v1224 = vsub.s32 %v1221, %v1223
    %v1225 = vrot.slane %v209, %v1224
    %v1227 = vunpack.c.l.s4 842150450
    %v1228 = vunpack.c.0.s8 %v1227
    %v1229 = vlaneseq
    %v1230 = vshrl.u32 %v1229, 7
    %v1231 = vsub.s32 %v1228, %v1230
    %v1232 = vrot.slane %v209, %v1231
    %v1234 = vunpack.c.l.s4 1414812756
    %v1235 = vunpack.c.0.s8 %v1234
    %v1236 = vlaneseq
    %v1237 = vshrl.u32 %v1236, 7
    %v1238 = vsub.s32 %v1235, %v1237
    %v1239 = vrot.slane %v209, %v1238
    %v1241 = vunpack.c.l.s4 1987475062
    %v1242 = vunpack.c.0.s8 %v1241
    %v1243 = vlaneseq
    %v1244 = vshrl.u32 %v1243, 7
    %v1245 = vsub.s32 %v1242, %v1244
    %v1246 = vrot.slane %v209, %v1245
    %v1248 = vunpack.c.l.s4 269488144
    %v1249 = vunpack.c.0.s8 %v1248
    %v1250 = vlaneseq
    %v1251 = vshrl.u32 %v1250, 7
    %v1252 = vsub.s32 %v1249, %v1251
    %v1253 = vrot.slane %v212, %v1252
    %v1255 = vunpack.c.l.s4 842150450
    %v1256 = vunpack.c.0.s8 %v1255
    %v1257 = vlaneseq
    %v1258 = vshrl.u32 %v1257, 7
    %v1259 = vsub.s32 %v1256, %v1258
    %v1260 = vrot.slane %v212, %v1259
    %v1262 = vunpack.c.l.s4 1414812756
    %v1263 = vunpack.c.0.s8 %v1262
    %v1264 = vlaneseq
    %v1265 = vshrl.u32 %v1264, 7
    %v1266 = vsub.s32 %v1263, %v1265
    %v1267 = vrot.slane %v212, %v1266
    %v1269 = vunpack.c.l.s4 1987475062
    %v1270 = vunpack.c.0.s8 %v1269
    %v1271 = vlaneseq
    %v1272 = vshrl.u32 %v1271, 7
    %v1273 = vsub.s32 %v1270, %v1272
    %v1274 = vrot.slane %v212, %v1273
    %v1276 = vunpack.c.l.s4 269488144
    %v1277 = vunpack.c.0.s8 %v1276
    %v1278 = vlaneseq
    %v1279 = vshrl.u32 %v1278, 7
    %v1280 = vsub.s32 %v1277, %v1279
    %v1281 = vrot.slane %v215, %v1280
    %v1283 = vunpack.c.l.s4 842150450
    %v1284 = vunpack.c.0.s8 %v1283
    %v1285 = vlaneseq
    %v1286 = vshrl.u32 %v1285, 7
    %v1287 = vsub.s32 %v1284, %v1286
    %v1288 = vrot.slane %v215, %v1287
    %v1290 = vunpack.c.l.s4 1414812756
    %v1291 = vunpack.c.0.s8 %v1290
    %v1292 = vlaneseq
    %v1293 = vshrl.u32 %v1292, 7
    %v1294 = vsub.s32 %v1291, %v1293
    %v1295 = vrot.slane %v215, %v1294
    %v1297 = vunpack.c.l.s4 1987475062
    %v1298 = vunpack.c.0.s8 %v1297
    %v1299 = vlaneseq
    %v1300 = vshrl.u32 %v1299, 7
    %v1301 = vsub.s32 %v1298, %v1300
    %v1302 = vrot.slane %v215, %v1301
    %v1304 = vunpack.c.l.s4 269488144
    %v1305 = vunpack.c.0.s8 %v1304
    %v1306 = vlaneseq
    %v1307 = vshrl.u32 %v1306, 7
    %v1308 = vsub.s32 %v1305, %v1307
    %v1309 = vrot.slane %v218, %v1308
    %v1311 = vunpack.c.l.s4 842150450
    %v1312 = vunpack.c.0.s8 %v1311
    %v1313 = vlaneseq
    %v1314 = vshrl.u32 %v1313, 7
    %v1315 = vsub.s32 %v1312, %v1314
    %v1316 = vrot.slane %v218, %v1315
    %v1318 = vunpack.c.l.s4 1414812756
    %v1319 = vunpack.c.0.s8 %v1318
    %v1320 = vlaneseq
    %v1321 = vshrl.u32 %v1320, 7
    %v1322 = vsub.s32 %v1319, %v1321
    %v1323 = vrot.slane %v218, %v1322
    %v1325 = vunpack.c.l.s4 1987475062
    %v1326 = vunpack.c.0.s8 %v1325
    %v1327 = vlaneseq
    %v1328 = vshrl.u32 %v1327, 7
    %v1329 = vsub.s32 %v1326, %v1328
    %v1330 = vrot.slane %v218, %v1329
    %v1332 = vunpack.c.l.s4 269488144
    %v1333 = vunpack.c.0.s8 %v1332
    %v1334 = vlaneseq
    %v1335 = vshrl.u32 %v1334, 7
    %v1336 = vsub.s32 %v1333, %v1335
    %v1337 = vrot.slane %v221, %v1336
    %v1339 = vunpack.c.l.s4 842150450
    %v1340 = vunpack.c.0.s8 %v1339
    %v1341 = vlaneseq
    %v1342 = vshrl.u32 %v1341, 7
    %v1343 = vsub.s32 %v1340, %v1342
    %v1344 = vrot.slane %v221, %v1343
    %v1346 = vunpack.c.l.s4 1414812756
    %v1347 = vunpack.c.0.s8 %v1346
    %v1348 = vlaneseq
    %v1349 = vshrl.u32 %v1348, 7
    %v1350 = vsub.s32 %v1347, %v1349
    %v1351 = vrot.slane %v221, %v1350
    %v1353 = vunpack.c.l.s4 1987475062
    %v1354 = vunpack.c.0.s8 %v1353
    %v1355 = vlaneseq
    %v1356 = vshrl.u32 %v1355, 7
    %v1357 = vsub.s32 %v1354, %v1356
    %v1358 = vrot.slane %v221, %v1357
    %v1360 = vunpack.c.l.s4 269488144
    %v1361 = vunpack.c.0.s8 %v1360
    %v1362 = vlaneseq
    %v1363 = vshrl.u32 %v1362, 7
    %v1364 = vsub.s32 %v1361, %v1363
    %v1365 = vrot.slane %v224, %v1364
    %v1367 = vunpack.c.l.s4 842150450
    %v1368 = vunpack.c.0.s8 %v1367
    %v1369 = vlaneseq
    %v1370 = vshrl.u32 %v1369, 7
    %v1371 = vsub.s32 %v1368, %v1370
    %v1372 = vrot.slane %v224, %v1371
    %v1374 = vunpack.c.l.s4 1414812756
    %v1375 = vunpack.c.0.s8 %v1374
    %v1376 = vlaneseq
    %v1377 = vshrl.u32 %v1376, 7
    %v1378 = vsub.s32 %v1375, %v1377
    %v1379 = vrot.slane %v224, %v1378
    %v1381 = vunpack.c.l.s4 1987475062
    %v1382 = vunpack.c.0.s8 %v1381
    %v1383 = vlaneseq
    %v1384 = vshrl.u32 %v1383, 7
    %v1385 = vsub.s32 %v1382, %v1384
    %v1386 = vrot.slane %v224, %v1385
    %v1388 = vunpack.c.l.s4 269488144
    %v1389 = vunpack.c.0.s8 %v1388
    %v1390 = vlaneseq
    %v1391 = vshrl.u32 %v1390, 7
    %v1392 = vsub.s32 %v1389, %v1391
    %v1393 = vrot.slane %v227, %v1392
    %v1395 = vunpack.c.l.s4 842150450
    %v1396 = vunpack.c.0.s8 %v1395
    %v1397 = vlaneseq
    %v1398 = vshrl.u32 %v1397, 7
    %v1399 = vsub.s32 %v1396, %v1398
    %v1400 = vrot.slane %v227, %v1399
    %v1402 = vunpack.c.l.s4 1414812756
    %v1403 = vunpack.c.0.s8 %v1402
    %v1404 = vlaneseq
    %v1405 = vshrl.u32 %v1404, 7
    %v1406 = vsub.s32 %v1403, %v1405
    %v1407 = vrot.slane %v227, %v1406
    %v1409 = vunpack.c.l.s4 1987475062
    %v1410 = vunpack.c.0.s8 %v1409
    %v1411 = vlaneseq
    %v1412 = vshrl.u32 %v1411, 7
    %v1413 = vsub.s32 %v1410, %v1412
    %v1414 = vrot.slane %v227, %v1413
    %v1416 = vunpack.c.l.s4 269488144
    %v1417 = vunpack.c.0.s8 %v1416
    %v1418 = vlaneseq
    %v1419 = vshrl.u32 %v1418, 7
    %v1420 = vsub.s32 %v1417, %v1419
    %v1421 = vrot.slane %v230, %v1420
    %v1423 = vunpack.c.l.s4 842150450
    %v1424 = vunpack.c.0.s8 %v1423
    %v1425 = vlaneseq
    %v1426 = vshrl.u32 %v1425, 7
    %v1427 = vsub.s32 %v1424, %v1426
    %v1428 = vrot.slane %v230, %v1427
    %v1430 = vunpack.c.l.s4 1414812756
    %v1431 = vunpack.c.0.s8 %v1430
    %v1432 = vlaneseq
    %v1433 = vshrl.u32 %v1432, 7
    %v1434 = vsub.s32 %v1431, %v1433
    %v1435 = vrot.slane %v230, %v1434
    %v1437 = vunpack.c.l.s4 1987475062
    %v1438 = vunpack.c.0.s8 %v1437
    %v1439 = vlaneseq
    %v1440 = vshrl.u32 %v1439, 7
    %v1441 = vsub.s32 %v1438, %v1440
    %v1442 = vrot.slane %v230, %v1441
    %v1444 = vunpack.c.l.s4 269488144
    %v1445 = vunpack.c.0.s8 %v1444
    %v1446 = vlaneseq
    %v1447 = vshrl.u32 %v1446, 7
    %v1448 = vsub.s32 %v1445, %v1447
    %v1449 = vrot.slane %v233, %v1448
    %v1451 = vunpack.c.l.s4 842150450
    %v1452 = vunpack.c.0.s8 %v1451
    %v1453 = vlaneseq
    %v1454 = vshrl.u32 %v1453, 7
    %v1455 = vsub.s32 %v1452, %v1454
    %v1456 = vrot.slane %v233, %v1455
    %v1458 = vunpack.c.l.s4 1414812756
    %v1459 = vunpack.c.0.s8 %v1458
    %v1460 = vlaneseq
    %v1461 = vshrl.u32 %v1460, 7
    %v1462 = vsub.s32 %v1459, %v1461
    %v1463 = vrot.slane %v233, %v1462
    %v1465 = vunpack.c.l.s4 1987475062
    %v1466 = vunpack.c.0.s8 %v1465
    %v1467 = vlaneseq
    %v1468 = vshrl.u32 %v1467, 7
    %v1469 = vsub.s32 %v1466, %v1468
    %v1470 = vrot.slane %v233, %v1469
    %v1472 = vunpack.c.l.s4 269488144
    %v1473 = vunpack.c.0.s8 %v1472
    %v1474 = vlaneseq
    %v1475 = vshrl.u32 %v1474, 7
    %v1476 = vsub.s32 %v1473, %v1475
    %v1477 = vrot.slane %v236, %v1476
    %v1479 = vunpack.c.l.s4 842150450
    %v1480 = vunpack.c.0.s8 %v1479
    %v1481 = vlaneseq
    %v1482 = vshrl.u32 %v1481, 7
    %v1483 = vsub.s32 %v1480, %v1482
    %v1484 = vrot.slane %v236, %v1483
    %v1486 = vunpack.c.l.s4 1414812756
    %v1487 = vunpack.c.0.s8 %v1486
    %v1488 = vlaneseq
    %v1489 = vshrl.u32 %v1488, 7
    %v1490 = vsub.s32 %v1487, %v1489
    %v1491 = vrot.slane %v236, %v1490
    %v1493 = vunpack.c.l.s4 1987475062
    %v1494 = vunpack.c.0.s8 %v1493
    %v1495 = vlaneseq
    %v1496 = vshrl.u32 %v1495, 7
    %v1497 = vsub.s32 %v1494, %v1496
    %v1498 = vrot.slane %v236, %v1497
    %v1500 = vunpack.c.l.s4 269488144
    %v1501 = vunpack.c.0.s8 %v1500
    %v1502 = vlaneseq
    %v1503 = vshrl.u32 %v1502, 7
    %v1504 = vsub.s32 %v1501, %v1503
    %v1505 = vrot.slane %v239, %v1504
    %v1507 = vunpack.c.l.s4 842150450
    %v1508 = vunpack.c.0.s8 %v1507
    %v1509 = vlaneseq
    %v1510 = vshrl.u32 %v1509, 7
    %v1511 = vsub.s32 %v1508, %v1510
    %v1512 = vrot.slane %v239, %v1511
    %v1514 = vunpack.c.l.s4 1414812756
    %v1515 = vunpack.c.0.s8 %v1514
    %v1516 = vlaneseq
    %v1517 = vshrl.u32 %v1516, 7
    %v1518 = vsub.s32 %v1515, %v1517
    %v1519 = vrot.slane %v239, %v1518
    %v1521 = vunpack.c.l.s4 1987475062
    %v1522 = vunpack.c.0.s8 %v1521
    %v1523 = vlaneseq
    %v1524 = vshrl.u32 %v1523, 7
    %v1525 = vsub.s32 %v1522, %v1524
    %v1526 = vrot.slane %v239, %v1525
    %v1528 = vunpack.c.l.s4 269488144
    %v1529 = vunpack.c.0.s8 %v1528
    %v1530 = vlaneseq
    %v1531 = vshrl.u32 %v1530, 7
    %v1532 = vsub.s32 %v1529, %v1531
    %v1533 = vrot.slane %v242, %v1532
    %v1535 = vunpack.c.l.s4 842150450
    %v1536 = vunpack.c.0.s8 %v1535
    %v1537 = vlaneseq
    %v1538 = vshrl.u32 %v1537, 7
    %v1539 = vsub.s32 %v1536, %v1538
    %v1540 = vrot.slane %v242, %v1539
    %v1542 = vunpack.c.l.s4 1414812756
    %v1543 = vunpack.c.0.s8 %v1542
    %v1544 = vlaneseq
    %v1545 = vshrl.u32 %v1544, 7
    %v1546 = vsub.s32 %v1543, %v1545
    %v1547 = vrot.slane %v242, %v1546
    %v1549 = vunpack.c.l.s4 1987475062
    %v1550 = vunpack.c.0.s8 %v1549
    %v1551 = vlaneseq
    %v1552 = vshrl.u32 %v1551, 7
    %v1553 = vsub.s32 %v1550, %v1552
    %v1554 = vrot.slane %v242, %v1553
    %v1556 = vunpack.c.l.s4 269488144
    %v1557 = vunpack.c.0.s8 %v1556
    %v1558 = vlaneseq
    %v1559 = vshrl.u32 %v1558, 7
    %v1560 = vsub.s32 %v1557, %v1559
    %v1561 = vrot.slane %v245, %v1560
    %v1563 = vunpack.c.l.s4 842150450
    %v1564 = vunpack.c.0.s8 %v1563
    %v1565 = vlaneseq
    %v1566 = vshrl.u32 %v1565, 7
    %v1567 = vsub.s32 %v1564, %v1566
    %v1568 = vrot.slane %v245, %v1567
    %v1570 = vunpack.c.l.s4 1414812756
    %v1571 = vunpack.c.0.s8 %v1570
    %v1572 = vlaneseq
    %v1573 = vshrl.u32 %v1572, 7
    %v1574 = vsub.s32 %v1571, %v1573
    %v1575 = vrot.slane %v245, %v1574
    %v1577 = vunpack.c.l.s4 1987475062
    %v1578 = vunpack.c.0.s8 %v1577
    %v1579 = vlaneseq
    %v1580 = vshrl.u32 %v1579, 7
    %v1581 = vsub.s32 %v1578, %v1580
    %v1582 = vrot.slane %v245, %v1581
    %v1584 = vunpack.c.l.s4 269488144
    %v1585 = vunpack.c.0.s8 %v1584
    %v1586 = vlaneseq
    %v1587 = vshrl.u32 %v1586, 7
    %v1588 = vsub.s32 %v1585, %v1587
    %v1589 = vrot.slane %v248, %v1588
    %v1591 = vunpack.c.l.s4 842150450
    %v1592 = vunpack.c.0.s8 %v1591
    %v1593 = vlaneseq
    %v1594 = vshrl.u32 %v1593, 7
    %v1595 = vsub.s32 %v1592, %v1594
    %v1596 = vrot.slane %v248, %v1595
    %v1598 = vunpack.c.l.s4 1414812756
    %v1599 = vunpack.c.0.s8 %v1598
    %v1600 = vlaneseq
    %v1601 = vshrl.u32 %v1600, 7
    %v1602 = vsub.s32 %v1599, %v1601
    %v1603 = vrot.slane %v248, %v1602
    %v1605 = vunpack.c.l.s4 1987475062
    %v1606 = vunpack.c.0.s8 %v1605
    %v1607 = vlaneseq
    %v1608 = vshrl.u32 %v1607, 7
    %v1609 = vsub.s32 %v1606, %v1608
    %v1610 = vrot.slane %v248, %v1609
    %v1612 = vunpack.c.l.s4 269488144
    %v1613 = vunpack.c.0.s8 %v1612
    %v1614 = vlaneseq
    %v1615 = vshrl.u32 %v1614, 7
    %v1616 = vsub.s32 %v1613, %v1615
    %v1617 = vrot.slane %v251, %v1616
    %v1619 = vunpack.c.l.s4 842150450
    %v1620 = vunpack.c.0.s8 %v1619
    %v1621 = vlaneseq
    %v1622 = vshrl.u32 %v1621, 7
    %v1623 = vsub.s32 %v1620, %v1622
    %v1624 = vrot.slane %v251, %v1623
    %v1626 = vunpack.c.l.s4 1414812756
    %v1627 = vunpack.c.0.s8 %v1626
    %v1628 = vlaneseq
    %v1629 = vshrl.u32 %v1628, 7
    %v1630 = vsub.s32 %v1627, %v1629
    %v1631 = vrot.slane %v251, %v1630
    %v1633 = vunpack.c.l.s4 1987475062
    %v1634 = vunpack.c.0.s8 %v1633
    %v1635 = vlaneseq
    %v1636 = vshrl.u32 %v1635, 7
    %v1637 = vsub.s32 %v1634, %v1636
    %v1638 = vrot.slane %v251, %v1637
    %v1640 = vunpack.c.l.s4 269488144
    %v1641 = vunpack.c.0.s8 %v1640
    %v1642 = vlaneseq
    %v1643 = vshrl.u32 %v1642, 7
    %v1644 = vsub.s32 %v1641, %v1643
    %v1645 = vrot.slane %v254, %v1644
    %v1647 = vunpack.c.l.s4 842150450
    %v1648 = vunpack.c.0.s8 %v1647
    %v1649 = vlaneseq
    %v1650 = vshrl.u32 %v1649, 7
    %v1651 = vsub.s32 %v1648, %v1650
    %v1652 = vrot.slane %v254, %v1651
    %v1654 = vunpack.c.l.s4 1414812756
    %v1655 = vunpack.c.0.s8 %v1654
    %v1656 = vlaneseq
    %v1657 = vshrl.u32 %v1656, 7
    %v1658 = vsub.s32 %v1655, %v1657
    %v1659 = vrot.slane %v254, %v1658
    %v1661 = vunpack.c.l.s4 1987475062
    %v1662 = vunpack.c.0.s8 %v1661
    %v1663 = vlaneseq
    %v1664 = vshrl.u32 %v1663, 7
    %v1665 = vsub.s32 %v1662, %v1664
    %v1666 = vrot.slane %v254, %v1665
    %v1668 = vunpack.c.l.s4 269488144
    %v1669 = vunpack.c.0.s8 %v1668
    %v1670 = vlaneseq
    %v1671 = vshrl.u32 %v1670, 7
    %v1672 = vsub.s32 %v1669, %v1671
    %v1673 = vrot.slane %v257, %v1672
    %v1675 = vunpack.c.l.s4 842150450
    %v1676 = vunpack.c.0.s8 %v1675
    %v1677 = vlaneseq
    %v1678 = vshrl.u32 %v1677, 7
    %v1679 = vsub.s32 %v1676, %v1678
    %v1680 = vrot.slane %v257, %v1679
    %v1682 = vunpack.c.l.s4 1414812756
    %v1683 = vunpack.c.0.s8 %v1682
    %v1684 = vlaneseq
    %v1685 = vshrl.u32 %v1684, 7
    %v1686 = vsub.s32 %v1683, %v1685
    %v1687 = vrot.slane %v257, %v1686
    %v1689 = vunpack.c.l.s4 1987475062
    %v1690 = vunpack.c.0.s8 %v1689
    %v1691 = vlaneseq
    %v1692 = vshrl.u32 %v1691, 7
    %v1693 = vsub.s32 %v1690, %v1692
    %v1694 = vrot.slane %v257, %v1693
    %v1696 = vunpack.c.l.s4 269488144
    %v1697 = vunpack.c.0.s8 %v1696
    %v1698 = vlaneseq
    %v1699 = vshrl.u32 %v1698, 7
    %v1700 = vsub.s32 %v1697, %v1699
    %v1701 = vrot.slane %v260, %v1700
    %v1703 = vunpack.c.l.s4 842150450
    %v1704 = vunpack.c.0.s8 %v1703
    %v1705 = vlaneseq
    %v1706 = vshrl.u32 %v1705, 7
    %v1707 = vsub.s32 %v1704, %v1706
    %v1708 = vrot.slane %v260, %v1707
    %v1710 = vunpack.c.l.s4 1414812756
    %v1711 = vunpack.c.0.s8 %v1710
    %v1712 = vlaneseq
    %v1713 = vshrl.u32 %v1712, 7
    %v1714 = vsub.s32 %v1711, %v1713
    %v1715 = vrot.slane %v260, %v1714
    %v1717 = vunpack.c.l.s4 1987475062
    %v1718 = vunpack.c.0.s8 %v1717
    %v1719 = vlaneseq
    %v1720 = vshrl.u32 %v1719, 7
    %v1721 = vsub.s32 %v1718, %v1720
    %v1722 = vrot.slane %v260, %v1721
    %v1724 = vunpack.c.l.s4 269488144
    %v1725 = vunpack.c.0.s8 %v1724
    %v1726 = vlaneseq
    %v1727 = vshrl.u32 %v1726, 7
    %v1728 = vsub.s32 %v1725, %v1727
    %v1729 = vrot.slane %v263, %v1728
    %v1731 = vunpack.c.l.s4 842150450
    %v1732 = vunpack.c.0.s8 %v1731
    %v1733 = vlaneseq
    %v1734 = vshrl.u32 %v1733, 7
    %v1735 = vsub.s32 %v1732, %v1734
    %v1736 = vrot.slane %v263, %v1735
    %v1738 = vunpack.c.l.s4 1414812756
    %v1739 = vunpack.c.0.s8 %v1738
    %v1740 = vlaneseq
    %v1741 = vshrl.u32 %v1740, 7
    %v1742 = vsub.s32 %v1739, %v1741
    %v1743 = vrot.slane %v263, %v1742
    %v1745 = vunpack.c.l.s4 1987475062
    %v1746 = vunpack.c.0.s8 %v1745
    %v1747 = vlaneseq
    %v1748 = vshrl.u32 %v1747, 7
    %v1749 = vsub.s32 %v1746, %v1748
    %v1750 = vrot.slane %v263, %v1749
    %v1752 = vunpack.c.l.s4 269488144
    %v1753 = vunpack.c.0.s8 %v1752
    %v1754 = vlaneseq
    %v1755 = vshrl.u32 %v1754, 7
    %v1756 = vsub.s32 %v1753, %v1755
    %v1757 = vrot.slane %v266, %v1756
    %v1759 = vunpack.c.l.s4 842150450
    %v1760 = vunpack.c.0.s8 %v1759
    %v1761 = vlaneseq
    %v1762 = vshrl.u32 %v1761, 7
    %v1763 = vsub.s32 %v1760, %v1762
    %v1764 = vrot.slane %v266, %v1763
    %v1766 = vunpack.c.l.s4 1414812756
    %v1767 = vunpack.c.0.s8 %v1766
    %v1768 = vlaneseq
    %v1769 = vshrl.u32 %v1768, 7
    %v1770 = vsub.s32 %v1767, %v1769
    %v1771 = vrot.slane %v266, %v1770
    %v1773 = vunpack.c.l.s4 1987475062
    %v1774 = vunpack.c.0.s8 %v1773
    %v1775 = vlaneseq
    %v1776 = vshrl.u32 %v1775, 7
    %v1777 = vsub.s32 %v1774, %v1776
    %v1778 = vrot.slane %v266, %v1777
    %v1780 = vunpack.c.l.s4 269488144
    %v1781 = vunpack.c.0.s8 %v1780
    %v1782 = vlaneseq
    %v1783 = vshrl.u32 %v1782, 7
    %v1784 = vsub.s32 %v1781, %v1783
    %v1785 = vrot.slane %v269, %v1784
    %v1787 = vunpack.c.l.s4 842150450
    %v1788 = vunpack.c.0.s8 %v1787
    %v1789 = vlaneseq
    %v1790 = vshrl.u32 %v1789, 7
    %v1791 = vsub.s32 %v1788, %v1790
    %v1792 = vrot.slane %v269, %v1791
    %v1794 = vunpack.c.l.s4 1414812756
    %v1795 = vunpack.c.0.s8 %v1794
    %v1796 = vlaneseq
    %v1797 = vshrl.u32 %v1796, 7
    %v1798 = vsub.s32 %v1795, %v1797
    %v1799 = vrot.slane %v269, %v1798
    %v1801 = vunpack.c.l.s4 1987475062
    %v1802 = vunpack.c.0.s8 %v1801
    %v1803 = vlaneseq
    %v1804 = vshrl.u32 %v1803, 7
    %v1805 = vsub.s32 %v1802, %v1804
    %v1806 = vrot.slane %v269, %v1805
    %v1808 = vunpack.c.l.s4 269488144
    %v1809 = vunpack.c.0.s8 %v1808
    %v1810 = vlaneseq
    %v1811 = vshrl.u32 %v1810, 7
    %v1812 = vsub.s32 %v1809, %v1811
    %v1813 = vrot.slane %v272, %v1812
    %v1815 = vunpack.c.l.s4 842150450
    %v1816 = vunpack.c.0.s8 %v1815
    %v1817 = vlaneseq
    %v1818 = vshrl.u32 %v1817, 7
    %v1819 = vsub.s32 %v1816, %v1818
    %v1820 = vrot.slane %v272, %v1819
    %v1822 = vunpack.c.l.s4 1414812756
    %v1823 = vunpack.c.0.s8 %v1822
    %v1824 = vlaneseq
    %v1825 = vshrl.u32 %v1824, 7
    %v1826 = vsub.s32 %v1823, %v1825
    %v1827 = vrot.slane %v272, %v1826
    %v1829 = vunpack.c.l.s4 1987475062
    %v1830 = vunpack.c.0.s8 %v1829
    %v1831 = vlaneseq
    %v1832 = vshrl.u32 %v1831, 7
    %v1833 = vsub.s32 %v1830, %v1832
    %v1834 = vrot.slane %v272, %v1833
    %v1836 = vunpack.c.l.s4 269488144
    %v1837 = vunpack.c.0.s8 %v1836
    %v1838 = vlaneseq
    %v1839 = vshrl.u32 %v1838, 7
    %v1840 = vsub.s32 %v1837, %v1839
    %v1841 = vrot.slane %v275, %v1840
    %v1843 = vunpack.c.l.s4 842150450
    %v1844 = vunpack.c.0.s8 %v1843
    %v1845 = vlaneseq
    %v1846 = vshrl.u32 %v1845, 7
    %v1847 = vsub.s32 %v1844, %v1846
    %v1848 = vrot.slane %v275, %v1847
    %v1850 = vunpack.c.l.s4 1414812756
    %v1851 = vunpack.c.0.s8 %v1850
    %v1852 = vlaneseq
    %v1853 = vshrl.u32 %v1852, 7
    %v1854 = vsub.s32 %v1851, %v1853
    %v1855 = vrot.slane %v275, %v1854
    %v1857 = vunpack.c.l.s4 1987475062
    %v1858 = vunpack.c.0.s8 %v1857
    %v1859 = vlaneseq
    %v1860 = vshrl.u32 %v1859, 7
    %v1861 = vsub.s32 %v1858, %v1860
    %v1862 = vrot.slane %v275, %v1861
    %v1864 = vunpack.c.l.s4 269488144
    %v1865 = vunpack.c.0.s8 %v1864
    %v1866 = vlaneseq
    %v1867 = vshrl.u32 %v1866, 7
    %v1868 = vsub.s32 %v1865, %v1867
    %v1869 = vrot.slane %v278, %v1868
    %v1871 = vunpack.c.l.s4 842150450
    %v1872 = vunpack.c.0.s8 %v1871
    %v1873 = vlaneseq
    %v1874 = vshrl.u32 %v1873, 7
    %v1875 = vsub.s32 %v1872, %v1874
    %v1876 = vrot.slane %v278, %v1875
    %v1878 = vunpack.c.l.s4 1414812756
    %v1879 = vunpack.c.0.s8 %v1878
    %v1880 = vlaneseq
    %v1881 = vshrl.u32 %v1880, 7
    %v1882 = vsub.s32 %v1879, %v1881
    %v1883 = vrot.slane %v278, %v1882
    %v1885 = vunpack.c.l.s4 1987475062
    %v1886 = vunpack.c.0.s8 %v1885
    %v1887 = vlaneseq
    %v1888 = vshrl.u32 %v1887, 7
    %v1889 = vsub.s32 %v1886, %v1888
    %v1890 = vrot.slane %v278, %v1889
    %v1892 = vunpack.c.l.s4 269488144
    %v1893 = vunpack.c.0.s8 %v1892
    %v1894 = vlaneseq
    %v1895 = vshrl.u32 %v1894, 7
    %v1896 = vsub.s32 %v1893, %v1895
    %v1897 = vrot.slane %v281, %v1896
    %v1899 = vunpack.c.l.s4 842150450
    %v1900 = vunpack.c.0.s8 %v1899
    %v1901 = vlaneseq
    %v1902 = vshrl.u32 %v1901, 7
    %v1903 = vsub.s32 %v1900, %v1902
    %v1904 = vrot.slane %v281, %v1903
    %v1906 = vunpack.c.l.s4 1414812756
    %v1907 = vunpack.c.0.s8 %v1906
    %v1908 = vlaneseq
    %v1909 = vshrl.u32 %v1908, 7
    %v1910 = vsub.s32 %v1907, %v1909
    %v1911 = vrot.slane %v281, %v1910
    %v1913 = vunpack.c.l.s4 1987475062
    %v1914 = vunpack.c.0.s8 %v1913
    %v1915 = vlaneseq
    %v1916 = vshrl.u32 %v1915, 7
    %v1917 = vsub.s32 %v1914, %v1916
    %v1918 = vrot.slane %v281, %v1917
    %v1920 = vunpack.c.l.s4 269488144
    %v1921 = vunpack.c.0.s8 %v1920
    %v1922 = vlaneseq
    %v1923 = vshrl.u32 %v1922, 7
    %v1924 = vsub.s32 %v1921, %v1923
    %v1925 = vrot.slane %v284, %v1924
    %v1927 = vunpack.c.l.s4 842150450
    %v1928 = vunpack.c.0.s8 %v1927
    %v1929 = vlaneseq
    %v1930 = vshrl.u32 %v1929, 7
    %v1931 = vsub.s32 %v1928, %v1930
    %v1932 = vrot.slane %v284, %v1931
    %v1934 = vunpack.c.l.s4 1414812756
    %v1935 = vunpack.c.0.s8 %v1934
    %v1936 = vlaneseq
    %v1937 = vshrl.u32 %v1936, 7
    %v1938 = vsub.s32 %v1935, %v1937
    %v1939 = vrot.slane %v284, %v1938
    %v1941 = vunpack.c.l.s4 1987475062
    %v1942 = vunpack.c.0.s8 %v1941
    %v1943 = vlaneseq
    %v1944 = vshrl.u32 %v1943, 7
    %v1945 = vsub.s32 %v1942, %v1944
    %v1946 = vrot.slane %v284, %v1945
    %v1948 = vunpack.c.l.s4 269488144
    %v1949 = vunpack.c.0.s8 %v1948
    %v1950 = vlaneseq
    %v1951 = vshrl.u32 %v1950, 7
    %v1952 = vsub.s32 %v1949, %v1951
    %v1953 = vrot.slane %v287, %v1952
    %v1955 = vunpack.c.l.s4 842150450
    %v1956 = vunpack.c.0.s8 %v1955
    %v1957 = vlaneseq
    %v1958 = vshrl.u32 %v1957, 7
    %v1959 = vsub.s32 %v1956, %v1958
    %v1960 = vrot.slane %v287, %v1959
    %v1962 = vunpack.c.l.s4 1414812756
    %v1963 = vunpack.c.0.s8 %v1962
    %v1964 = vlaneseq
    %v1965 = vshrl.u32 %v1964, 7
    %v1966 = vsub.s32 %v1963, %v1965
    %v1967 = vrot.slane %v287, %v1966
    %v1969 = vunpack.c.l.s4 1987475062
    %v1970 = vunpack.c.0.s8 %v1969
    %v1971 = vlaneseq
    %v1972 = vshrl.u32 %v1971, 7
    %v1973 = vsub.s32 %v1970, %v1972
    %v1974 = vrot.slane %v287, %v1973
    %v1976 = vunpack.c.l.s4 269488144
    %v1977 = vunpack.c.0.s8 %v1976
    %v1978 = vlaneseq
    %v1979 = vshrl.u32 %v1978, 7
    %v1980 = vsub.s32 %v1977, %v1979
    %v1981 = vrot.slane %v290, %v1980
    %v1983 = vunpack.c.l.s4 842150450
    %v1984 = vunpack.c.0.s8 %v1983
    %v1985 = vlaneseq
    %v1986 = vshrl.u32 %v1985, 7
    %v1987 = vsub.s32 %v1984, %v1986
    %v1988 = vrot.slane %v290, %v1987
    %v1990 = vunpack.c.l.s4 1414812756
    %v1991 = vunpack.c.0.s8 %v1990
    %v1992 = vlaneseq
    %v1993 = vshrl.u32 %v1992, 7
    %v1994 = vsub.s32 %v1991, %v1993
    %v1995 = vrot.slane %v290, %v1994
    %v1997 = vunpack.c.l.s4 1987475062
    %v1998 = vunpack.c.0.s8 %v1997
    %v1999 = vlaneseq
    %v2000 = vshrl.u32 %v1999, 7
    %v2001 = vsub.s32 %v1998, %v2000
    %v2002 = vrot.slane %v290, %v2001
    %v2004 = vunpack.c.l.s4 269488144
    %v2005 = vunpack.c.0.s8 %v2004
    %v2006 = vlaneseq
    %v2007 = vshrl.u32 %v2006, 7
    %v2008 = vsub.s32 %v2005, %v2007
    %v2009 = vrot.slane %v293, %v2008
    %v2011 = vunpack.c.l.s4 842150450
    %v2012 = vunpack.c.0.s8 %v2011
    %v2013 = vlaneseq
    %v2014 = vshrl.u32 %v2013, 7
    %v2015 = vsub.s32 %v2012, %v2014
    %v2016 = vrot.slane %v293, %v2015
    %v2018 = vunpack.c.l.s4 1414812756
    %v2019 = vunpack.c.0.s8 %v2018
    %v2020 = vlaneseq
    %v2021 = vshrl.u32 %v2020, 7
    %v2022 = vsub.s32 %v2019, %v2021
    %v2023 = vrot.slane %v293, %v2022
    %v2025 = vunpack.c.l.s4 1987475062
    %v2026 = vunpack.c.0.s8 %v2025
    %v2027 = vlaneseq
    %v2028 = vshrl.u32 %v2027, 7
    %v2029 = vsub.s32 %v2026, %v2028
    %v2030 = vrot.slane %v293, %v2029
    %v2032 = vunpack.c.l.s4 269488144
    %v2033 = vunpack.c.0.s8 %v2032
    %v2034 = vlaneseq
    %v2035 = vshrl.u32 %v2034, 7
    %v2036 = vsub.s32 %v2033, %v2035
    %v2037 = vrot.slane %v296, %v2036
    %v2039 = vunpack.c.l.s4 842150450
    %v2040 = vunpack.c.0.s8 %v2039
    %v2041 = vlaneseq
    %v2042 = vshrl.u32 %v2041, 7
    %v2043 = vsub.s32 %v2040, %v2042
    %v2044 = vrot.slane %v296, %v2043
    %v2046 = vunpack.c.l.s4 1414812756
    %v2047 = vunpack.c.0.s8 %v2046
    %v2048 = vlaneseq
    %v2049 = vshrl.u32 %v2048, 7
    %v2050 = vsub.s32 %v2047, %v2049
    %v2051 = vrot.slane %v296, %v2050
    %v2053 = vunpack.c.l.s4 1987475062
    %v2054 = vunpack.c.0.s8 %v2053
    %v2055 = vlaneseq
    %v2056 = vshrl.u32 %v2055, 7
    %v2057 = vsub.s32 %v2054, %v2056
    %v2058 = vrot.slane %v296, %v2057
    %v2060 = vunpack.c.l.s4 269488144
    %v2061 = vunpack.c.0.s8 %v2060
    %v2062 = vlaneseq
    %v2063 = vshrl.u32 %v2062, 7
    %v2064 = vsub.s32 %v2061, %v2063
    %v2065 = vrot.slane %v299, %v2064
    %v2067 = vunpack.c.l.s4 842150450
    %v2068 = vunpack.c.0.s8 %v2067
    %v2069 = vlaneseq
    %v2070 = vshrl.u32 %v2069, 7
    %v2071 = vsub.s32 %v2068, %v2070
    %v2072 = vrot.slane %v299, %v2071
    %v2074 = vunpack.c.l.s4 1414812756
    %v2075 = vunpack.c.0.s8 %v2074
    %v2076 = vlaneseq
    %v2077 = vshrl.u32 %v2076, 7
    %v2078 = vsub.s32 %v2075, %v2077
    %v2079 = vrot.slane %v299, %v2078
    %v2081 = vunpack.c.l.s4 1987475062
    %v2082 = vunpack.c.0.s8 %v2081
    %v2083 = vlaneseq
    %v2084 = vshrl.u32 %v2083, 7
    %v2085 = vsub.s32 %v2082, %v2084
    %v2086 = vrot.slane %v299, %v2085
    %v2088 = vunpack.c.l.s4 269488144
    %v2089 = vunpack.c.0.s8 %v2088
    %v2090 = vlaneseq
    %v2091 = vshrl.u32 %v2090, 7
    %v2092 = vsub.s32 %v2089, %v2091
    %v2093 = vrot.slane %v302, %v2092
    %v2095 = vunpack.c.l.s4 842150450
    %v2096 = vunpack.c.0.s8 %v2095
    %v2097 = vlaneseq
    %v2098 = vshrl.u32 %v2097, 7
    %v2099 = vsub.s32 %v2096, %v2098
    %v2100 = vrot.slane %v302, %v2099
    %v2102 = vunpack.c.l.s4 1414812756
    %v2103 = vunpack.c.0.s8 %v2102
    %v2104 = vlaneseq
    %v2105 = vshrl.u32 %v2104, 7
    %v2106 = vsub.s32 %v2103, %v2105
    %v2107 = vrot.slane %v302, %v2106
    %v2109 = vunpack.c.l.s4 1987475062
    %v2110 = vunpack.c.0.s8 %v2109
    %v2111 = vlaneseq
    %v2112 = vshrl.u32 %v2111, 7
    %v2113 = vsub.s32 %v2110, %v2112
    %v2114 = vrot.slane %v302, %v2113
    %v2116 = vunpack.c.l.s4 269488144
    %v2117 = vunpack.c.0.s8 %v2116
    %v2118 = vlaneseq
    %v2119 = vshrl.u32 %v2118, 7
    %v2120 = vsub.s32 %v2117, %v2119
    %v2121 = vrot.slane %v305, %v2120
    %v2123 = vunpack.c.l.s4 842150450
    %v2124 = vunpack.c.0.s8 %v2123
    %v2125 = vlaneseq
    %v2126 = vshrl.u32 %v2125, 7
    %v2127 = vsub.s32 %v2124, %v2126
    %v2128 = vrot.slane %v305, %v2127
    %v2130 = vunpack.c.l.s4 1414812756
    %v2131 = vunpack.c.0.s8 %v2130
    %v2132 = vlaneseq
    %v2133 = vshrl.u32 %v2132, 7
    %v2134 = vsub.s32 %v2131, %v2133
    %v2135 = vrot.slane %v305, %v2134
    %v2137 = vunpack.c.l.s4 1987475062
    %v2138 = vunpack.c.0.s8 %v2137
    %v2139 = vlaneseq
    %v2140 = vshrl.u32 %v2139, 7
    %v2141 = vsub.s32 %v2138, %v2140
    %v2142 = vrot.slane %v305, %v2141
    %v2144 = vunpack.c.l.s4 269488144
    %v2145 = vunpack.c.0.s8 %v2144
    %v2146 = vlaneseq
    %v2147 = vshrl.u32 %v2146, 7
    %v2148 = vsub.s32 %v2145, %v2147
    %v2149 = vrot.slane %v308, %v2148
    %v2151 = vunpack.c.l.s4 842150450
    %v2152 = vunpack.c.0.s8 %v2151
    %v2153 = vlaneseq
    %v2154 = vshrl.u32 %v2153, 7
    %v2155 = vsub.s32 %v2152, %v2154
    %v2156 = vrot.slane %v308, %v2155
    %v2158 = vunpack.c.l.s4 1414812756
    %v2159 = vunpack.c.0.s8 %v2158
    %v2160 = vlaneseq
    %v2161 = vshrl.u32 %v2160, 7
    %v2162 = vsub.s32 %v2159, %v2161
    %v2163 = vrot.slane %v308, %v2162
    %v2165 = vunpack.c.l.s4 1987475062
    %v2166 = vunpack.c.0.s8 %v2165
    %v2167 = vlaneseq
    %v2168 = vshrl.u32 %v2167, 7
    %v2169 = vsub.s32 %v2166, %v2168
    %v2170 = vrot.slane %v308, %v2169
    %v2172 = vunpack.c.l.s4 269488144
    %v2173 = vunpack.c.0.s8 %v2172
    %v2174 = vlaneseq
    %v2175 = vshrl.u32 %v2174, 7
    %v2176 = vsub.s32 %v2173, %v2175
    %v2177 = vrot.slane %v311, %v2176
    %v2179 = vunpack.c.l.s4 842150450
    %v2180 = vunpack.c.0.s8 %v2179
    %v2181 = vlaneseq
    %v2182 = vshrl.u32 %v2181, 7
    %v2183 = vsub.s32 %v2180, %v2182
    %v2184 = vrot.slane %v311, %v2183
    %v2186 = vunpack.c.l.s4 1414812756
    %v2187 = vunpack.c.0.s8 %v2186
    %v2188 = vlaneseq
    %v2189 = vshrl.u32 %v2188, 7
    %v2190 = vsub.s32 %v2187, %v2189
    %v2191 = vrot.slane %v311, %v2190
    %v2193 = vunpack.c.l.s4 1987475062
    %v2194 = vunpack.c.0.s8 %v2193
    %v2195 = vlaneseq
    %v2196 = vshrl.u32 %v2195, 7
    %v2197 = vsub.s32 %v2194, %v2196
    %v2198 = vrot.slane %v311, %v2197
    %v2200 = vunpack.c.l.s4 269488144
    %v2201 = vunpack.c.0.s8 %v2200
    %v2202 = vlaneseq
    %v2203 = vshrl.u32 %v2202, 7
    %v2204 = vsub.s32 %v2201, %v2203
    %v2205 = vrot.slane %v314, %v2204
    %v2207 = vunpack.c.l.s4 842150450
    %v2208 = vunpack.c.0.s8 %v2207
    %v2209 = vlaneseq
    %v2210 = vshrl.u32 %v2209, 7
    %v2211 = vsub.s32 %v2208, %v2210
    %v2212 = vrot.slane %v314, %v2211
    %v2214 = vunpack.c.l.s4 1414812756
    %v2215 = vunpack.c.0.s8 %v2214
    %v2216 = vlaneseq
    %v2217 = vshrl.u32 %v2216, 7
    %v2218 = vsub.s32 %v2215, %v2217
    %v2219 = vrot.slane %v314, %v2218
    %v2221 = vunpack.c.l.s4 1987475062
    %v2222 = vunpack.c.0.s8 %v2221
    %v2223 = vlaneseq
    %v2224 = vshrl.u32 %v2223, 7
    %v2225 = vsub.s32 %v2222, %v2224
    %v2226 = vrot.slane %v314, %v2225
    %v2228 = vunpack.c.l.s4 269488144
    %v2229 = vunpack.c.0.s8 %v2228
    %v2230 = vlaneseq
    %v2231 = vshrl.u32 %v2230, 7
    %v2232 = vsub.s32 %v2229, %v2231
    %v2233 = vrot.slane %v317, %v2232
    %v2235 = vunpack.c.l.s4 842150450
    %v2236 = vunpack.c.0.s8 %v2235
    %v2237 = vlaneseq
    %v2238 = vshrl.u32 %v2237, 7
    %v2239 = vsub.s32 %v2236, %v2238
    %v2240 = vrot.slane %v317, %v2239
    %v2242 = vunpack.c.l.s4 1414812756
    %v2243 = vunpack.c.0.s8 %v2242
    %v2244 = vlaneseq
    %v2245 = vshrl.u32 %v2244, 7
    %v2246 = vsub.s32 %v2243, %v2245
    %v2247 = vrot.slane %v317, %v2246
    %v2249 = vunpack.c.l.s4 1987475062
    %v2250 = vunpack.c.0.s8 %v2249
    %v2251 = vlaneseq
    %v2252 = vshrl.u32 %v2251, 7
    %v2253 = vsub.s32 %v2250, %v2252
    %v2254 = vrot.slane %v317, %v2253
    %v2256 = vunpack.c.l.s4 269488144
    %v2257 = vunpack.c.0.s8 %v2256
    %v2258 = vlaneseq
    %v2259 = vshrl.u32 %v2258, 7
    %v2260 = vsub.s32 %v2257, %v2259
    %v2261 = vrot.slane %v320, %v2260
    %v2263 = vunpack.c.l.s4 842150450
    %v2264 = vunpack.c.0.s8 %v2263
    %v2265 = vlaneseq
    %v2266 = vshrl.u32 %v2265, 7
    %v2267 = vsub.s32 %v2264, %v2266
    %v2268 = vrot.slane %v320, %v2267
    %v2270 = vunpack.c.l.s4 1414812756
    %v2271 = vunpack.c.0.s8 %v2270
    %v2272 = vlaneseq
    %v2273 = vshrl.u32 %v2272, 7
    %v2274 = vsub.s32 %v2271, %v2273
    %v2275 = vrot.slane %v320, %v2274
    %v2277 = vunpack.c.l.s4 1987475062
    %v2278 = vunpack.c.0.s8 %v2277
    %v2279 = vlaneseq
    %v2280 = vshrl.u32 %v2279, 7
    %v2281 = vsub.s32 %v2278, %v2280
    %v2282 = vrot.slane %v320, %v2281
    %v2284 = vunpack.c.l.s4 269488144
    %v2285 = vunpack.c.0.s8 %v2284
    %v2286 = vlaneseq
    %v2287 = vshrl.u32 %v2286, 7
    %v2288 = vsub.s32 %v2285, %v2287
    %v2289 = vrot.slane %v323, %v2288
    %v2291 = vunpack.c.l.s4 842150450
    %v2292 = vunpack.c.0.s8 %v2291
    %v2293 = vlaneseq
    %v2294 = vshrl.u32 %v2293, 7
    %v2295 = vsub.s32 %v2292, %v2294
    %v2296 = vrot.slane %v323, %v2295
    %v2298 = vunpack.c.l.s4 1414812756
    %v2299 = vunpack.c.0.s8 %v2298
    %v2300 = vlaneseq
    %v2301 = vshrl.u32 %v2300, 7
    %v2302 = vsub.s32 %v2299, %v2301
    %v2303 = vrot.slane %v323, %v2302
    %v2305 = vunpack.c.l.s4 1987475062
    %v2306 = vunpack.c.0.s8 %v2305
    %v2307 = vlaneseq
    %v2308 = vshrl.u32 %v2307, 7
    %v2309 = vsub.s32 %v2306, %v2308
    %v2310 = vrot.slane %v323, %v2309
    %v2312 = vunpack.c.l.s4 269488144
    %v2313 = vunpack.c.0.s8 %v2312
    %v2314 = vlaneseq
    %v2315 = vshrl.u32 %v2314, 7
    %v2316 = vsub.s32 %v2313, %v2315
    %v2317 = vrot.slane %v326, %v2316
    %v2319 = vunpack.c.l.s4 842150450
    %v2320 = vunpack.c.0.s8 %v2319
    %v2321 = vlaneseq
    %v2322 = vshrl.u32 %v2321, 7
    %v2323 = vsub.s32 %v2320, %v2322
    %v2324 = vrot.slane %v326, %v2323
    %v2326 = vunpack.c.l.s4 1414812756
    %v2327 = vunpack.c.0.s8 %v2326
    %v2328 = vlaneseq
    %v2329 = vshrl.u32 %v2328, 7
    %v2330 = vsub.s32 %v2327, %v2329
    %v2331 = vrot.slane %v326, %v2330
    %v2333 = vunpack.c.l.s4 1987475062
    %v2334 = vunpack.c.0.s8 %v2333
    %v2335 = vlaneseq
    %v2336 = vshrl.u32 %v2335, 7
    %v2337 = vsub.s32 %v2334, %v2336
    %v2338 = vrot.slane %v326, %v2337
    %v2340 = vunpack.c.l.s4 269488144
    %v2341 = vunpack.c.0.s8 %v2340
    %v2342 = vlaneseq
    %v2343 = vshrl.u32 %v2342, 7
    %v2344 = vsub.s32 %v2341, %v2343
    %v2345 = vrot.slane %v329, %v2344
    %v2347 = vunpack.c.l.s4 842150450
    %v2348 = vunpack.c.0.s8 %v2347
    %v2349 = vlaneseq
    %v2350 = vshrl.u32 %v2349, 7
    %v2351 = vsub.s32 %v2348, %v2350
    %v2352 = vrot.slane %v329, %v2351
    %v2354 = vunpack.c.l.s4 1414812756
    %v2355 = vunpack.c.0.s8 %v2354
    %v2356 = vlaneseq
    %v2357 = vshrl.u32 %v2356, 7
    %v2358 = vsub.s32 %v2355, %v2357
    %v2359 = vrot.slane %v329, %v2358
    %v2361 = vunpack.c.l.s4 1987475062
    %v2362 = vunpack.c.0.s8 %v2361
    %v2363 = vlaneseq
    %v2364 = vshrl.u32 %v2363, 7
    %v2365 = vsub.s32 %v2362, %v2364
    %v2366 = vrot.slane %v329, %v2365
    %v2368 = vunpack.c.l.s4 269488144
    %v2369 = vunpack.c.0.s8 %v2368
    %v2370 = vlaneseq
    %v2371 = vshrl.u32 %v2370, 7
    %v2372 = vsub.s32 %v2369, %v2371
    %v2373 = vrot.slane %v332, %v2372
    %v2375 = vunpack.c.l.s4 842150450
    %v2376 = vunpack.c.0.s8 %v2375
    %v2377 = vlaneseq
    %v2378 = vshrl.u32 %v2377, 7
    %v2379 = vsub.s32 %v2376, %v2378
    %v2380 = vrot.slane %v332, %v2379
    %v2382 = vunpack.c.l.s4 1414812756
    %v2383 = vunpack.c.0.s8 %v2382
    %v2384 = vlaneseq
    %v2385 = vshrl.u32 %v2384, 7
    %v2386 = vsub.s32 %v2383, %v2385
    %v2387 = vrot.slane %v332, %v2386
    %v2389 = vunpack.c.l.s4 1987475062
    %v2390 = vunpack.c.0.s8 %v2389
    %v2391 = vlaneseq
    %v2392 = vshrl.u32 %v2391, 7
    %v2393 = vsub.s32 %v2390, %v2392
    %v2394 = vrot.slane %v332, %v2393
    %v2396 = vunpack.c.l.s4 269488144
    %v2397 = vunpack.c.0.s8 %v2396
    %v2398 = vlaneseq
    %v2399 = vshrl.u32 %v2398, 7
    %v2400 = vsub.s32 %v2397, %v2399
    %v2401 = vrot.slane %v335, %v2400
    %v2403 = vunpack.c.l.s4 842150450
    %v2404 = vunpack.c.0.s8 %v2403
    %v2405 = vlaneseq
    %v2406 = vshrl.u32 %v2405, 7
    %v2407 = vsub.s32 %v2404, %v2406
    %v2408 = vrot.slane %v335, %v2407
    %v2410 = vunpack.c.l.s4 1414812756
    %v2411 = vunpack.c.0.s8 %v2410
    %v2412 = vlaneseq
    %v2413 = vshrl.u32 %v2412, 7
    %v2414 = vsub.s32 %v2411, %v2413
    %v2415 = vrot.slane %v335, %v2414
    %v2417 = vunpack.c.l.s4 1987475062
    %v2418 = vunpack.c.0.s8 %v2417
    %v2419 = vlaneseq
    %v2420 = vshrl.u32 %v2419, 7
    %v2421 = vsub.s32 %v2418, %v2420
    %v2422 = vrot.slane %v335, %v2421
    %v2424 = vunpack.c.l.s4 269488144
    %v2425 = vunpack.c.0.s8 %v2424
    %v2426 = vlaneseq
    %v2427 = vshrl.u32 %v2426, 7
    %v2428 = vsub.s32 %v2425, %v2427
    %v2429 = vrot.slane %v338, %v2428
    %v2431 = vunpack.c.l.s4 842150450
    %v2432 = vunpack.c.0.s8 %v2431
    %v2433 = vlaneseq
    %v2434 = vshrl.u32 %v2433, 7
    %v2435 = vsub.s32 %v2432, %v2434
    %v2436 = vrot.slane %v338, %v2435
    %v2438 = vunpack.c.l.s4 1414812756
    %v2439 = vunpack.c.0.s8 %v2438
    %v2440 = vlaneseq
    %v2441 = vshrl.u32 %v2440, 7
    %v2442 = vsub.s32 %v2439, %v2441
    %v2443 = vrot.slane %v338, %v2442
    %v2445 = vunpack.c.l.s4 1987475062
    %v2446 = vunpack.c.0.s8 %v2445
    %v2447 = vlaneseq
    %v2448 = vshrl.u32 %v2447, 7
    %v2449 = vsub.s32 %v2446, %v2448
    %v2450 = vrot.slane %v338, %v2449
    %v2452 = vunpack.c.l.s4 269488144
    %v2453 = vunpack.c.0.s8 %v2452
    %v2454 = vlaneseq
    %v2455 = vshrl.u32 %v2454, 7
    %v2456 = vsub.s32 %v2453, %v2455
    %v2457 = vrot.slane %v341, %v2456
    %v2459 = vunpack.c.l.s4 842150450
    %v2460 = vunpack.c.0.s8 %v2459
    %v2461 = vlaneseq
    %v2462 = vshrl.u32 %v2461, 7
    %v2463 = vsub.s32 %v2460, %v2462
    %v2464 = vrot.slane %v341, %v2463
    %v2466 = vunpack.c.l.s4 1414812756
    %v2467 = vunpack.c.0.s8 %v2466
    %v2468 = vlaneseq
    %v2469 = vshrl.u32 %v2468, 7
    %v2470 = vsub.s32 %v2467, %v2469
    %v2471 = vrot.slane %v341, %v2470
    %v2473 = vunpack.c.l.s4 1987475062
    %v2474 = vunpack.c.0.s8 %v2473
    %v2475 = vlaneseq
    %v2476 = vshrl.u32 %v2475, 7
    %v2477 = vsub.s32 %v2474, %v2476
    %v2478 = vrot.slane %v341, %v2477
    %v2480 = vunpack.c.l.s4 269488144
    %v2481 = vunpack.c.0.s8 %v2480
    %v2482 = vlaneseq
    %v2483 = vshrl.u32 %v2482, 7
    %v2484 = vsub.s32 %v2481, %v2483
    %v2485 = vrot.slane %v344, %v2484
    %v2487 = vunpack.c.l.s4 842150450
    %v2488 = vunpack.c.0.s8 %v2487
    %v2489 = vlaneseq
    %v2490 = vshrl.u32 %v2489, 7
    %v2491 = vsub.s32 %v2488, %v2490
    %v2492 = vrot.slane %v344, %v2491
    %v2494 = vunpack.c.l.s4 1414812756
    %v2495 = vunpack.c.0.s8 %v2494
    %v2496 = vlaneseq
    %v2497 = vshrl.u32 %v2496, 7
    %v2498 = vsub.s32 %v2495, %v2497
    %v2499 = vrot.slane %v344, %v2498
    %v2501 = vunpack.c.l.s4 1987475062
    %v2502 = vunpack.c.0.s8 %v2501
    %v2503 = vlaneseq
    %v2504 = vshrl.u32 %v2503, 7
    %v2505 = vsub.s32 %v2502, %v2504
    %v2506 = vrot.slane %v344, %v2505
    %v2508 = vunpack.c.l.s4 269488144
    %v2509 = vunpack.c.0.s8 %v2508
    %v2510 = vlaneseq
    %v2511 = vshrl.u32 %v2510, 7
    %v2512 = vsub.s32 %v2509, %v2511
    %v2513 = vrot.slane %v347, %v2512
    %v2515 = vunpack.c.l.s4 842150450
    %v2516 = vunpack.c.0.s8 %v2515
    %v2517 = vlaneseq
    %v2518 = vshrl.u32 %v2517, 7
    %v2519 = vsub.s32 %v2516, %v2518
    %v2520 = vrot.slane %v347, %v2519
    %v2522 = vunpack.c.l.s4 1414812756
    %v2523 = vunpack.c.0.s8 %v2522
    %v2524 = vlaneseq
    %v2525 = vshrl.u32 %v2524, 7
    %v2526 = vsub.s32 %v2523, %v2525
    %v2527 = vrot.slane %v347, %v2526
    %v2529 = vunpack.c.l.s4 1987475062
    %v2530 = vunpack.c.0.s8 %v2529
    %v2531 = vlaneseq
    %v2532 = vshrl.u32 %v2531, 7
    %v2533 = vsub.s32 %v2530, %v2532
    %v2534 = vrot.slane %v347, %v2533
    %v2536 = vunpack.c.l.s4 269488144
    %v2537 = vunpack.c.0.s8 %v2536
    %v2538 = vlaneseq
    %v2539 = vshrl.u32 %v2538, 7
    %v2540 = vsub.s32 %v2537, %v2539
    %v2541 = vrot.slane %v350, %v2540
    %v2543 = vunpack.c.l.s4 842150450
    %v2544 = vunpack.c.0.s8 %v2543
    %v2545 = vlaneseq
    %v2546 = vshrl.u32 %v2545, 7
    %v2547 = vsub.s32 %v2544, %v2546
    %v2548 = vrot.slane %v350, %v2547
    %v2550 = vunpack.c.l.s4 1414812756
    %v2551 = vunpack.c.0.s8 %v2550
    %v2552 = vlaneseq
    %v2553 = vshrl.u32 %v2552, 7
    %v2554 = vsub.s32 %v2551, %v2553
    %v2555 = vrot.slane %v350, %v2554
    %v2557 = vunpack.c.l.s4 1987475062
    %v2558 = vunpack.c.0.s8 %v2557
    %v2559 = vlaneseq
    %v2560 = vshrl.u32 %v2559, 7
    %v2561 = vsub.s32 %v2558, %v2560
    %v2562 = vrot.slane %v350, %v2561
    %v2564 = vunpack.c.l.s4 269488144
    %v2565 = vunpack.c.0.s8 %v2564
    %v2566 = vlaneseq
    %v2567 = vshrl.u32 %v2566, 7
    %v2568 = vsub.s32 %v2565, %v2567
    %v2569 = vrot.slane %v353, %v2568
    %v2571 = vunpack.c.l.s4 842150450
    %v2572 = vunpack.c.0.s8 %v2571
    %v2573 = vlaneseq
    %v2574 = vshrl.u32 %v2573, 7
    %v2575 = vsub.s32 %v2572, %v2574
    %v2576 = vrot.slane %v353, %v2575
    %v2578 = vunpack.c.l.s4 1414812756
    %v2579 = vunpack.c.0.s8 %v2578
    %v2580 = vlaneseq
    %v2581 = vshrl.u32 %v2580, 7
    %v2582 = vsub.s32 %v2579, %v2581
    %v2583 = vrot.slane %v353, %v2582
    %v2585 = vunpack.c.l.s4 1987475062
    %v2586 = vunpack.c.0.s8 %v2585
    %v2587 = vlaneseq
    %v2588 = vshrl.u32 %v2587, 7
    %v2589 = vsub.s32 %v2586, %v2588
    %v2590 = vrot.slane %v353, %v2589
    %v2592 = vunpack.c.l.s4 269488144
    %v2593 = vunpack.c.0.s8 %v2592
    %v2594 = vlaneseq
    %v2595 = vshrl.u32 %v2594, 7
    %v2596 = vsub.s32 %v2593, %v2595
    %v2597 = vrot.slane %v356, %v2596
    %v2599 = vunpack.c.l.s4 842150450
    %v2600 = vunpack.c.0.s8 %v2599
    %v2601 = vlaneseq
    %v2602 = vshrl.u32 %v2601, 7
    %v2603 = vsub.s32 %v2600, %v2602
    %v2604 = vrot.slane %v356, %v2603
    %v2606 = vunpack.c.l.s4 1414812756
    %v2607 = vunpack.c.0.s8 %v2606
    %v2608 = vlaneseq
    %v2609 = vshrl.u32 %v2608, 7
    %v2610 = vsub.s32 %v2607, %v2609
    %v2611 = vrot.slane %v356, %v2610
    %v2613 = vunpack.c.l.s4 1987475062
    %v2614 = vunpack.c.0.s8 %v2613
    %v2615 = vlaneseq
    %v2616 = vshrl.u32 %v2615, 7
    %v2617 = vsub.s32 %v2614, %v2616
    %v2618 = vrot.slane %v356, %v2617
    %v2620 = vunpack.c.l.s4 269488144
    %v2621 = vunpack.c.0.s8 %v2620
    %v2622 = vlaneseq
    %v2623 = vshrl.u32 %v2622, 7
    %v2624 = vsub.s32 %v2621, %v2623
    %v2625 = vrot.slane %v359, %v2624
    %v2627 = vunpack.c.l.s4 842150450
    %v2628 = vunpack.c.0.s8 %v2627
    %v2629 = vlaneseq
    %v2630 = vshrl.u32 %v2629, 7
    %v2631 = vsub.s32 %v2628, %v2630
    %v2632 = vrot.slane %v359, %v2631
    %v2634 = vunpack.c.l.s4 1414812756
    %v2635 = vunpack.c.0.s8 %v2634
    %v2636 = vlaneseq
    %v2637 = vshrl.u32 %v2636, 7
    %v2638 = vsub.s32 %v2635, %v2637
    %v2639 = vrot.slane %v359, %v2638
    %v2641 = vunpack.c.l.s4 1987475062
    %v2642 = vunpack.c.0.s8 %v2641
    %v2643 = vlaneseq
    %v2644 = vshrl.u32 %v2643, 7
    %v2645 = vsub.s32 %v2642, %v2644
    %v2646 = vrot.slane %v359, %v2645
    %v2648 = vunpack.c.l.s4 269488144
    %v2649 = vunpack.c.0.s8 %v2648
    %v2650 = vlaneseq
    %v2651 = vshrl.u32 %v2650, 7
    %v2652 = vsub.s32 %v2649, %v2651
    %v2653 = vrot.slane %v362, %v2652
    %v2655 = vunpack.c.l.s4 842150450
    %v2656 = vunpack.c.0.s8 %v2655
    %v2657 = vlaneseq
    %v2658 = vshrl.u32 %v2657, 7
    %v2659 = vsub.s32 %v2656, %v2658
    %v2660 = vrot.slane %v362, %v2659
    %v2662 = vunpack.c.l.s4 1414812756
    %v2663 = vunpack.c.0.s8 %v2662
    %v2664 = vlaneseq
    %v2665 = vshrl.u32 %v2664, 7
    %v2666 = vsub.s32 %v2663, %v2665
    %v2667 = vrot.slane %v362, %v2666
    %v2669 = vunpack.c.l.s4 1987475062
    %v2670 = vunpack.c.0.s8 %v2669
    %v2671 = vlaneseq
    %v2672 = vshrl.u32 %v2671, 7
    %v2673 = vsub.s32 %v2670, %v2672
    %v2674 = vrot.slane %v362, %v2673
    %v2676 = vunpack.c.l.s4 269488144
    %v2677 = vunpack.c.0.s8 %v2676
    %v2678 = vlaneseq
    %v2679 = vshrl.u32 %v2678, 7
    %v2680 = vsub.s32 %v2677, %v2679
    %v2681 = vrot.slane %v365, %v2680
    %v2683 = vunpack.c.l.s4 842150450
    %v2684 = vunpack.c.0.s8 %v2683
    %v2685 = vlaneseq
    %v2686 = vshrl.u32 %v2685, 7
    %v2687 = vsub.s32 %v2684, %v2686
    %v2688 = vrot.slane %v365, %v2687
    %v2690 = vunpack.c.l.s4 1414812756
    %v2691 = vunpack.c.0.s8 %v2690
    %v2692 = vlaneseq
    %v2693 = vshrl.u32 %v2692, 7
    %v2694 = vsub.s32 %v2691, %v2693
    %v2695 = vrot.slane %v365, %v2694
    %v2697 = vunpack.c.l.s4 1987475062
    %v2698 = vunpack.c.0.s8 %v2697
    %v2699 = vlaneseq
    %v2700 = vshrl.u32 %v2699, 7
    %v2701 = vsub.s32 %v2698, %v2700
    %v2702 = vrot.slane %v365, %v2701
    %v2704 = vunpack.c.l.s4 269488144
    %v2705 = vunpack.c.0.s8 %v2704
    %v2706 = vlaneseq
    %v2707 = vshrl.u32 %v2706, 7
    %v2708 = vsub.s32 %v2705, %v2707
    %v2709 = vrot.slane %v368, %v2708
    %v2711 = vunpack.c.l.s4 842150450
    %v2712 = vunpack.c.0.s8 %v2711
    %v2713 = vlaneseq
    %v2714 = vshrl.u32 %v2713, 7
    %v2715 = vsub.s32 %v2712, %v2714
    %v2716 = vrot.slane %v368, %v2715
    %v2718 = vunpack.c.l.s4 1414812756
    %v2719 = vunpack.c.0.s8 %v2718
    %v2720 = vlaneseq
    %v2721 = vshrl.u32 %v2720, 7
    %v2722 = vsub.s32 %v2719, %v2721
    %v2723 = vrot.slane %v368, %v2722
    %v2725 = vunpack.c.l.s4 1987475062
    %v2726 = vunpack.c.0.s8 %v2725
    %v2727 = vlaneseq
    %v2728 = vshrl.u32 %v2727, 7
    %v2729 = vsub.s32 %v2726, %v2728
    %v2730 = vrot.slane %v368, %v2729
    %v2732 = vunpack.c.l.s4 269488144
    %v2733 = vunpack.c.0.s8 %v2732
    %v2734 = vlaneseq
    %v2735 = vshrl.u32 %v2734, 7
    %v2736 = vsub.s32 %v2733, %v2735
    %v2737 = vrot.slane %v371, %v2736
    %v2739 = vunpack.c.l.s4 842150450
    %v2740 = vunpack.c.0.s8 %v2739
    %v2741 = vlaneseq
    %v2742 = vshrl.u32 %v2741, 7
    %v2743 = vsub.s32 %v2740, %v2742
    %v2744 = vrot.slane %v371, %v2743
    %v2746 = vunpack.c.l.s4 1414812756
    %v2747 = vunpack.c.0.s8 %v2746
    %v2748 = vlaneseq
    %v2749 = vshrl.u32 %v2748, 7
    %v2750 = vsub.s32 %v2747, %v2749
    %v2751 = vrot.slane %v371, %v2750
    %v2753 = vunpack.c.l.s4 1987475062
    %v2754 = vunpack.c.0.s8 %v2753
    %v2755 = vlaneseq
    %v2756 = vshrl.u32 %v2755, 7
    %v2757 = vsub.s32 %v2754, %v2756
    %v2758 = vrot.slane %v371, %v2757
    %v2760 = vunpack.c.l.s4 269488144
    %v2761 = vunpack.c.0.s8 %v2760
    %v2762 = vlaneseq
    %v2763 = vshrl.u32 %v2762, 7
    %v2764 = vsub.s32 %v2761, %v2763
    %v2765 = vrot.slane %v374, %v2764
    %v2767 = vunpack.c.l.s4 842150450
    %v2768 = vunpack.c.0.s8 %v2767
    %v2769 = vlaneseq
    %v2770 = vshrl.u32 %v2769, 7
    %v2771 = vsub.s32 %v2768, %v2770
    %v2772 = vrot.slane %v374, %v2771
    %v2774 = vunpack.c.l.s4 1414812756
    %v2775 = vunpack.c.0.s8 %v2774
    %v2776 = vlaneseq
    %v2777 = vshrl.u32 %v2776, 7
    %v2778 = vsub.s32 %v2775, %v2777
    %v2779 = vrot.slane %v374, %v2778
    %v2781 = vunpack.c.l.s4 1987475062
    %v2782 = vunpack.c.0.s8 %v2781
    %v2783 = vlaneseq
    %v2784 = vshrl.u32 %v2783, 7
    %v2785 = vsub.s32 %v2782, %v2784
    %v2786 = vrot.slane %v374, %v2785
    %v2788 = vunpack.c.l.s4 269488144
    %v2789 = vunpack.c.0.s8 %v2788
    %v2790 = vlaneseq
    %v2791 = vshrl.u32 %v2790, 7
    %v2792 = vsub.s32 %v2789, %v2791
    %v2793 = vrot.slane %v377, %v2792
    %v2795 = vunpack.c.l.s4 842150450
    %v2796 = vunpack.c.0.s8 %v2795
    %v2797 = vlaneseq
    %v2798 = vshrl.u32 %v2797, 7
    %v2799 = vsub.s32 %v2796, %v2798
    %v2800 = vrot.slane %v377, %v2799
    %v2802 = vunpack.c.l.s4 1414812756
    %v2803 = vunpack.c.0.s8 %v2802
    %v2804 = vlaneseq
    %v2805 = vshrl.u32 %v2804, 7
    %v2806 = vsub.s32 %v2803, %v2805
    %v2807 = vrot.slane %v377, %v2806
    %v2809 = vunpack.c.l.s4 1987475062
    %v2810 = vunpack.c.0.s8 %v2809
    %v2811 = vlaneseq
    %v2812 = vshrl.u32 %v2811, 7
    %v2813 = vsub.s32 %v2810, %v2812
    %v2814 = vrot.slane %v377, %v2813
    %v2816 = vunpack.c.l.s4 269488144
    %v2817 = vunpack.c.0.s8 %v2816
    %v2818 = vlaneseq
    %v2819 = vshrl.u32 %v2818, 7
    %v2820 = vsub.s32 %v2817, %v2819
    %v2821 = vrot.slane %v380, %v2820
    %v2823 = vunpack.c.l.s4 842150450
    %v2824 = vunpack.c.0.s8 %v2823
    %v2825 = vlaneseq
    %v2826 = vshrl.u32 %v2825, 7
    %v2827 = vsub.s32 %v2824, %v2826
    %v2828 = vrot.slane %v380, %v2827
    %v2830 = vunpack.c.l.s4 1414812756
    %v2831 = vunpack.c.0.s8 %v2830
    %v2832 = vlaneseq
    %v2833 = vshrl.u32 %v2832, 7
    %v2834 = vsub.s32 %v2831, %v2833
    %v2835 = vrot.slane %v380, %v2834
    %v2837 = vunpack.c.l.s4 1987475062
    %v2838 = vunpack.c.0.s8 %v2837
    %v2839 = vlaneseq
    %v2840 = vshrl.u32 %v2839, 7
    %v2841 = vsub.s32 %v2838, %v2840
    %v2842 = vrot.slane %v380, %v2841
    %v2844 = vunpack.c.l.s4 269488144
    %v2845 = vunpack.c.0.s8 %v2844
    %v2846 = vlaneseq
    %v2847 = vshrl.u32 %v2846, 7
    %v2848 = vsub.s32 %v2845, %v2847
    %v2849 = vrot.slane %v383, %v2848
    %v2851 = vunpack.c.l.s4 842150450
    %v2852 = vunpack.c.0.s8 %v2851
    %v2853 = vlaneseq
    %v2854 = vshrl.u32 %v2853, 7
    %v2855 = vsub.s32 %v2852, %v2854
    %v2856 = vrot.slane %v383, %v2855
    %v2858 = vunpack.c.l.s4 1414812756
    %v2859 = vunpack.c.0.s8 %v2858
    %v2860 = vlaneseq
    %v2861 = vshrl.u32 %v2860, 7
    %v2862 = vsub.s32 %v2859, %v2861
    %v2863 = vrot.slane %v383, %v2862
    %v2865 = vunpack.c.l.s4 1987475062
    %v2866 = vunpack.c.0.s8 %v2865
    %v2867 = vlaneseq
    %v2868 = vshrl.u32 %v2867, 7
    %v2869 = vsub.s32 %v2866, %v2868
    %v2870 = vrot.slane %v383, %v2869
    %v2872 = vunpack.c.l.s4 269488144
    %v2873 = vunpack.c.0.s8 %v2872
    %v2874 = vlaneseq
    %v2875 = vshrl.u32 %v2874, 7
    %v2876 = vsub.s32 %v2873, %v2875
    %v2877 = vrot.slane %v386, %v2876
    %v2879 = vunpack.c.l.s4 842150450
    %v2880 = vunpack.c.0.s8 %v2879
    %v2881 = vlaneseq
    %v2882 = vshrl.u32 %v2881, 7
    %v2883 = vsub.s32 %v2880, %v2882
    %v2884 = vrot.slane %v386, %v2883
    %v2886 = vunpack.c.l.s4 1414812756
    %v2887 = vunpack.c.0.s8 %v2886
    %v2888 = vlaneseq
    %v2889 = vshrl.u32 %v2888, 7
    %v2890 = vsub.s32 %v2887, %v2889
    %v2891 = vrot.slane %v386, %v2890
    %v2893 = vunpack.c.l.s4 1987475062
    %v2894 = vunpack.c.0.s8 %v2893
    %v2895 = vlaneseq
    %v2896 = vshrl.u32 %v2895, 7
    %v2897 = vsub.s32 %v2894, %v2896
    %v2898 = vrot.slane %v386, %v2897
    %v2900 = vunpack.c.l.s4 269488144
    %v2901 = vunpack.c.0.s8 %v2900
    %v2902 = vlaneseq
    %v2903 = vshrl.u32 %v2902, 7
    %v2904 = vsub.s32 %v2901, %v2903
    %v2905 = vrot.slane %v389, %v2904
    %v2907 = vunpack.c.l.s4 842150450
    %v2908 = vunpack.c.0.s8 %v2907
    %v2909 = vlaneseq
    %v2910 = vshrl.u32 %v2909, 7
    %v2911 = vsub.s32 %v2908, %v2910
    %v2912 = vrot.slane %v389, %v2911
    %v2914 = vunpack.c.l.s4 1414812756
    %v2915 = vunpack.c.0.s8 %v2914
    %v2916 = vlaneseq
    %v2917 = vshrl.u32 %v2916, 7
    %v2918 = vsub.s32 %v2915, %v2917
    %v2919 = vrot.slane %v389, %v2918
    %v2921 = vunpack.c.l.s4 1987475062
    %v2922 = vunpack.c.0.s8 %v2921
    %v2923 = vlaneseq
    %v2924 = vshrl.u32 %v2923, 7
    %v2925 = vsub.s32 %v2922, %v2924
    %v2926 = vrot.slane %v389, %v2925
    %v2928 = vunpack.c.l.s4 269488144
    %v2929 = vunpack.c.0.s8 %v2928
    %v2930 = vlaneseq
    %v2931 = vshrl.u32 %v2930, 7
    %v2932 = vsub.s32 %v2929, %v2931
    %v2933 = vrot.slane %v392, %v2932
    %v2935 = vunpack.c.l.s4 842150450
    %v2936 = vunpack.c.0.s8 %v2935
    %v2937 = vlaneseq
    %v2938 = vshrl.u32 %v2937, 7
    %v2939 = vsub.s32 %v2936, %v2938
    %v2940 = vrot.slane %v392, %v2939
    %v2942 = vunpack.c.l.s4 1414812756
    %v2943 = vunpack.c.0.s8 %v2942
    %v2944 = vlaneseq
    %v2945 = vshrl.u32 %v2944, 7
    %v2946 = vsub.s32 %v2943, %v2945
    %v2947 = vrot.slane %v392, %v2946
    %v2949 = vunpack.c.l.s4 1987475062
    %v2950 = vunpack.c.0.s8 %v2949
    %v2951 = vlaneseq
    %v2952 = vshrl.u32 %v2951, 7
    %v2953 = vsub.s32 %v2950, %v2952
    %v2954 = vrot.slane %v392, %v2953
    %v2956 = vunpack.c.l.s4 269488144
    %v2957 = vunpack.c.0.s8 %v2956
    %v2958 = vlaneseq
    %v2959 = vshrl.u32 %v2958, 7
    %v2960 = vsub.s32 %v2957, %v2959
    %v2961 = vrot.slane %v395, %v2960
    %v2963 = vunpack.c.l.s4 842150450
    %v2964 = vunpack.c.0.s8 %v2963
    %v2965 = vlaneseq
    %v2966 = vshrl.u32 %v2965, 7
    %v2967 = vsub.s32 %v2964, %v2966
    %v2968 = vrot.slane %v395, %v2967
    %v2970 = vunpack.c.l.s4 1414812756
    %v2971 = vunpack.c.0.s8 %v2970
    %v2972 = vlaneseq
    %v2973 = vshrl.u32 %v2972, 7
    %v2974 = vsub.s32 %v2971, %v2973
    %v2975 = vrot.slane %v395, %v2974
    %v2977 = vunpack.c.l.s4 1987475062
    %v2978 = vunpack.c.0.s8 %v2977
    %v2979 = vlaneseq
    %v2980 = vshrl.u32 %v2979, 7
    %v2981 = vsub.s32 %v2978, %v2980
    %v2982 = vrot.slane %v395, %v2981
    %v2984 = vunpack.c.l.s4 269488144
    %v2985 = vunpack.c.0.s8 %v2984
    %v2986 = vlaneseq
    %v2987 = vshrl.u32 %v2986, 7
    %v2988 = vsub.s32 %v2985, %v2987
    %v2989 = vrot.slane %v398, %v2988
    %v2991 = vunpack.c.l.s4 842150450
    %v2992 = vunpack.c.0.s8 %v2991
    %v2993 = vlaneseq
    %v2994 = vshrl.u32 %v2993, 7
    %v2995 = vsub.s32 %v2992, %v2994
    %v2996 = vrot.slane %v398, %v2995
    %v2998 = vunpack.c.l.s4 1414812756
    %v2999 = vunpack.c.0.s8 %v2998
    %v3000 = vlaneseq
    %v3001 = vshrl.u32 %v3000, 7
    %v3002 = vsub.s32 %v2999, %v3001
    %v3003 = vrot.slane %v398, %v3002
    %v3005 = vunpack.c.l.s4 1987475062
    %v3006 = vunpack.c.0.s8 %v3005
    %v3007 = vlaneseq
    %v3008 = vshrl.u32 %v3007, 7
    %v3009 = vsub.s32 %v3006, %v3008
    %v3010 = vrot.slane %v398, %v3009
    %v3012 = vunpack.c.l.s4 269488144
    %v3013 = vunpack.c.0.s8 %v3012
    %v3014 = vlaneseq
    %v3015 = vshrl.u32 %v3014, 7
    %v3016 = vsub.s32 %v3013, %v3015
    %v3017 = vrot.slane %v401, %v3016
    %v3019 = vunpack.c.l.s4 842150450
    %v3020 = vunpack.c.0.s8 %v3019
    %v3021 = vlaneseq
    %v3022 = vshrl.u32 %v3021, 7
    %v3023 = vsub.s32 %v3020, %v3022
    %v3024 = vrot.slane %v401, %v3023
    %v3026 = vunpack.c.l.s4 1414812756
    %v3027 = vunpack.c.0.s8 %v3026
    %v3028 = vlaneseq
    %v3029 = vshrl.u32 %v3028, 7
    %v3030 = vsub.s32 %v3027, %v3029
    %v3031 = vrot.slane %v401, %v3030
    %v3033 = vunpack.c.l.s4 1987475062
    %v3034 = vunpack.c.0.s8 %v3033
    %v3035 = vlaneseq
    %v3036 = vshrl.u32 %v3035, 7
    %v3037 = vsub.s32 %v3034, %v3036
    %v3038 = vrot.slane %v401, %v3037
    %v3040 = vunpack.c.l.s4 269488144
    %v3041 = vunpack.c.0.s8 %v3040
    %v3042 = vlaneseq
    %v3043 = vshrl.u32 %v3042, 7
    %v3044 = vsub.s32 %v3041, %v3043
    %v3045 = vrot.slane %v404, %v3044
    %v3047 = vunpack.c.l.s4 842150450
    %v3048 = vunpack.c.0.s8 %v3047
    %v3049 = vlaneseq
    %v3050 = vshrl.u32 %v3049, 7
    %v3051 = vsub.s32 %v3048, %v3050
    %v3052 = vrot.slane %v404, %v3051
    %v3054 = vunpack.c.l.s4 1414812756
    %v3055 = vunpack.c.0.s8 %v3054
    %v3056 = vlaneseq
    %v3057 = vshrl.u32 %v3056, 7
    %v3058 = vsub.s32 %v3055, %v3057
    %v3059 = vrot.slane %v404, %v3058
    %v3061 = vunpack.c.l.s4 1987475062
    %v3062 = vunpack.c.0.s8 %v3061
    %v3063 = vlaneseq
    %v3064 = vshrl.u32 %v3063, 7
    %v3065 = vsub.s32 %v3062, %v3064
    %v3066 = vrot.slane %v404, %v3065
    %v3068 = vunpack.c.l.s4 269488144
    %v3069 = vunpack.c.0.s8 %v3068
    %v3070 = vlaneseq
    %v3071 = vshrl.u32 %v3070, 7
    %v3072 = vsub.s32 %v3069, %v3071
    %v3073 = vrot.slane %v407, %v3072
    %v3075 = vunpack.c.l.s4 842150450
    %v3076 = vunpack.c.0.s8 %v3075
    %v3077 = vlaneseq
    %v3078 = vshrl.u32 %v3077, 7
    %v3079 = vsub.s32 %v3076, %v3078
    %v3080 = vrot.slane %v407, %v3079
    %v3082 = vunpack.c.l.s4 1414812756
    %v3083 = vunpack.c.0.s8 %v3082
    %v3084 = vlaneseq
    %v3085 = vshrl.u32 %v3084, 7
    %v3086 = vsub.s32 %v3083, %v3085
    %v3087 = vrot.slane %v407, %v3086
    %v3089 = vunpack.c.l.s4 1987475062
    %v3090 = vunpack.c.0.s8 %v3089
    %v3091 = vlaneseq
    %v3092 = vshrl.u32 %v3091, 7
    %v3093 = vsub.s32 %v3090, %v3092
    %v3094 = vrot.slane %v407, %v3093
    %v3096 = vunpack.c.l.s4 269488144
    %v3097 = vunpack.c.0.s8 %v3096
    %v3098 = vlaneseq
    %v3099 = vshrl.u32 %v3098, 7
    %v3100 = vsub.s32 %v3097, %v3099
    %v3101 = vrot.slane %v410, %v3100
    %v3103 = vunpack.c.l.s4 842150450
    %v3104 = vunpack.c.0.s8 %v3103
    %v3105 = vlaneseq
    %v3106 = vshrl.u32 %v3105, 7
    %v3107 = vsub.s32 %v3104, %v3106
    %v3108 = vrot.slane %v410, %v3107
    %v3110 = vunpack.c.l.s4 1414812756
    %v3111 = vunpack.c.0.s8 %v3110
    %v3112 = vlaneseq
    %v3113 = vshrl.u32 %v3112, 7
    %v3114 = vsub.s32 %v3111, %v3113
    %v3115 = vrot.slane %v410, %v3114
    %v3117 = vunpack.c.l.s4 1987475062
    %v3118 = vunpack.c.0.s8 %v3117
    %v3119 = vlaneseq
    %v3120 = vshrl.u32 %v3119, 7
    %v3121 = vsub.s32 %v3118, %v3120
    %v3122 = vrot.slane %v410, %v3121
    %v3124 = vunpack.c.l.s4 269488144
    %v3125 = vunpack.c.0.s8 %v3124
    %v3126 = vlaneseq
    %v3127 = vshrl.u32 %v3126, 7
    %v3128 = vsub.s32 %v3125, %v3127
    %v3129 = vrot.slane %v413, %v3128
    %v3131 = vunpack.c.l.s4 842150450
    %v3132 = vunpack.c.0.s8 %v3131
    %v3133 = vlaneseq
    %v3134 = vshrl.u32 %v3133, 7
    %v3135 = vsub.s32 %v3132, %v3134
    %v3136 = vrot.slane %v413, %v3135
    %v3138 = vunpack.c.l.s4 1414812756
    %v3139 = vunpack.c.0.s8 %v3138
    %v3140 = vlaneseq
    %v3141 = vshrl.u32 %v3140, 7
    %v3142 = vsub.s32 %v3139, %v3141
    %v3143 = vrot.slane %v413, %v3142
    %v3145 = vunpack.c.l.s4 1987475062
    %v3146 = vunpack.c.0.s8 %v3145
    %v3147 = vlaneseq
    %v3148 = vshrl.u32 %v3147, 7
    %v3149 = vsub.s32 %v3146, %v3148
    %v3150 = vrot.slane %v413, %v3149
    %v3152 = vunpack.c.l.s4 269488144
    %v3153 = vunpack.c.0.s8 %v3152
    %v3154 = vlaneseq
    %v3155 = vshrl.u32 %v3154, 7
    %v3156 = vsub.s32 %v3153, %v3155
    %v3157 = vrot.slane %v416, %v3156
    %v3159 = vunpack.c.l.s4 842150450
    %v3160 = vunpack.c.0.s8 %v3159
    %v3161 = vlaneseq
    %v3162 = vshrl.u32 %v3161, 7
    %v3163 = vsub.s32 %v3160, %v3162
    %v3164 = vrot.slane %v416, %v3163
    %v3166 = vunpack.c.l.s4 1414812756
    %v3167 = vunpack.c.0.s8 %v3166
    %v3168 = vlaneseq
    %v3169 = vshrl.u32 %v3168, 7
    %v3170 = vsub.s32 %v3167, %v3169
    %v3171 = vrot.slane %v416, %v3170
    %v3173 = vunpack.c.l.s4 1987475062
    %v3174 = vunpack.c.0.s8 %v3173
    %v3175 = vlaneseq
    %v3176 = vshrl.u32 %v3175, 7
    %v3177 = vsub.s32 %v3174, %v3176
    %v3178 = vrot.slane %v416, %v3177
    %v3180 = vunpack.c.l.s4 269488144
    %v3181 = vunpack.c.0.s8 %v3180
    %v3182 = vlaneseq
    %v3183 = vshrl.u32 %v3182, 7
    %v3184 = vsub.s32 %v3181, %v3183
    %v3185 = vrot.slane %v419, %v3184
    %v3187 = vunpack.c.l.s4 842150450
    %v3188 = vunpack.c.0.s8 %v3187
    %v3189 = vlaneseq
    %v3190 = vshrl.u32 %v3189, 7
    %v3191 = vsub.s32 %v3188, %v3190
    %v3192 = vrot.slane %v419, %v3191
    %v3194 = vunpack.c.l.s4 1414812756
    %v3195 = vunpack.c.0.s8 %v3194
    %v3196 = vlaneseq
    %v3197 = vshrl.u32 %v3196, 7
    %v3198 = vsub.s32 %v3195, %v3197
    %v3199 = vrot.slane %v419, %v3198
    %v3201 = vunpack.c.l.s4 1987475062
    %v3202 = vunpack.c.0.s8 %v3201
    %v3203 = vlaneseq
    %v3204 = vshrl.u32 %v3203, 7
    %v3205 = vsub.s32 %v3202, %v3204
    %v3206 = vrot.slane %v419, %v3205
    %v3208 = vunpack.c.l.s4 269488144
    %v3209 = vunpack.c.0.s8 %v3208
    %v3210 = vlaneseq
    %v3211 = vshrl.u32 %v3210, 7
    %v3212 = vsub.s32 %v3209, %v3211
    %v3213 = vrot.slane %v422, %v3212
    %v3215 = vunpack.c.l.s4 842150450
    %v3216 = vunpack.c.0.s8 %v3215
    %v3217 = vlaneseq
    %v3218 = vshrl.u32 %v3217, 7
    %v3219 = vsub.s32 %v3216, %v3218
    %v3220 = vrot.slane %v422, %v3219
    %v3222 = vunpack.c.l.s4 1414812756
    %v3223 = vunpack.c.0.s8 %v3222
    %v3224 = vlaneseq
    %v3225 = vshrl.u32 %v3224, 7
    %v3226 = vsub.s32 %v3223, %v3225
    %v3227 = vrot.slane %v422, %v3226
    %v3229 = vunpack.c.l.s4 1987475062
    %v3230 = vunpack.c.0.s8 %v3229
    %v3231 = vlaneseq
    %v3232 = vshrl.u32 %v3231, 7
    %v3233 = vsub.s32 %v3230, %v3232
    %v3234 = vrot.slane %v422, %v3233
    %v3236 = vunpack.c.l.s4 269488144
    %v3237 = vunpack.c.0.s8 %v3236
    %v3238 = vlaneseq
    %v3239 = vshrl.u32 %v3238, 7
    %v3240 = vsub.s32 %v3237, %v3239
    %v3241 = vrot.slane %v425, %v3240
    %v3243 = vunpack.c.l.s4 842150450
    %v3244 = vunpack.c.0.s8 %v3243
    %v3245 = vlaneseq
    %v3246 = vshrl.u32 %v3245, 7
    %v3247 = vsub.s32 %v3244, %v3246
    %v3248 = vrot.slane %v425, %v3247
    %v3250 = vunpack.c.l.s4 1414812756
    %v3251 = vunpack.c.0.s8 %v3250
    %v3252 = vlaneseq
    %v3253 = vshrl.u32 %v3252, 7
    %v3254 = vsub.s32 %v3251, %v3253
    %v3255 = vrot.slane %v425, %v3254
    %v3257 = vunpack.c.l.s4 1987475062
    %v3258 = vunpack.c.0.s8 %v3257
    %v3259 = vlaneseq
    %v3260 = vshrl.u32 %v3259, 7
    %v3261 = vsub.s32 %v3258, %v3260
    %v3262 = vrot.slane %v425, %v3261
    %v3264 = vunpack.c.l.s4 269488144
    %v3265 = vunpack.c.0.s8 %v3264
    %v3266 = vlaneseq
    %v3267 = vshrl.u32 %v3266, 7
    %v3268 = vsub.s32 %v3265, %v3267
    %v3269 = vrot.slane %v428, %v3268
    %v3271 = vunpack.c.l.s4 842150450
    %v3272 = vunpack.c.0.s8 %v3271
    %v3273 = vlaneseq
    %v3274 = vshrl.u32 %v3273, 7
    %v3275 = vsub.s32 %v3272, %v3274
    %v3276 = vrot.slane %v428, %v3275
    %v3278 = vunpack.c.l.s4 1414812756
    %v3279 = vunpack.c.0.s8 %v3278
    %v3280 = vlaneseq
    %v3281 = vshrl.u32 %v3280, 7
    %v3282 = vsub.s32 %v3279, %v3281
    %v3283 = vrot.slane %v428, %v3282
    %v3285 = vunpack.c.l.s4 1987475062
    %v3286 = vunpack.c.0.s8 %v3285
    %v3287 = vlaneseq
    %v3288 = vshrl.u32 %v3287, 7
    %v3289 = vsub.s32 %v3286, %v3288
    %v3290 = vrot.slane %v428, %v3289
    %v3292 = vunpack.c.l.s4 269488144
    %v3293 = vunpack.c.0.s8 %v3292
    %v3294 = vlaneseq
    %v3295 = vshrl.u32 %v3294, 7
    %v3296 = vsub.s32 %v3293, %v3295
    %v3297 = vrot.slane %v431, %v3296
    %v3299 = vunpack.c.l.s4 842150450
    %v3300 = vunpack.c.0.s8 %v3299
    %v3301 = vlaneseq
    %v3302 = vshrl.u32 %v3301, 7
    %v3303 = vsub.s32 %v3300, %v3302
    %v3304 = vrot.slane %v431, %v3303
    %v3306 = vunpack.c.l.s4 1414812756
    %v3307 = vunpack.c.0.s8 %v3306
    %v3308 = vlaneseq
    %v3309 = vshrl.u32 %v3308, 7
    %v3310 = vsub.s32 %v3307, %v3309
    %v3311 = vrot.slane %v431, %v3310
    %v3313 = vunpack.c.l.s4 1987475062
    %v3314 = vunpack.c.0.s8 %v3313
    %v3315 = vlaneseq
    %v3316 = vshrl.u32 %v3315, 7
    %v3317 = vsub.s32 %v3314, %v3316
    %v3318 = vrot.slane %v431, %v3317
    %v3320 = vunpack.c.l.s4 269488144
    %v3321 = vunpack.c.0.s8 %v3320
    %v3322 = vlaneseq
    %v3323 = vshrl.u32 %v3322, 7
    %v3324 = vsub.s32 %v3321, %v3323
    %v3325 = vrot.slane %v434, %v3324
    %v3327 = vunpack.c.l.s4 842150450
    %v3328 = vunpack.c.0.s8 %v3327
    %v3329 = vlaneseq
    %v3330 = vshrl.u32 %v3329, 7
    %v3331 = vsub.s32 %v3328, %v3330
    %v3332 = vrot.slane %v434, %v3331
    %v3334 = vunpack.c.l.s4 1414812756
    %v3335 = vunpack.c.0.s8 %v3334
    %v3336 = vlaneseq
    %v3337 = vshrl.u32 %v3336, 7
    %v3338 = vsub.s32 %v3335, %v3337
    %v3339 = vrot.slane %v434, %v3338
    %v3341 = vunpack.c.l.s4 1987475062
    %v3342 = vunpack.c.0.s8 %v3341
    %v3343 = vlaneseq
    %v3344 = vshrl.u32 %v3343, 7
    %v3345 = vsub.s32 %v3342, %v3344
    %v3346 = vrot.slane %v434, %v3345
    %v3348 = vunpack.c.l.s4 269488144
    %v3349 = vunpack.c.0.s8 %v3348
    %v3350 = vlaneseq
    %v3351 = vshrl.u32 %v3350, 7
    %v3352 = vsub.s32 %v3349, %v3351
    %v3353 = vrot.slane %v437, %v3352
    %v3355 = vunpack.c.l.s4 842150450
    %v3356 = vunpack.c.0.s8 %v3355
    %v3357 = vlaneseq
    %v3358 = vshrl.u32 %v3357, 7
    %v3359 = vsub.s32 %v3356, %v3358
    %v3360 = vrot.slane %v437, %v3359
    %v3362 = vunpack.c.l.s4 1414812756
    %v3363 = vunpack.c.0.s8 %v3362
    %v3364 = vlaneseq
    %v3365 = vshrl.u32 %v3364, 7
    %v3366 = vsub.s32 %v3363, %v3365
    %v3367 = vrot.slane %v437, %v3366
    %v3369 = vunpack.c.l.s4 1987475062
    %v3370 = vunpack.c.0.s8 %v3369
    %v3371 = vlaneseq
    %v3372 = vshrl.u32 %v3371, 7
    %v3373 = vsub.s32 %v3370, %v3372
    %v3374 = vrot.slane %v437, %v3373
    %v3376 = vunpack.c.l.s4 269488144
    %v3377 = vunpack.c.0.s8 %v3376
    %v3378 = vlaneseq
    %v3379 = vshrl.u32 %v3378, 7
    %v3380 = vsub.s32 %v3377, %v3379
    %v3381 = vrot.slane %v440, %v3380
    %v3383 = vunpack.c.l.s4 842150450
    %v3384 = vunpack.c.0.s8 %v3383
    %v3385 = vlaneseq
    %v3386 = vshrl.u32 %v3385, 7
    %v3387 = vsub.s32 %v3384, %v3386
    %v3388 = vrot.slane %v440, %v3387
    %v3390 = vunpack.c.l.s4 1414812756
    %v3391 = vunpack.c.0.s8 %v3390
    %v3392 = vlaneseq
    %v3393 = vshrl.u32 %v3392, 7
    %v3394 = vsub.s32 %v3391, %v3393
    %v3395 = vrot.slane %v440, %v3394
    %v3397 = vunpack.c.l.s4 1987475062
    %v3398 = vunpack.c.0.s8 %v3397
    %v3399 = vlaneseq
    %v3400 = vshrl.u32 %v3399, 7
    %v3401 = vsub.s32 %v3398, %v3400
    %v3402 = vrot.slane %v440, %v3401
    %v3404 = vunpack.c.l.s4 269488144
    %v3405 = vunpack.c.0.s8 %v3404
    %v3406 = vlaneseq
    %v3407 = vshrl.u32 %v3406, 7
    %v3408 = vsub.s32 %v3405, %v3407
    %v3409 = vrot.slane %v443, %v3408
    %v3411 = vunpack.c.l.s4 842150450
    %v3412 = vunpack.c.0.s8 %v3411
    %v3413 = vlaneseq
    %v3414 = vshrl.u32 %v3413, 7
    %v3415 = vsub.s32 %v3412, %v3414
    %v3416 = vrot.slane %v443, %v3415
    %v3418 = vunpack.c.l.s4 1414812756
    %v3419 = vunpack.c.0.s8 %v3418
    %v3420 = vlaneseq
    %v3421 = vshrl.u32 %v3420, 7
    %v3422 = vsub.s32 %v3419, %v3421
    %v3423 = vrot.slane %v443, %v3422
    %v3425 = vunpack.c.l.s4 1987475062
    %v3426 = vunpack.c.0.s8 %v3425
    %v3427 = vlaneseq
    %v3428 = vshrl.u32 %v3427, 7
    %v3429 = vsub.s32 %v3426, %v3428
    %v3430 = vrot.slane %v443, %v3429
    %v3432 = vunpack.c.l.s4 269488144
    %v3433 = vunpack.c.0.s8 %v3432
    %v3434 = vlaneseq
    %v3435 = vshrl.u32 %v3434, 7
    %v3436 = vsub.s32 %v3433, %v3435
    %v3437 = vrot.slane %v446, %v3436
    %v3439 = vunpack.c.l.s4 842150450
    %v3440 = vunpack.c.0.s8 %v3439
    %v3441 = vlaneseq
    %v3442 = vshrl.u32 %v3441, 7
    %v3443 = vsub.s32 %v3440, %v3442
    %v3444 = vrot.slane %v446, %v3443
    %v3446 = vunpack.c.l.s4 1414812756
    %v3447 = vunpack.c.0.s8 %v3446
    %v3448 = vlaneseq
    %v3449 = vshrl.u32 %v3448, 7
    %v3450 = vsub.s32 %v3447, %v3449
    %v3451 = vrot.slane %v446, %v3450
    %v3453 = vunpack.c.l.s4 1987475062
    %v3454 = vunpack.c.0.s8 %v3453
    %v3455 = vlaneseq
    %v3456 = vshrl.u32 %v3455, 7
    %v3457 = vsub.s32 %v3454, %v3456
    %v3458 = vrot.slane %v446, %v3457
    %v3460 = vunpack.c.l.s4 269488144
    %v3461 = vunpack.c.0.s8 %v3460
    %v3462 = vlaneseq
    %v3463 = vshrl.u32 %v3462, 7
    %v3464 = vsub.s32 %v3461, %v3463
    %v3465 = vrot.slane %v449, %v3464
    %v3467 = vunpack.c.l.s4 842150450
    %v3468 = vunpack.c.0.s8 %v3467
    %v3469 = vlaneseq
    %v3470 = vshrl.u32 %v3469, 7
    %v3471 = vsub.s32 %v3468, %v3470
    %v3472 = vrot.slane %v449, %v3471
    %v3474 = vunpack.c.l.s4 1414812756
    %v3475 = vunpack.c.0.s8 %v3474
    %v3476 = vlaneseq
    %v3477 = vshrl.u32 %v3476, 7
    %v3478 = vsub.s32 %v3475, %v3477
    %v3479 = vrot.slane %v449, %v3478
    %v3481 = vunpack.c.l.s4 1987475062
    %v3482 = vunpack.c.0.s8 %v3481
    %v3483 = vlaneseq
    %v3484 = vshrl.u32 %v3483, 7
    %v3485 = vsub.s32 %v3482, %v3484
    %v3486 = vrot.slane %v449, %v3485
    %v3488 = vunpack.c.l.s4 269488144
    %v3489 = vunpack.c.0.s8 %v3488
    %v3490 = vlaneseq
    %v3491 = vshrl.u32 %v3490, 7
    %v3492 = vsub.s32 %v3489, %v3491
    %v3493 = vrot.slane %v452, %v3492
    %v3495 = vunpack.c.l.s4 842150450
    %v3496 = vunpack.c.0.s8 %v3495
    %v3497 = vlaneseq
    %v3498 = vshrl.u32 %v3497, 7
    %v3499 = vsub.s32 %v3496, %v3498
    %v3500 = vrot.slane %v452, %v3499
    %v3502 = vunpack.c.l.s4 1414812756
    %v3503 = vunpack.c.0.s8 %v3502
    %v3504 = vlaneseq
    %v3505 = vshrl.u32 %v3504, 7
    %v3506 = vsub.s32 %v3503, %v3505
    %v3507 = vrot.slane %v452, %v3506
    %v3509 = vunpack.c.l.s4 1987475062
    %v3510 = vunpack.c.0.s8 %v3509
    %v3511 = vlaneseq
    %v3512 = vshrl.u32 %v3511, 7
    %v3513 = vsub.s32 %v3510, %v3512
    %v3514 = vrot.slane %v452, %v3513
    %v3516 = vunpack.c.l.s4 269488144
    %v3517 = vunpack.c.0.s8 %v3516
    %v3518 = vlaneseq
    %v3519 = vshrl.u32 %v3518, 7
    %v3520 = vsub.s32 %v3517, %v3519
    %v3521 = vrot.slane %v455, %v3520
    %v3523 = vunpack.c.l.s4 842150450
    %v3524 = vunpack.c.0.s8 %v3523
    %v3525 = vlaneseq
    %v3526 = vshrl.u32 %v3525, 7
    %v3527 = vsub.s32 %v3524, %v3526
    %v3528 = vrot.slane %v455, %v3527
    %v3530 = vunpack.c.l.s4 1414812756
    %v3531 = vunpack.c.0.s8 %v3530
    %v3532 = vlaneseq
    %v3533 = vshrl.u32 %v3532, 7
    %v3534 = vsub.s32 %v3531, %v3533
    %v3535 = vrot.slane %v455, %v3534
    %v3537 = vunpack.c.l.s4 1987475062
    %v3538 = vunpack.c.0.s8 %v3537
    %v3539 = vlaneseq
    %v3540 = vshrl.u32 %v3539, 7
    %v3541 = vsub.s32 %v3538, %v3540
    %v3542 = vrot.slane %v455, %v3541
    %v3544 = vunpack.c.l.s4 269488144
    %v3545 = vunpack.c.0.s8 %v3544
    %v3546 = vlaneseq
    %v3547 = vshrl.u32 %v3546, 7
    %v3548 = vsub.s32 %v3545, %v3547
    %v3549 = vrot.slane %v458, %v3548
    %v3551 = vunpack.c.l.s4 842150450
    %v3552 = vunpack.c.0.s8 %v3551
    %v3553 = vlaneseq
    %v3554 = vshrl.u32 %v3553, 7
    %v3555 = vsub.s32 %v3552, %v3554
    %v3556 = vrot.slane %v458, %v3555
    %v3558 = vunpack.c.l.s4 1414812756
    %v3559 = vunpack.c.0.s8 %v3558
    %v3560 = vlaneseq
    %v3561 = vshrl.u32 %v3560, 7
    %v3562 = vsub.s32 %v3559, %v3561
    %v3563 = vrot.slane %v458, %v3562
    %v3565 = vunpack.c.l.s4 1987475062
    %v3566 = vunpack.c.0.s8 %v3565
    %v3567 = vlaneseq
    %v3568 = vshrl.u32 %v3567, 7
    %v3569 = vsub.s32 %v3566, %v3568
    %v3570 = vrot.slane %v458, %v3569
    %v3572 = vunpack.c.l.s4 269488144
    %v3573 = vunpack.c.0.s8 %v3572
    %v3574 = vlaneseq
    %v3575 = vshrl.u32 %v3574, 7
    %v3576 = vsub.s32 %v3573, %v3575
    %v3577 = vrot.slane %v461, %v3576
    %v3579 = vunpack.c.l.s4 842150450
    %v3580 = vunpack.c.0.s8 %v3579
    %v3581 = vlaneseq
    %v3582 = vshrl.u32 %v3581, 7
    %v3583 = vsub.s32 %v3580, %v3582
    %v3584 = vrot.slane %v461, %v3583
    %v3586 = vunpack.c.l.s4 1414812756
    %v3587 = vunpack.c.0.s8 %v3586
    %v3588 = vlaneseq
    %v3589 = vshrl.u32 %v3588, 7
    %v3590 = vsub.s32 %v3587, %v3589
    %v3591 = vrot.slane %v461, %v3590
    %v3593 = vunpack.c.l.s4 1987475062
    %v3594 = vunpack.c.0.s8 %v3593
    %v3595 = vlaneseq
    %v3596 = vshrl.u32 %v3595, 7
    %v3597 = vsub.s32 %v3594, %v3596
    %v3598 = vrot.slane %v461, %v3597
    %v3600 = vunpack.c.l.s4 269488144
    %v3601 = vunpack.c.0.s8 %v3600
    %v3602 = vlaneseq
    %v3603 = vshrl.u32 %v3602, 7
    %v3604 = vsub.s32 %v3601, %v3603
    %v3605 = vrot.slane %v464, %v3604
    %v3607 = vunpack.c.l.s4 842150450
    %v3608 = vunpack.c.0.s8 %v3607
    %v3609 = vlaneseq
    %v3610 = vshrl.u32 %v3609, 7
    %v3611 = vsub.s32 %v3608, %v3610
    %v3612 = vrot.slane %v464, %v3611
    %v3614 = vunpack.c.l.s4 1414812756
    %v3615 = vunpack.c.0.s8 %v3614
    %v3616 = vlaneseq
    %v3617 = vshrl.u32 %v3616, 7
    %v3618 = vsub.s32 %v3615, %v3617
    %v3619 = vrot.slane %v464, %v3618
    %v3621 = vunpack.c.l.s4 1987475062
    %v3622 = vunpack.c.0.s8 %v3621
    %v3623 = vlaneseq
    %v3624 = vshrl.u32 %v3623, 7
    %v3625 = vsub.s32 %v3622, %v3624
    %v3626 = vrot.slane %v464, %v3625
    %v3628 = vunpack.c.l.s4 269488144
    %v3629 = vunpack.c.0.s8 %v3628
    %v3630 = vlaneseq
    %v3631 = vshrl.u32 %v3630, 7
    %v3632 = vsub.s32 %v3629, %v3631
    %v3633 = vrot.slane %v467, %v3632
    %v3635 = vunpack.c.l.s4 842150450
    %v3636 = vunpack.c.0.s8 %v3635
    %v3637 = vlaneseq
    %v3638 = vshrl.u32 %v3637, 7
    %v3639 = vsub.s32 %v3636, %v3638
    %v3640 = vrot.slane %v467, %v3639
    %v3642 = vunpack.c.l.s4 1414812756
    %v3643 = vunpack.c.0.s8 %v3642
    %v3644 = vlaneseq
    %v3645 = vshrl.u32 %v3644, 7
    %v3646 = vsub.s32 %v3643, %v3645
    %v3647 = vrot.slane %v467, %v3646
    %v3649 = vunpack.c.l.s4 1987475062
    %v3650 = vunpack.c.0.s8 %v3649
    %v3651 = vlaneseq
    %v3652 = vshrl.u32 %v3651, 7
    %v3653 = vsub.s32 %v3650, %v3652
    %v3654 = vrot.slane %v467, %v3653
    %v3656 = vunpack.c.l.s4 269488144
    %v3657 = vunpack.c.0.s8 %v3656
    %v3658 = vlaneseq
    %v3659 = vshrl.u32 %v3658, 7
    %v3660 = vsub.s32 %v3657, %v3659
    %v3661 = vrot.slane %v470, %v3660
    %v3663 = vunpack.c.l.s4 842150450
    %v3664 = vunpack.c.0.s8 %v3663
    %v3665 = vlaneseq
    %v3666 = vshrl.u32 %v3665, 7
    %v3667 = vsub.s32 %v3664, %v3666
    %v3668 = vrot.slane %v470, %v3667
    %v3670 = vunpack.c.l.s4 1414812756
    %v3671 = vunpack.c.0.s8 %v3670
    %v3672 = vlaneseq
    %v3673 = vshrl.u32 %v3672, 7
    %v3674 = vsub.s32 %v3671, %v3673
    %v3675 = vrot.slane %v470, %v3674
    %v3677 = vunpack.c.l.s4 1987475062
    %v3678 = vunpack.c.0.s8 %v3677
    %v3679 = vlaneseq
    %v3680 = vshrl.u32 %v3679, 7
    %v3681 = vsub.s32 %v3678, %v3680
    %v3682 = vrot.slane %v470, %v3681
    %v3684 = vunpack.c.l.s4 269488144
    %v3685 = vunpack.c.0.s8 %v3684
    %v3686 = vlaneseq
    %v3687 = vshrl.u32 %v3686, 7
    %v3688 = vsub.s32 %v3685, %v3687
    %v3689 = vrot.slane %v473, %v3688
    %v3691 = vunpack.c.l.s4 842150450
    %v3692 = vunpack.c.0.s8 %v3691
    %v3693 = vlaneseq
    %v3694 = vshrl.u32 %v3693, 7
    %v3695 = vsub.s32 %v3692, %v3694
    %v3696 = vrot.slane %v473, %v3695
    %v3698 = vunpack.c.l.s4 1414812756
    %v3699 = vunpack.c.0.s8 %v3698
    %v3700 = vlaneseq
    %v3701 = vshrl.u32 %v3700, 7
    %v3702 = vsub.s32 %v3699, %v3701
    %v3703 = vrot.slane %v473, %v3702
    %v3705 = vunpack.c.l.s4 1987475062
    %v3706 = vunpack.c.0.s8 %v3705
    %v3707 = vlaneseq
    %v3708 = vshrl.u32 %v3707, 7
    %v3709 = vsub.s32 %v3706, %v3708
    %v3710 = vrot.slane %v473, %v3709
    %v3712 = vunpack.c.l.s4 269488144
    %v3713 = vunpack.c.0.s8 %v3712
    %v3714 = vlaneseq
    %v3715 = vshrl.u32 %v3714, 7
    %v3716 = vsub.s32 %v3713, %v3715
    %v3717 = vrot.slane %v476, %v3716
    %v3719 = vunpack.c.l.s4 842150450
    %v3720 = vunpack.c.0.s8 %v3719
    %v3721 = vlaneseq
    %v3722 = vshrl.u32 %v3721, 7
    %v3723 = vsub.s32 %v3720, %v3722
    %v3724 = vrot.slane %v476, %v3723
    %v3726 = vunpack.c.l.s4 1414812756
    %v3727 = vunpack.c.0.s8 %v3726
    %v3728 = vlaneseq
    %v3729 = vshrl.u32 %v3728, 7
    %v3730 = vsub.s32 %v3727, %v3729
    %v3731 = vrot.slane %v476, %v3730
    %v3733 = vunpack.c.l.s4 1987475062
    %v3734 = vunpack.c.0.s8 %v3733
    %v3735 = vlaneseq
    %v3736 = vshrl.u32 %v3735, 7
    %v3737 = vsub.s32 %v3734, %v3736
    %v3738 = vrot.slane %v476, %v3737
    %v3740 = vunpack.c.l.s4 269488144
    %v3741 = vunpack.c.0.s8 %v3740
    %v3742 = vlaneseq
    %v3743 = vshrl.u32 %v3742, 7
    %v3744 = vsub.s32 %v3741, %v3743
    %v3745 = vrot.slane %v479, %v3744
    %v3747 = vunpack.c.l.s4 842150450
    %v3748 = vunpack.c.0.s8 %v3747
    %v3749 = vlaneseq
    %v3750 = vshrl.u32 %v3749, 7
    %v3751 = vsub.s32 %v3748, %v3750
    %v3752 = vrot.slane %v479, %v3751
    %v3754 = vunpack.c.l.s4 1414812756
    %v3755 = vunpack.c.0.s8 %v3754
    %v3756 = vlaneseq
    %v3757 = vshrl.u32 %v3756, 7
    %v3758 = vsub.s32 %v3755, %v3757
    %v3759 = vrot.slane %v479, %v3758
    %v3761 = vunpack.c.l.s4 1987475062
    %v3762 = vunpack.c.0.s8 %v3761
    %v3763 = vlaneseq
    %v3764 = vshrl.u32 %v3763, 7
    %v3765 = vsub.s32 %v3762, %v3764
    %v3766 = vrot.slane %v479, %v3765
    %v3768 = vunpack.c.l.s4 269488144
    %v3769 = vunpack.c.0.s8 %v3768
    %v3770 = vlaneseq
    %v3771 = vshrl.u32 %v3770, 7
    %v3772 = vsub.s32 %v3769, %v3771
    %v3773 = vrot.slane %v482, %v3772
    %v3775 = vunpack.c.l.s4 842150450
    %v3776 = vunpack.c.0.s8 %v3775
    %v3777 = vlaneseq
    %v3778 = vshrl.u32 %v3777, 7
    %v3779 = vsub.s32 %v3776, %v3778
    %v3780 = vrot.slane %v482, %v3779
    %v3782 = vunpack.c.l.s4 1414812756
    %v3783 = vunpack.c.0.s8 %v3782
    %v3784 = vlaneseq
    %v3785 = vshrl.u32 %v3784, 7
    %v3786 = vsub.s32 %v3783, %v3785
    %v3787 = vrot.slane %v482, %v3786
    %v3789 = vunpack.c.l.s4 1987475062
    %v3790 = vunpack.c.0.s8 %v3789
    %v3791 = vlaneseq
    %v3792 = vshrl.u32 %v3791, 7
    %v3793 = vsub.s32 %v3790, %v3792
    %v3794 = vrot.slane %v482, %v3793
    %v3796 = vunpack.c.l.s4 269488144
    %v3797 = vunpack.c.0.s8 %v3796
    %v3798 = vlaneseq
    %v3799 = vshrl.u32 %v3798, 7
    %v3800 = vsub.s32 %v3797, %v3799
    %v3801 = vrot.slane %v485, %v3800
    %v3803 = vunpack.c.l.s4 842150450
    %v3804 = vunpack.c.0.s8 %v3803
    %v3805 = vlaneseq
    %v3806 = vshrl.u32 %v3805, 7
    %v3807 = vsub.s32 %v3804, %v3806
    %v3808 = vrot.slane %v485, %v3807
    %v3810 = vunpack.c.l.s4 1414812756
    %v3811 = vunpack.c.0.s8 %v3810
    %v3812 = vlaneseq
    %v3813 = vshrl.u32 %v3812, 7
    %v3814 = vsub.s32 %v3811, %v3813
    %v3815 = vrot.slane %v485, %v3814
    %v3817 = vunpack.c.l.s4 1987475062
    %v3818 = vunpack.c.0.s8 %v3817
    %v3819 = vlaneseq
    %v3820 = vshrl.u32 %v3819, 7
    %v3821 = vsub.s32 %v3818, %v3820
    %v3822 = vrot.slane %v485, %v3821
    %v3824 = vunpack.c.l.s4 269488144
    %v3825 = vunpack.c.0.s8 %v3824
    %v3826 = vlaneseq
    %v3827 = vshrl.u32 %v3826, 7
    %v3828 = vsub.s32 %v3825, %v3827
    %v3829 = vrot.slane %v488, %v3828
    %v3831 = vunpack.c.l.s4 842150450
    %v3832 = vunpack.c.0.s8 %v3831
    %v3833 = vlaneseq
    %v3834 = vshrl.u32 %v3833, 7
    %v3835 = vsub.s32 %v3832, %v3834
    %v3836 = vrot.slane %v488, %v3835
    %v3838 = vunpack.c.l.s4 1414812756
    %v3839 = vunpack.c.0.s8 %v3838
    %v3840 = vlaneseq
    %v3841 = vshrl.u32 %v3840, 7
    %v3842 = vsub.s32 %v3839, %v3841
    %v3843 = vrot.slane %v488, %v3842
    %v3845 = vunpack.c.l.s4 1987475062
    %v3846 = vunpack.c.0.s8 %v3845
    %v3847 = vlaneseq
    %v3848 = vshrl.u32 %v3847, 7
    %v3849 = vsub.s32 %v3846, %v3848
    %v3850 = vrot.slane %v488, %v3849
    %v3852 = vunpack.c.l.s4 269488144
    %v3853 = vunpack.c.0.s8 %v3852
    %v3854 = vlaneseq
    %v3855 = vshrl.u32 %v3854, 7
    %v3856 = vsub.s32 %v3853, %v3855
    %v3857 = vrot.slane %v491, %v3856
    %v3859 = vunpack.c.l.s4 842150450
    %v3860 = vunpack.c.0.s8 %v3859
    %v3861 = vlaneseq
    %v3862 = vshrl.u32 %v3861, 7
    %v3863 = vsub.s32 %v3860, %v3862
    %v3864 = vrot.slane %v491, %v3863
    %v3866 = vunpack.c.l.s4 1414812756
    %v3867 = vunpack.c.0.s8 %v3866
    %v3868 = vlaneseq
    %v3869 = vshrl.u32 %v3868, 7
    %v3870 = vsub.s32 %v3867, %v3869
    %v3871 = vrot.slane %v491, %v3870
    %v3873 = vunpack.c.l.s4 1987475062
    %v3874 = vunpack.c.0.s8 %v3873
    %v3875 = vlaneseq
    %v3876 = vshrl.u32 %v3875, 7
    %v3877 = vsub.s32 %v3874, %v3876
    %v3878 = vrot.slane %v491, %v3877
    %v3880 = vunpack.c.l.s4 269488144
    %v3881 = vunpack.c.0.s8 %v3880
    %v3882 = vlaneseq
    %v3883 = vshrl.u32 %v3882, 7
    %v3884 = vsub.s32 %v3881, %v3883
    %v3885 = vrot.slane %v494, %v3884
    %v3887 = vunpack.c.l.s4 842150450
    %v3888 = vunpack.c.0.s8 %v3887
    %v3889 = vlaneseq
    %v3890 = vshrl.u32 %v3889, 7
    %v3891 = vsub.s32 %v3888, %v3890
    %v3892 = vrot.slane %v494, %v3891
    %v3894 = vunpack.c.l.s4 1414812756
    %v3895 = vunpack.c.0.s8 %v3894
    %v3896 = vlaneseq
    %v3897 = vshrl.u32 %v3896, 7
    %v3898 = vsub.s32 %v3895, %v3897
    %v3899 = vrot.slane %v494, %v3898
    %v3901 = vunpack.c.l.s4 1987475062
    %v3902 = vunpack.c.0.s8 %v3901
    %v3903 = vlaneseq
    %v3904 = vshrl.u32 %v3903, 7
    %v3905 = vsub.s32 %v3902, %v3904
    %v3906 = vrot.slane %v494, %v3905
    %v3908 = vunpack.c.l.s4 269488144
    %v3909 = vunpack.c.0.s8 %v3908
    %v3910 = vlaneseq
    %v3911 = vshrl.u32 %v3910, 7
    %v3912 = vsub.s32 %v3909, %v3911
    %v3913 = vrot.slane %v497, %v3912
    %v3915 = vunpack.c.l.s4 842150450
    %v3916 = vunpack.c.0.s8 %v3915
    %v3917 = vlaneseq
    %v3918 = vshrl.u32 %v3917, 7
    %v3919 = vsub.s32 %v3916, %v3918
    %v3920 = vrot.slane %v497, %v3919
    %v3922 = vunpack.c.l.s4 1414812756
    %v3923 = vunpack.c.0.s8 %v3922
    %v3924 = vlaneseq
    %v3925 = vshrl.u32 %v3924, 7
    %v3926 = vsub.s32 %v3923, %v3925
    %v3927 = vrot.slane %v497, %v3926
    %v3929 = vunpack.c.l.s4 1987475062
    %v3930 = vunpack.c.0.s8 %v3929
    %v3931 = vlaneseq
    %v3932 = vshrl.u32 %v3931, 7
    %v3933 = vsub.s32 %v3930, %v3932
    %v3934 = vrot.slane %v497, %v3933
    %v3936 = vunpack.c.l.s4 269488144
    %v3937 = vunpack.c.0.s8 %v3936
    %v3938 = vlaneseq
    %v3939 = vshrl.u32 %v3938, 7
    %v3940 = vsub.s32 %v3937, %v3939
    %v3941 = vrot.slane %v500, %v3940
    %v3943 = vunpack.c.l.s4 842150450
    %v3944 = vunpack.c.0.s8 %v3943
    %v3945 = vlaneseq
    %v3946 = vshrl.u32 %v3945, 7
    %v3947 = vsub.s32 %v3944, %v3946
    %v3948 = vrot.slane %v500, %v3947
    %v3950 = vunpack.c.l.s4 1414812756
    %v3951 = vunpack.c.0.s8 %v3950
    %v3952 = vlaneseq
    %v3953 = vshrl.u32 %v3952, 7
    %v3954 = vsub.s32 %v3951, %v3953
    %v3955 = vrot.slane %v500, %v3954
    %v3957 = vunpack.c.l.s4 1987475062
    %v3958 = vunpack.c.0.s8 %v3957
    %v3959 = vlaneseq
    %v3960 = vshrl.u32 %v3959, 7
    %v3961 = vsub.s32 %v3958, %v3960
    %v3962 = vrot.slane %v500, %v3961
    %v3964 = vunpack.c.l.s4 269488144
    %v3965 = vunpack.c.0.s8 %v3964
    %v3966 = vlaneseq
    %v3967 = vshrl.u32 %v3966, 7
    %v3968 = vsub.s32 %v3965, %v3967
    %v3969 = vrot.slane %v503, %v3968
    %v3971 = vunpack.c.l.s4 842150450
    %v3972 = vunpack.c.0.s8 %v3971
    %v3973 = vlaneseq
    %v3974 = vshrl.u32 %v3973, 7
    %v3975 = vsub.s32 %v3972, %v3974
    %v3976 = vrot.slane %v503, %v3975
    %v3978 = vunpack.c.l.s4 1414812756
    %v3979 = vunpack.c.0.s8 %v3978
    %v3980 = vlaneseq
    %v3981 = vshrl.u32 %v3980, 7
    %v3982 = vsub.s32 %v3979, %v3981
    %v3983 = vrot.slane %v503, %v3982
    %v3985 = vunpack.c.l.s4 1987475062
    %v3986 = vunpack.c.0.s8 %v3985
    %v3987 = vlaneseq
    %v3988 = vshrl.u32 %v3987, 7
    %v3989 = vsub.s32 %v3986, %v3988
    %v3990 = vrot.slane %v503, %v3989
    %v3992 = vunpack.c.l.s4 269488144
    %v3993 = vunpack.c.0.s8 %v3992
    %v3994 = vlaneseq
    %v3995 = vshrl.u32 %v3994, 7
    %v3996 = vsub.s32 %v3993, %v3995
    %v3997 = vrot.slane %v506, %v3996
    %v3999 = vunpack.c.l.s4 842150450
    %v4000 = vunpack.c.0.s8 %v3999
    %v4001 = vlaneseq
    %v4002 = vshrl.u32 %v4001, 7
    %v4003 = vsub.s32 %v4000, %v4002
    %v4004 = vrot.slane %v506, %v4003
    %v4006 = vunpack.c.l.s4 1414812756
    %v4007 = vunpack.c.0.s8 %v4006
    %v4008 = vlaneseq
    %v4009 = vshrl.u32 %v4008, 7
    %v4010 = vsub.s32 %v4007, %v4009
    %v4011 = vrot.slane %v506, %v4010
    %v4013 = vunpack.c.l.s4 1987475062
    %v4014 = vunpack.c.0.s8 %v4013
    %v4015 = vlaneseq
    %v4016 = vshrl.u32 %v4015, 7
    %v4017 = vsub.s32 %v4014, %v4016
    %v4018 = vrot.slane %v506, %v4017
    %v4020 = vunpack.c.l.s4 269488144
    %v4021 = vunpack.c.0.s8 %v4020
    %v4022 = vlaneseq
    %v4023 = vshrl.u32 %v4022, 7
    %v4024 = vsub.s32 %v4021, %v4023
    %v4025 = vrot.slane %v509, %v4024
    %v4027 = vunpack.c.l.s4 842150450
    %v4028 = vunpack.c.0.s8 %v4027
    %v4029 = vlaneseq
    %v4030 = vshrl.u32 %v4029, 7
    %v4031 = vsub.s32 %v4028, %v4030
    %v4032 = vrot.slane %v509, %v4031
    %v4034 = vunpack.c.l.s4 1414812756
    %v4035 = vunpack.c.0.s8 %v4034
    %v4036 = vlaneseq
    %v4037 = vshrl.u32 %v4036, 7
    %v4038 = vsub.s32 %v4035, %v4037
    %v4039 = vrot.slane %v509, %v4038
    %v4041 = vunpack.c.l.s4 1987475062
    %v4042 = vunpack.c.0.s8 %v4041
    %v4043 = vlaneseq
    %v4044 = vshrl.u32 %v4043, 7
    %v4045 = vsub.s32 %v4042, %v4044
    %v4046 = vrot.slane %v509, %v4045
    %v4048 = vunpack.c.l.s4 269488144
    %v4049 = vunpack.c.0.s8 %v4048
    %v4050 = vlaneseq
    %v4051 = vshrl.u32 %v4050, 7
    %v4052 = vsub.s32 %v4049, %v4051
    %v4053 = vrot.slane %v512, %v4052
    %v4055 = vunpack.c.l.s4 842150450
    %v4056 = vunpack.c.0.s8 %v4055
    %v4057 = vlaneseq
    %v4058 = vshrl.u32 %v4057, 7
    %v4059 = vsub.s32 %v4056, %v4058
    %v4060 = vrot.slane %v512, %v4059
    %v4062 = vunpack.c.l.s4 1414812756
    %v4063 = vunpack.c.0.s8 %v4062
    %v4064 = vlaneseq
    %v4065 = vshrl.u32 %v4064, 7
    %v4066 = vsub.s32 %v4063, %v4065
    %v4067 = vrot.slane %v512, %v4066
    %v4069 = vunpack.c.l.s4 1987475062
    %v4070 = vunpack.c.0.s8 %v4069
    %v4071 = vlaneseq
    %v4072 = vshrl.u32 %v4071, 7
    %v4073 = vsub.s32 %v4070, %v4072
    %v4074 = vrot.slane %v512, %v4073
    %v4076 = vunpack.c.l.s4 269488144
    %v4077 = vunpack.c.0.s8 %v4076
    %v4078 = vlaneseq
    %v4079 = vshrl.u32 %v4078, 7
    %v4080 = vsub.s32 %v4077, %v4079
    %v4081 = vrot.slane %v515, %v4080
    %v4083 = vunpack.c.l.s4 842150450
    %v4084 = vunpack.c.0.s8 %v4083
    %v4085 = vlaneseq
    %v4086 = vshrl.u32 %v4085, 7
    %v4087 = vsub.s32 %v4084, %v4086
    %v4088 = vrot.slane %v515, %v4087
    %v4090 = vunpack.c.l.s4 1414812756
    %v4091 = vunpack.c.0.s8 %v4090
    %v4092 = vlaneseq
    %v4093 = vshrl.u32 %v4092, 7
    %v4094 = vsub.s32 %v4091, %v4093
    %v4095 = vrot.slane %v515, %v4094
    %v4097 = vunpack.c.l.s4 1987475062
    %v4098 = vunpack.c.0.s8 %v4097
    %v4099 = vlaneseq
    %v4100 = vshrl.u32 %v4099, 7
    %v4101 = vsub.s32 %v4098, %v4100
    %v4102 = vrot.slane %v515, %v4101
    %v4104 = vunpack.c.l.s4 269488144
    %v4105 = vunpack.c.0.s8 %v4104
    %v4106 = vlaneseq
    %v4107 = vshrl.u32 %v4106, 7
    %v4108 = vsub.s32 %v4105, %v4107
    %v4109 = vrot.slane %v518, %v4108
    %v4111 = vunpack.c.l.s4 842150450
    %v4112 = vunpack.c.0.s8 %v4111
    %v4113 = vlaneseq
    %v4114 = vshrl.u32 %v4113, 7
    %v4115 = vsub.s32 %v4112, %v4114
    %v4116 = vrot.slane %v518, %v4115
    %v4118 = vunpack.c.l.s4 1414812756
    %v4119 = vunpack.c.0.s8 %v4118
    %v4120 = vlaneseq
    %v4121 = vshrl.u32 %v4120, 7
    %v4122 = vsub.s32 %v4119, %v4121
    %v4123 = vrot.slane %v518, %v4122
    %v4125 = vunpack.c.l.s4 1987475062
    %v4126 = vunpack.c.0.s8 %v4125
    %v4127 = vlaneseq
    %v4128 = vshrl.u32 %v4127, 7
    %v4129 = vsub.s32 %v4126, %v4128
    %v4130 = vrot.slane %v518, %v4129
    %v4132 = vunpack.c.l.s4 269488144
    %v4133 = vunpack.c.0.s8 %v4132
    %v4134 = vlaneseq
    %v4135 = vshrl.u32 %v4134, 7
    %v4136 = vsub.s32 %v4133, %v4135
    %v4137 = vrot.slane %v521, %v4136
    %v4139 = vunpack.c.l.s4 842150450
    %v4140 = vunpack.c.0.s8 %v4139
    %v4141 = vlaneseq
    %v4142 = vshrl.u32 %v4141, 7
    %v4143 = vsub.s32 %v4140, %v4142
    %v4144 = vrot.slane %v521, %v4143
    %v4146 = vunpack.c.l.s4 1414812756
    %v4147 = vunpack.c.0.s8 %v4146
    %v4148 = vlaneseq
    %v4149 = vshrl.u32 %v4148, 7
    %v4150 = vsub.s32 %v4147, %v4149
    %v4151 = vrot.slane %v521, %v4150
    %v4153 = vunpack.c.l.s4 1987475062
    %v4154 = vunpack.c.0.s8 %v4153
    %v4155 = vlaneseq
    %v4156 = vshrl.u32 %v4155, 7
    %v4157 = vsub.s32 %v4154, %v4156
    %v4158 = vrot.slane %v521, %v4157
    %v4160 = vunpack.c.l.s4 269488144
    %v4161 = vunpack.c.0.s8 %v4160
    %v4162 = vlaneseq
    %v4163 = vshrl.u32 %v4162, 7
    %v4164 = vsub.s32 %v4161, %v4163
    %v4165 = vrot.slane %v524, %v4164
    %v4167 = vunpack.c.l.s4 842150450
    %v4168 = vunpack.c.0.s8 %v4167
    %v4169 = vlaneseq
    %v4170 = vshrl.u32 %v4169, 7
    %v4171 = vsub.s32 %v4168, %v4170
    %v4172 = vrot.slane %v524, %v4171
    %v4174 = vunpack.c.l.s4 1414812756
    %v4175 = vunpack.c.0.s8 %v4174
    %v4176 = vlaneseq
    %v4177 = vshrl.u32 %v4176, 7
    %v4178 = vsub.s32 %v4175, %v4177
    %v4179 = vrot.slane %v524, %v4178
    %v4181 = vunpack.c.l.s4 1987475062
    %v4182 = vunpack.c.0.s8 %v4181
    %v4183 = vlaneseq
    %v4184 = vshrl.u32 %v4183, 7
    %v4185 = vsub.s32 %v4182, %v4184
    %v4186 = vrot.slane %v524, %v4185
    %v4188 = vunpack.c.l.s4 269488144
    %v4189 = vunpack.c.0.s8 %v4188
    %v4190 = vlaneseq
    %v4191 = vshrl.u32 %v4190, 7
    %v4192 = vsub.s32 %v4189, %v4191
    %v4193 = vrot.slane %v527, %v4192
    %v4195 = vunpack.c.l.s4 842150450
    %v4196 = vunpack.c.0.s8 %v4195
    %v4197 = vlaneseq
    %v4198 = vshrl.u32 %v4197, 7
    %v4199 = vsub.s32 %v4196, %v4198
    %v4200 = vrot.slane %v527, %v4199
    %v4202 = vunpack.c.l.s4 1414812756
    %v4203 = vunpack.c.0.s8 %v4202
    %v4204 = vlaneseq
    %v4205 = vshrl.u32 %v4204, 7
    %v4206 = vsub.s32 %v4203, %v4205
    %v4207 = vrot.slane %v527, %v4206
    %v4209 = vunpack.c.l.s4 1987475062
    %v4210 = vunpack.c.0.s8 %v4209
    %v4211 = vlaneseq
    %v4212 = vshrl.u32 %v4211, 7
    %v4213 = vsub.s32 %v4210, %v4212
    %v4214 = vrot.slane %v527, %v4213
    %v4216 = vunpack.c.l.s4 269488144
    %v4217 = vunpack.c.0.s8 %v4216
    %v4218 = vlaneseq
    %v4219 = vshrl.u32 %v4218, 7
    %v4220 = vsub.s32 %v4217, %v4219
    %v4221 = vrot.slane %v530, %v4220
    %v4223 = vunpack.c.l.s4 842150450
    %v4224 = vunpack.c.0.s8 %v4223
    %v4225 = vlaneseq
    %v4226 = vshrl.u32 %v4225, 7
    %v4227 = vsub.s32 %v4224, %v4226
    %v4228 = vrot.slane %v530, %v4227
    %v4230 = vunpack.c.l.s4 1414812756
    %v4231 = vunpack.c.0.s8 %v4230
    %v4232 = vlaneseq
    %v4233 = vshrl.u32 %v4232, 7
    %v4234 = vsub.s32 %v4231, %v4233
    %v4235 = vrot.slane %v530, %v4234
    %v4237 = vunpack.c.l.s4 1987475062
    %v4238 = vunpack.c.0.s8 %v4237
    %v4239 = vlaneseq
    %v4240 = vshrl.u32 %v4239, 7
    %v4241 = vsub.s32 %v4238, %v4240
    %v4242 = vrot.slane %v530, %v4241
    %v4243 = vcombine.low %v665, %v672
    %v4244 = vcombine.low %v679, %v686
    %v4246 = vunpack.c.l.s4 1983009808
    %v4247 = vunpack.c.0.s8 %v4246
    %v4248 = vlaneseq
    %v4249 = vshrl.u32 %v4248, 7
    %v4250 = vsub.s32 %v4247, %v4249
    %v4251 = vrot.slane %v4243, %v4250
    %v4253 = vunpack.c.l.s4 1983009808
    %v4254 = vunpack.c.0.s8 %v4253
    %v4255 = vlaneseq
    %v4256 = vshrl.u32 %v4255, 7
    %v4257 = vsub.s32 %v4254, %v4256
    %v4258 = vrot.slane %v4244, %v4257
    %v4259 = vcombine.low %v4251, %v4258
    %v4260 = vcombine.low %v693, %v700
    %v4261 = vcombine.low %v707, %v714
    %v4263 = vunpack.c.l.s4 1983009808
    %v4264 = vunpack.c.0.s8 %v4263
    %v4265 = vlaneseq
    %v4266 = vshrl.u32 %v4265, 7
    %v4267 = vsub.s32 %v4264, %v4266
    %v4268 = vrot.slane %v4260, %v4267
    %v4270 = vunpack.c.l.s4 1983009808
    %v4271 = vunpack.c.0.s8 %v4270
    %v4272 = vlaneseq
    %v4273 = vshrl.u32 %v4272, 7
    %v4274 = vsub.s32 %v4271, %v4273
    %v4275 = vrot.slane %v4261, %v4274
    %v4276 = vcombine.low %v4268, %v4275
    %v4277 = vcombine.low %v721, %v728
    %v4278 = vcombine.low %v735, %v742
    %v4280 = vunpack.c.l.s4 1983009808
    %v4281 = vunpack.c.0.s8 %v4280
    %v4282 = vlaneseq
    %v4283 = vshrl.u32 %v4282, 7
    %v4284 = vsub.s32 %v4281, %v4283
    %v4285 = vrot.slane %v4277, %v4284
    %v4287 = vunpack.c.l.s4 1983009808
    %v4288 = vunpack.c.0.s8 %v4287
    %v4289 = vlaneseq
    %v4290 = vshrl.u32 %v4289, 7
    %v4291 = vsub.s32 %v4288, %v4290
    %v4292 = vrot.slane %v4278, %v4291
    %v4293 = vcombine.low %v4285, %v4292
    %v4294 = vcombine.low %v749, %v756
    %v4295 = vcombine.low %v763, %v770
    %v4297 = vunpack.c.l.s4 1983009808
    %v4298 = vunpack.c.0.s8 %v4297
    %v4299 = vlaneseq
    %v4300 = vshrl.u32 %v4299, 7
    %v4301 = vsub.s32 %v4298, %v4300
    %v4302 = vrot.slane %v4294, %v4301
    %v4304 = vunpack.c.l.s4 1983009808
    %v4305 = vunpack.c.0.s8 %v4304
    %v4306 = vlaneseq
    %v4307 = vshrl.u32 %v4306, 7
    %v4308 = vsub.s32 %v4305, %v4307
    %v4309 = vrot.slane %v4295, %v4308
    %v4310 = vcombine.low %v4302, %v4309
    %v4311 = vcombine.low %v777, %v784
    %v4312 = vcombine.low %v791, %v798
    %v4314 = vunpack.c.l.s4 1983009808
    %v4315 = vunpack.c.0.s8 %v4314
    %v4316 = vlaneseq
    %v4317 = vshrl.u32 %v4316, 7
    %v4318 = vsub.s32 %v4315, %v4317
    %v4319 = vrot.slane %v4311, %v4318
    %v4321 = vunpack.c.l.s4 1983009808
    %v4322 = vunpack.c.0.s8 %v4321
    %v4323 = vlaneseq
    %v4324 = vshrl.u32 %v4323, 7
    %v4325 = vsub.s32 %v4322, %v4324
    %v4326 = vrot.slane %v4312, %v4325
    %v4327 = vcombine.low %v4319, %v4326
    %v4328 = vcombine.low %v805, %v812
    %v4329 = vcombine.low %v819, %v826
    %v4331 = vunpack.c.l.s4 1983009808
    %v4332 = vunpack.c.0.s8 %v4331
    %v4333 = vlaneseq
    %v4334 = vshrl.u32 %v4333, 7
    %v4335 = vsub.s32 %v4332, %v4334
    %v4336 = vrot.slane %v4328, %v4335
    %v4338 = vunpack.c.l.s4 1983009808
    %v4339 = vunpack.c.0.s8 %v4338
    %v4340 = vlaneseq
    %v4341 = vshrl.u32 %v4340, 7
    %v4342 = vsub.s32 %v4339, %v4341
    %v4343 = vrot.slane %v4329, %v4342
    %v4344 = vcombine.low %v4336, %v4343
    %v4345 = vcombine.low %v833, %v840
    %v4346 = vcombine.low %v847, %v854
    %v4348 = vunpack.c.l.s4 1983009808
    %v4349 = vunpack.c.0.s8 %v4348
    %v4350 = vlaneseq
    %v4351 = vshrl.u32 %v4350, 7
    %v4352 = vsub.s32 %v4349, %v4351
    %v4353 = vrot.slane %v4345, %v4352
    %v4355 = vunpack.c.l.s4 1983009808
    %v4356 = vunpack.c.0.s8 %v4355
    %v4357 = vlaneseq
    %v4358 = vshrl.u32 %v4357, 7
    %v4359 = vsub.s32 %v4356, %v4358
    %v4360 = vrot.slane %v4346, %v4359
    %v4361 = vcombine.low %v4353, %v4360
    %v4362 = vcombine.low %v861, %v868
    %v4363 = vcombine.low %v875, %v882
    %v4365 = vunpack.c.l.s4 1983009808
    %v4366 = vunpack.c.0.s8 %v4365
    %v4367 = vlaneseq
    %v4368 = vshrl.u32 %v4367, 7
    %v4369 = vsub.s32 %v4366, %v4368
    %v4370 = vrot.slane %v4362, %v4369
    %v4372 = vunpack.c.l.s4 1983009808
    %v4373 = vunpack.c.0.s8 %v4372
    %v4374 = vlaneseq
    %v4375 = vshrl.u32 %v4374, 7
    %v4376 = vsub.s32 %v4373, %v4375
    %v4377 = vrot.slane %v4363, %v4376
    %v4378 = vcombine.low %v4370, %v4377
    %v4379 = vcombine.low %v889, %v896
    %v4380 = vcombine.low %v903, %v910
    %v4382 = vunpack.c.l.s4 1983009808
    %v4383 = vunpack.c.0.s8 %v4382
    %v4384 = vlaneseq
    %v4385 = vshrl.u32 %v4384, 7
    %v4386 = vsub.s32 %v4383, %v4385
    %v4387 = vrot.slane %v4379, %v4386
    %v4389 = vunpack.c.l.s4 1983009808
    %v4390 = vunpack.c.0.s8 %v4389
    %v4391 = vlaneseq
    %v4392 = vshrl.u32 %v4391, 7
    %v4393 = vsub.s32 %v4390, %v4392
    %v4394 = vrot.slane %v4380, %v4393
    %v4395 = vcombine.low %v4387, %v4394
    %v4396 = vcombine.low %v917, %v924
    %v4397 = vcombine.low %v931, %v938
    %v4399 = vunpack.c.l.s4 1983009808
    %v4400 = vunpack.c.0.s8 %v4399
    %v4401 = vlaneseq
    %v4402 = vshrl.u32 %v4401, 7
    %v4403 = vsub.s32 %v4400, %v4402
    %v4404 = vrot.slane %v4396, %v4403
    %v4406 = vunpack.c.l.s4 1983009808
    %v4407 = vunpack.c.0.s8 %v4406
    %v4408 = vlaneseq
    %v4409 = vshrl.u32 %v4408, 7
    %v4410 = vsub.s32 %v4407, %v4409
    %v4411 = vrot.slane %v4397, %v4410
    %v4412 = vcombine.low %v4404, %v4411
    %v4413 = vcombine.low %v945, %v952
    %v4414 = vcombine.low %v959, %v966
    %v4416 = vunpack.c.l.s4 1983009808
    %v4417 = vunpack.c.0.s8 %v4416
    %v4418 = vlaneseq
    %v4419 = vshrl.u32 %v4418, 7
    %v4420 = vsub.s32 %v4417, %v4419
    %v4421 = vrot.slane %v4413, %v4420
    %v4423 = vunpack.c.l.s4 1983009808
    %v4424 = vunpack.c.0.s8 %v4423
    %v4425 = vlaneseq
    %v4426 = vshrl.u32 %v4425, 7
    %v4427 = vsub.s32 %v4424, %v4426
    %v4428 = vrot.slane %v4414, %v4427
    %v4429 = vcombine.low %v4421, %v4428
    %v4430 = vcombine.low %v973, %v980
    %v4431 = vcombine.low %v987, %v994
    %v4433 = vunpack.c.l.s4 1983009808
    %v4434 = vunpack.c.0.s8 %v4433
    %v4435 = vlaneseq
    %v4436 = vshrl.u32 %v4435, 7
    %v4437 = vsub.s32 %v4434, %v4436
    %v4438 = vrot.slane %v4430, %v4437
    %v4440 = vunpack.c.l.s4 1983009808
    %v4441 = vunpack.c.0.s8 %v4440
    %v4442 = vlaneseq
    %v4443 = vshrl.u32 %v4442, 7
    %v4444 = vsub.s32 %v4441, %v4443
    %v4445 = vrot.slane %v4431, %v4444
    %v4446 = vcombine.low %v4438, %v4445
    %v4447 = vcombine.low %v1001, %v1008
    %v4448 = vcombine.low %v1015, %v1022
    %v4450 = vunpack.c.l.s4 1983009808
    %v4451 = vunpack.c.0.s8 %v4450
    %v4452 = vlaneseq
    %v4453 = vshrl.u32 %v4452, 7
    %v4454 = vsub.s32 %v4451, %v4453
    %v4455 = vrot.slane %v4447, %v4454
    %v4457 = vunpack.c.l.s4 1983009808
    %v4458 = vunpack.c.0.s8 %v4457
    %v4459 = vlaneseq
    %v4460 = vshrl.u32 %v4459, 7
    %v4461 = vsub.s32 %v4458, %v4460
    %v4462 = vrot.slane %v4448, %v4461
    %v4463 = vcombine.low %v4455, %v4462
    %v4464 = vcombine.low %v1029, %v1036
    %v4465 = vcombine.low %v1043, %v1050
    %v4467 = vunpack.c.l.s4 1983009808
    %v4468 = vunpack.c.0.s8 %v4467
    %v4469 = vlaneseq
    %v4470 = vshrl.u32 %v4469, 7
    %v4471 = vsub.s32 %v4468, %v4470
    %v4472 = vrot.slane %v4464, %v4471
    %v4474 = vunpack.c.l.s4 1983009808
    %v4475 = vunpack.c.0.s8 %v4474
    %v4476 = vlaneseq
    %v4477 = vshrl.u32 %v4476, 7
    %v4478 = vsub.s32 %v4475, %v4477
    %v4479 = vrot.slane %v4465, %v4478
    %v4480 = vcombine.low %v4472, %v4479
    %v4481 = vcombine.low %v1057, %v1064
    %v4482 = vcombine.low %v1071, %v1078
    %v4484 = vunpack.c.l.s4 1983009808
    %v4485 = vunpack.c.0.s8 %v4484
    %v4486 = vlaneseq
    %v4487 = vshrl.u32 %v4486, 7
    %v4488 = vsub.s32 %v4485, %v4487
    %v4489 = vrot.slane %v4481, %v4488
    %v4491 = vunpack.c.l.s4 1983009808
    %v4492 = vunpack.c.0.s8 %v4491
    %v4493 = vlaneseq
    %v4494 = vshrl.u32 %v4493, 7
    %v4495 = vsub.s32 %v4492, %v4494
    %v4496 = vrot.slane %v4482, %v4495
    %v4497 = vcombine.low %v4489, %v4496
    %v4498 = vcombine.low %v1085, %v1092
    %v4499 = vcombine.low %v1099, %v1106
    %v4501 = vunpack.c.l.s4 1983009808
    %v4502 = vunpack.c.0.s8 %v4501
    %v4503 = vlaneseq
    %v4504 = vshrl.u32 %v4503, 7
    %v4505 = vsub.s32 %v4502, %v4504
    %v4506 = vrot.slane %v4498, %v4505
    %v4508 = vunpack.c.l.s4 1983009808
    %v4509 = vunpack.c.0.s8 %v4508
    %v4510 = vlaneseq
    %v4511 = vshrl.u32 %v4510, 7
    %v4512 = vsub.s32 %v4509, %v4511
    %v4513 = vrot.slane %v4499, %v4512
    %v4514 = vcombine.low %v4506, %v4513
    %v4515 = vcombine.low %v1113, %v1120
    %v4516 = vcombine.low %v1127, %v1134
    %v4518 = vunpack.c.l.s4 1983009808
    %v4519 = vunpack.c.0.s8 %v4518
    %v4520 = vlaneseq
    %v4521 = vshrl.u32 %v4520, 7
    %v4522 = vsub.s32 %v4519, %v4521
    %v4523 = vrot.slane %v4515, %v4522
    %v4525 = vunpack.c.l.s4 1983009808
    %v4526 = vunpack.c.0.s8 %v4525
    %v4527 = vlaneseq
    %v4528 = vshrl.u32 %v4527, 7
    %v4529 = vsub.s32 %v4526, %v4528
    %v4530 = vrot.slane %v4516, %v4529
    %v4531 = vcombine.low %v4523, %v4530
    %v4532 = vcombine.low %v1141, %v1148
    %v4533 = vcombine.low %v1155, %v1162
    %v4535 = vunpack.c.l.s4 1983009808
    %v4536 = vunpack.c.0.s8 %v4535
    %v4537 = vlaneseq
    %v4538 = vshrl.u32 %v4537, 7
    %v4539 = vsub.s32 %v4536, %v4538
    %v4540 = vrot.slane %v4532, %v4539
    %v4542 = vunpack.c.l.s4 1983009808
    %v4543 = vunpack.c.0.s8 %v4542
    %v4544 = vlaneseq
    %v4545 = vshrl.u32 %v4544, 7
    %v4546 = vsub.s32 %v4543, %v4545
    %v4547 = vrot.slane %v4533, %v4546
    %v4548 = vcombine.low %v4540, %v4547
    %v4549 = vcombine.low %v1169, %v1176
    %v4550 = vcombine.low %v1183, %v1190
    %v4552 = vunpack.c.l.s4 1983009808
    %v4553 = vunpack.c.0.s8 %v4552
    %v4554 = vlaneseq
    %v4555 = vshrl.u32 %v4554, 7
    %v4556 = vsub.s32 %v4553, %v4555
    %v4557 = vrot.slane %v4549, %v4556
    %v4559 = vunpack.c.l.s4 1983009808
    %v4560 = vunpack.c.0.s8 %v4559
    %v4561 = vlaneseq
    %v4562 = vshrl.u32 %v4561, 7
    %v4563 = vsub.s32 %v4560, %v4562
    %v4564 = vrot.slane %v4550, %v4563
    %v4565 = vcombine.low %v4557, %v4564
    %v4566 = vcombine.low %v1197, %v1204
    %v4567 = vcombine.low %v1211, %v1218
    %v4569 = vunpack.c.l.s4 1983009808
    %v4570 = vunpack.c.0.s8 %v4569
    %v4571 = vlaneseq
    %v4572 = vshrl.u32 %v4571, 7
    %v4573 = vsub.s32 %v4570, %v4572
    %v4574 = vrot.slane %v4566, %v4573
    %v4576 = vunpack.c.l.s4 1983009808
    %v4577 = vunpack.c.0.s8 %v4576
    %v4578 = vlaneseq
    %v4579 = vshrl.u32 %v4578, 7
    %v4580 = vsub.s32 %v4577, %v4579
    %v4581 = vrot.slane %v4567, %v4580
    %v4582 = vcombine.low %v4574, %v4581
    %v4583 = vcombine.low %v1225, %v1232
    %v4584 = vcombine.low %v1239, %v1246
    %v4586 = vunpack.c.l.s4 1983009808
    %v4587 = vunpack.c.0.s8 %v4586
    %v4588 = vlaneseq
    %v4589 = vshrl.u32 %v4588, 7
    %v4590 = vsub.s32 %v4587, %v4589
    %v4591 = vrot.slane %v4583, %v4590
    %v4593 = vunpack.c.l.s4 1983009808
    %v4594 = vunpack.c.0.s8 %v4593
    %v4595 = vlaneseq
    %v4596 = vshrl.u32 %v4595, 7
    %v4597 = vsub.s32 %v4594, %v4596
    %v4598 = vrot.slane %v4584, %v4597
    %v4599 = vcombine.low %v4591, %v4598
    %v4600 = vcombine.low %v1253, %v1260
    %v4601 = vcombine.low %v1267, %v1274
    %v4603 = vunpack.c.l.s4 1983009808
    %v4604 = vunpack.c.0.s8 %v4603
    %v4605 = vlaneseq
    %v4606 = vshrl.u32 %v4605, 7
    %v4607 = vsub.s32 %v4604, %v4606
    %v4608 = vrot.slane %v4600, %v4607
    %v4610 = vunpack.c.l.s4 1983009808
    %v4611 = vunpack.c.0.s8 %v4610
    %v4612 = vlaneseq
    %v4613 = vshrl.u32 %v4612, 7
    %v4614 = vsub.s32 %v4611, %v4613
    %v4615 = vrot.slane %v4601, %v4614
    %v4616 = vcombine.low %v4608, %v4615
    %v4617 = vcombine.low %v1281, %v1288
    %v4618 = vcombine.low %v1295, %v1302
    %v4620 = vunpack.c.l.s4 1983009808
    %v4621 = vunpack.c.0.s8 %v4620
    %v4622 = vlaneseq
    %v4623 = vshrl.u32 %v4622, 7
    %v4624 = vsub.s32 %v4621, %v4623
    %v4625 = vrot.slane %v4617, %v4624
    %v4627 = vunpack.c.l.s4 1983009808
    %v4628 = vunpack.c.0.s8 %v4627
    %v4629 = vlaneseq
    %v4630 = vshrl.u32 %v4629, 7
    %v4631 = vsub.s32 %v4628, %v4630
    %v4632 = vrot.slane %v4618, %v4631
    %v4633 = vcombine.low %v4625, %v4632
    %v4634 = vcombine.low %v1309, %v1316
    %v4635 = vcombine.low %v1323, %v1330
    %v4637 = vunpack.c.l.s4 1983009808
    %v4638 = vunpack.c.0.s8 %v4637
    %v4639 = vlaneseq
    %v4640 = vshrl.u32 %v4639, 7
    %v4641 = vsub.s32 %v4638, %v4640
    %v4642 = vrot.slane %v4634, %v4641
    %v4644 = vunpack.c.l.s4 1983009808
    %v4645 = vunpack.c.0.s8 %v4644
    %v4646 = vlaneseq
    %v4647 = vshrl.u32 %v4646, 7
    %v4648 = vsub.s32 %v4645, %v4647
    %v4649 = vrot.slane %v4635, %v4648
    %v4650 = vcombine.low %v4642, %v4649
    %v4651 = vcombine.low %v1337, %v1344
    %v4652 = vcombine.low %v1351, %v1358
    %v4654 = vunpack.c.l.s4 1983009808
    %v4655 = vunpack.c.0.s8 %v4654
    %v4656 = vlaneseq
    %v4657 = vshrl.u32 %v4656, 7
    %v4658 = vsub.s32 %v4655, %v4657
    %v4659 = vrot.slane %v4651, %v4658
    %v4661 = vunpack.c.l.s4 1983009808
    %v4662 = vunpack.c.0.s8 %v4661
    %v4663 = vlaneseq
    %v4664 = vshrl.u32 %v4663, 7
    %v4665 = vsub.s32 %v4662, %v4664
    %v4666 = vrot.slane %v4652, %v4665
    %v4667 = vcombine.low %v4659, %v4666
    %v4668 = vcombine.low %v1365, %v1372
    %v4669 = vcombine.low %v1379, %v1386
    %v4671 = vunpack.c.l.s4 1983009808
    %v4672 = vunpack.c.0.s8 %v4671
    %v4673 = vlaneseq
    %v4674 = vshrl.u32 %v4673, 7
    %v4675 = vsub.s32 %v4672, %v4674
    %v4676 = vrot.slane %v4668, %v4675
    %v4678 = vunpack.c.l.s4 1983009808
    %v4679 = vunpack.c.0.s8 %v4678
    %v4680 = vlaneseq
    %v4681 = vshrl.u32 %v4680, 7
    %v4682 = vsub.s32 %v4679, %v4681
    %v4683 = vrot.slane %v4669, %v4682
    %v4684 = vcombine.low %v4676, %v4683
    %v4685 = vcombine.low %v1393, %v1400
    %v4686 = vcombine.low %v1407, %v1414
    %v4688 = vunpack.c.l.s4 1983009808
    %v4689 = vunpack.c.0.s8 %v4688
    %v4690 = vlaneseq
    %v4691 = vshrl.u32 %v4690, 7
    %v4692 = vsub.s32 %v4689, %v4691
    %v4693 = vrot.slane %v4685, %v4692
    %v4695 = vunpack.c.l.s4 1983009808
    %v4696 = vunpack.c.0.s8 %v4695
    %v4697 = vlaneseq
    %v4698 = vshrl.u32 %v4697, 7
    %v4699 = vsub.s32 %v4696, %v4698
    %v4700 = vrot.slane %v4686, %v4699
    %v4701 = vcombine.low %v4693, %v4700
    %v4702 = vcombine.low %v1421, %v1428
    %v4703 = vcombine.low %v1435, %v1442
    %v4705 = vunpack.c.l.s4 1983009808
    %v4706 = vunpack.c.0.s8 %v4705
    %v4707 = vlaneseq
    %v4708 = vshrl.u32 %v4707, 7
    %v4709 = vsub.s32 %v4706, %v4708
    %v4710 = vrot.slane %v4702, %v4709
    %v4712 = vunpack.c.l.s4 1983009808
    %v4713 = vunpack.c.0.s8 %v4712
    %v4714 = vlaneseq
    %v4715 = vshrl.u32 %v4714, 7
    %v4716 = vsub.s32 %v4713, %v4715
    %v4717 = vrot.slane %v4703, %v4716
    %v4718 = vcombine.low %v4710, %v4717
    %v4719 = vcombine.low %v1449, %v1456
    %v4720 = vcombine.low %v1463, %v1470
    %v4722 = vunpack.c.l.s4 1983009808
    %v4723 = vunpack.c.0.s8 %v4722
    %v4724 = vlaneseq
    %v4725 = vshrl.u32 %v4724, 7
    %v4726 = vsub.s32 %v4723, %v4725
    %v4727 = vrot.slane %v4719, %v4726
    %v4729 = vunpack.c.l.s4 1983009808
    %v4730 = vunpack.c.0.s8 %v4729
    %v4731 = vlaneseq
    %v4732 = vshrl.u32 %v4731, 7
    %v4733 = vsub.s32 %v4730, %v4732
    %v4734 = vrot.slane %v4720, %v4733
    %v4735 = vcombine.low %v4727, %v4734
    %v4736 = vcombine.low %v1477, %v1484
    %v4737 = vcombine.low %v1491, %v1498
    %v4739 = vunpack.c.l.s4 1983009808
    %v4740 = vunpack.c.0.s8 %v4739
    %v4741 = vlaneseq
    %v4742 = vshrl.u32 %v4741, 7
    %v4743 = vsub.s32 %v4740, %v4742
    %v4744 = vrot.slane %v4736, %v4743
    %v4746 = vunpack.c.l.s4 1983009808
    %v4747 = vunpack.c.0.s8 %v4746
    %v4748 = vlaneseq
    %v4749 = vshrl.u32 %v4748, 7
    %v4750 = vsub.s32 %v4747, %v4749
    %v4751 = vrot.slane %v4737, %v4750
    %v4752 = vcombine.low %v4744, %v4751
    %v4753 = vcombine.low %v1505, %v1512
    %v4754 = vcombine.low %v1519, %v1526
    %v4756 = vunpack.c.l.s4 1983009808
    %v4757 = vunpack.c.0.s8 %v4756
    %v4758 = vlaneseq
    %v4759 = vshrl.u32 %v4758, 7
    %v4760 = vsub.s32 %v4757, %v4759
    %v4761 = vrot.slane %v4753, %v4760
    %v4763 = vunpack.c.l.s4 1983009808
    %v4764 = vunpack.c.0.s8 %v4763
    %v4765 = vlaneseq
    %v4766 = vshrl.u32 %v4765, 7
    %v4767 = vsub.s32 %v4764, %v4766
    %v4768 = vrot.slane %v4754, %v4767
    %v4769 = vcombine.low %v4761, %v4768
    %v4770 = vcombine.low %v1533, %v1540
    %v4771 = vcombine.low %v1547, %v1554
    %v4773 = vunpack.c.l.s4 1983009808
    %v4774 = vunpack.c.0.s8 %v4773
    %v4775 = vlaneseq
    %v4776 = vshrl.u32 %v4775, 7
    %v4777 = vsub.s32 %v4774, %v4776
    %v4778 = vrot.slane %v4770, %v4777
    %v4780 = vunpack.c.l.s4 1983009808
    %v4781 = vunpack.c.0.s8 %v4780
    %v4782 = vlaneseq
    %v4783 = vshrl.u32 %v4782, 7
    %v4784 = vsub.s32 %v4781, %v4783
    %v4785 = vrot.slane %v4771, %v4784
    %v4786 = vcombine.low %v4778, %v4785
    %v4787 = vcombine.low %v1561, %v1568
    %v4788 = vcombine.low %v1575, %v1582
    %v4790 = vunpack.c.l.s4 1983009808
    %v4791 = vunpack.c.0.s8 %v4790
    %v4792 = vlaneseq
    %v4793 = vshrl.u32 %v4792, 7
    %v4794 = vsub.s32 %v4791, %v4793
    %v4795 = vrot.slane %v4787, %v4794
    %v4797 = vunpack.c.l.s4 1983009808
    %v4798 = vunpack.c.0.s8 %v4797
    %v4799 = vlaneseq
    %v4800 = vshrl.u32 %v4799, 7
    %v4801 = vsub.s32 %v4798, %v4800
    %v4802 = vrot.slane %v4788, %v4801
    %v4803 = vcombine.low %v4795, %v4802
    %v4804 = vcombine.low %v1589, %v1596
    %v4805 = vcombine.low %v1603, %v1610
    %v4807 = vunpack.c.l.s4 1983009808
    %v4808 = vunpack.c.0.s8 %v4807
    %v4809 = vlaneseq
    %v4810 = vshrl.u32 %v4809, 7
    %v4811 = vsub.s32 %v4808, %v4810
    %v4812 = vrot.slane %v4804, %v4811
    %v4814 = vunpack.c.l.s4 1983009808
    %v4815 = vunpack.c.0.s8 %v4814
    %v4816 = vlaneseq
    %v4817 = vshrl.u32 %v4816, 7
    %v4818 = vsub.s32 %v4815, %v4817
    %v4819 = vrot.slane %v4805, %v4818
    %v4820 = vcombine.low %v4812, %v4819
    %v4821 = vcombine.low %v1617, %v1624
    %v4822 = vcombine.low %v1631, %v1638
    %v4824 = vunpack.c.l.s4 1983009808
    %v4825 = vunpack.c.0.s8 %v4824
    %v4826 = vlaneseq
    %v4827 = vshrl.u32 %v4826, 7
    %v4828 = vsub.s32 %v4825, %v4827
    %v4829 = vrot.slane %v4821, %v4828
    %v4831 = vunpack.c.l.s4 1983009808
    %v4832 = vunpack.c.0.s8 %v4831
    %v4833 = vlaneseq
    %v4834 = vshrl.u32 %v4833, 7
    %v4835 = vsub.s32 %v4832, %v4834
    %v4836 = vrot.slane %v4822, %v4835
    %v4837 = vcombine.low %v4829, %v4836
    %v4838 = vcombine.low %v1645, %v1652
    %v4839 = vcombine.low %v1659, %v1666
    %v4841 = vunpack.c.l.s4 1983009808
    %v4842 = vunpack.c.0.s8 %v4841
    %v4843 = vlaneseq
    %v4844 = vshrl.u32 %v4843, 7
    %v4845 = vsub.s32 %v4842, %v4844
    %v4846 = vrot.slane %v4838, %v4845
    %v4848 = vunpack.c.l.s4 1983009808
    %v4849 = vunpack.c.0.s8 %v4848
    %v4850 = vlaneseq
    %v4851 = vshrl.u32 %v4850, 7
    %v4852 = vsub.s32 %v4849, %v4851
    %v4853 = vrot.slane %v4839, %v4852
    %v4854 = vcombine.low %v4846, %v4853
    %v4855 = vcombine.low %v1673, %v1680
    %v4856 = vcombine.low %v1687, %v1694
    %v4858 = vunpack.c.l.s4 1983009808
    %v4859 = vunpack.c.0.s8 %v4858
    %v4860 = vlaneseq
    %v4861 = vshrl.u32 %v4860, 7
    %v4862 = vsub.s32 %v4859, %v4861
    %v4863 = vrot.slane %v4855, %v4862
    %v4865 = vunpack.c.l.s4 1983009808
    %v4866 = vunpack.c.0.s8 %v4865
    %v4867 = vlaneseq
    %v4868 = vshrl.u32 %v4867, 7
    %v4869 = vsub.s32 %v4866, %v4868
    %v4870 = vrot.slane %v4856, %v4869
    %v4871 = vcombine.low %v4863, %v4870
    %v4872 = vcombine.low %v1701, %v1708
    %v4873 = vcombine.low %v1715, %v1722
    %v4875 = vunpack.c.l.s4 1983009808
    %v4876 = vunpack.c.0.s8 %v4875
    %v4877 = vlaneseq
    %v4878 = vshrl.u32 %v4877, 7
    %v4879 = vsub.s32 %v4876, %v4878
    %v4880 = vrot.slane %v4872, %v4879
    %v4882 = vunpack.c.l.s4 1983009808
    %v4883 = vunpack.c.0.s8 %v4882
    %v4884 = vlaneseq
    %v4885 = vshrl.u32 %v4884, 7
    %v4886 = vsub.s32 %v4883, %v4885
    %v4887 = vrot.slane %v4873, %v4886
    %v4888 = vcombine.low %v4880, %v4887
    %v4889 = vcombine.low %v1729, %v1736
    %v4890 = vcombine.low %v1743, %v1750
    %v4892 = vunpack.c.l.s4 1983009808
    %v4893 = vunpack.c.0.s8 %v4892
    %v4894 = vlaneseq
    %v4895 = vshrl.u32 %v4894, 7
    %v4896 = vsub.s32 %v4893, %v4895
    %v4897 = vrot.slane %v4889, %v4896
    %v4899 = vunpack.c.l.s4 1983009808
    %v4900 = vunpack.c.0.s8 %v4899
    %v4901 = vlaneseq
    %v4902 = vshrl.u32 %v4901, 7
    %v4903 = vsub.s32 %v4900, %v4902
    %v4904 = vrot.slane %v4890, %v4903
    %v4905 = vcombine.low %v4897, %v4904
    %v4906 = vcombine.low %v1757, %v1764
    %v4907 = vcombine.low %v1771, %v1778
    %v4909 = vunpack.c.l.s4 1983009808
    %v4910 = vunpack.c.0.s8 %v4909
    %v4911 = vlaneseq
    %v4912 = vshrl.u32 %v4911, 7
    %v4913 = vsub.s32 %v4910, %v4912
    %v4914 = vrot.slane %v4906, %v4913
    %v4916 = vunpack.c.l.s4 1983009808
    %v4917 = vunpack.c.0.s8 %v4916
    %v4918 = vlaneseq
    %v4919 = vshrl.u32 %v4918, 7
    %v4920 = vsub.s32 %v4917, %v4919
    %v4921 = vrot.slane %v4907, %v4920
    %v4922 = vcombine.low %v4914, %v4921
    %v4923 = vcombine.low %v1785, %v1792
    %v4924 = vcombine.low %v1799, %v1806
    %v4926 = vunpack.c.l.s4 1983009808
    %v4927 = vunpack.c.0.s8 %v4926
    %v4928 = vlaneseq
    %v4929 = vshrl.u32 %v4928, 7
    %v4930 = vsub.s32 %v4927, %v4929
    %v4931 = vrot.slane %v4923, %v4930
    %v4933 = vunpack.c.l.s4 1983009808
    %v4934 = vunpack.c.0.s8 %v4933
    %v4935 = vlaneseq
    %v4936 = vshrl.u32 %v4935, 7
    %v4937 = vsub.s32 %v4934, %v4936
    %v4938 = vrot.slane %v4924, %v4937
    %v4939 = vcombine.low %v4931, %v4938
    %v4940 = vcombine.low %v1813, %v1820
    %v4941 = vcombine.low %v1827, %v1834
    %v4943 = vunpack.c.l.s4 1983009808
    %v4944 = vunpack.c.0.s8 %v4943
    %v4945 = vlaneseq
    %v4946 = vshrl.u32 %v4945, 7
    %v4947 = vsub.s32 %v4944, %v4946
    %v4948 = vrot.slane %v4940, %v4947
    %v4950 = vunpack.c.l.s4 1983009808
    %v4951 = vunpack.c.0.s8 %v4950
    %v4952 = vlaneseq
    %v4953 = vshrl.u32 %v4952, 7
    %v4954 = vsub.s32 %v4951, %v4953
    %v4955 = vrot.slane %v4941, %v4954
    %v4956 = vcombine.low %v4948, %v4955
    %v4957 = vcombine.low %v1841, %v1848
    %v4958 = vcombine.low %v1855, %v1862
    %v4960 = vunpack.c.l.s4 1983009808
    %v4961 = vunpack.c.0.s8 %v4960
    %v4962 = vlaneseq
    %v4963 = vshrl.u32 %v4962, 7
    %v4964 = vsub.s32 %v4961, %v4963
    %v4965 = vrot.slane %v4957, %v4964
    %v4967 = vunpack.c.l.s4 1983009808
    %v4968 = vunpack.c.0.s8 %v4967
    %v4969 = vlaneseq
    %v4970 = vshrl.u32 %v4969, 7
    %v4971 = vsub.s32 %v4968, %v4970
    %v4972 = vrot.slane %v4958, %v4971
    %v4973 = vcombine.low %v4965, %v4972
    %v4974 = vcombine.low %v1869, %v1876
    %v4975 = vcombine.low %v1883, %v1890
    %v4977 = vunpack.c.l.s4 1983009808
    %v4978 = vunpack.c.0.s8 %v4977
    %v4979 = vlaneseq
    %v4980 = vshrl.u32 %v4979, 7
    %v4981 = vsub.s32 %v4978, %v4980
    %v4982 = vrot.slane %v4974, %v4981
    %v4984 = vunpack.c.l.s4 1983009808
    %v4985 = vunpack.c.0.s8 %v4984
    %v4986 = vlaneseq
    %v4987 = vshrl.u32 %v4986, 7
    %v4988 = vsub.s32 %v4985, %v4987
    %v4989 = vrot.slane %v4975, %v4988
    %v4990 = vcombine.low %v4982, %v4989
    %v4991 = vcombine.low %v1897, %v1904
    %v4992 = vcombine.low %v1911, %v1918
    %v4994 = vunpack.c.l.s4 1983009808
    %v4995 = vunpack.c.0.s8 %v4994
    %v4996 = vlaneseq
    %v4997 = vshrl.u32 %v4996, 7
    %v4998 = vsub.s32 %v4995, %v4997
    %v4999 = vrot.slane %v4991, %v4998
    %v5001 = vunpack.c.l.s4 1983009808
    %v5002 = vunpack.c.0.s8 %v5001
    %v5003 = vlaneseq
    %v5004 = vshrl.u32 %v5003, 7
    %v5005 = vsub.s32 %v5002, %v5004
    %v5006 = vrot.slane %v4992, %v5005
    %v5007 = vcombine.low %v4999, %v5006
    %v5008 = vcombine.low %v1925, %v1932
    %v5009 = vcombine.low %v1939, %v1946
    %v5011 = vunpack.c.l.s4 1983009808
    %v5012 = vunpack.c.0.s8 %v5011
    %v5013 = vlaneseq
    %v5014 = vshrl.u32 %v5013, 7
    %v5015 = vsub.s32 %v5012, %v5014
    %v5016 = vrot.slane %v5008, %v5015
    %v5018 = vunpack.c.l.s4 1983009808
    %v5019 = vunpack.c.0.s8 %v5018
    %v5020 = vlaneseq
    %v5021 = vshrl.u32 %v5020, 7
    %v5022 = vsub.s32 %v5019, %v5021
    %v5023 = vrot.slane %v5009, %v5022
    %v5024 = vcombine.low %v5016, %v5023
    %v5025 = vcombine.low %v1953, %v1960
    %v5026 = vcombine.low %v1967, %v1974
    %v5028 = vunpack.c.l.s4 1983009808
    %v5029 = vunpack.c.0.s8 %v5028
    %v5030 = vlaneseq
    %v5031 = vshrl.u32 %v5030, 7
    %v5032 = vsub.s32 %v5029, %v5031
    %v5033 = vrot.slane %v5025, %v5032
    %v5035 = vunpack.c.l.s4 1983009808
    %v5036 = vunpack.c.0.s8 %v5035
    %v5037 = vlaneseq
    %v5038 = vshrl.u32 %v5037, 7
    %v5039 = vsub.s32 %v5036, %v5038
    %v5040 = vrot.slane %v5026, %v5039
    %v5041 = vcombine.low %v5033, %v5040
    %v5042 = vcombine.low %v1981, %v1988
    %v5043 = vcombine.low %v1995, %v2002
    %v5045 = vunpack.c.l.s4 1983009808
    %v5046 = vunpack.c.0.s8 %v5045
    %v5047 = vlaneseq
    %v5048 = vshrl.u32 %v5047, 7
    %v5049 = vsub.s32 %v5046, %v5048
    %v5050 = vrot.slane %v5042, %v5049
    %v5052 = vunpack.c.l.s4 1983009808
    %v5053 = vunpack.c.0.s8 %v5052
    %v5054 = vlaneseq
    %v5055 = vshrl.u32 %v5054, 7
    %v5056 = vsub.s32 %v5053, %v5055
    %v5057 = vrot.slane %v5043, %v5056
    %v5058 = vcombine.low %v5050, %v5057
    %v5059 = vcombine.low %v2009, %v2016
    %v5060 = vcombine.low %v2023, %v2030
    %v5062 = vunpack.c.l.s4 1983009808
    %v5063 = vunpack.c.0.s8 %v5062
    %v5064 = vlaneseq
    %v5065 = vshrl.u32 %v5064, 7
    %v5066 = vsub.s32 %v5063, %v5065
    %v5067 = vrot.slane %v5059, %v5066
    %v5069 = vunpack.c.l.s4 1983009808
    %v5070 = vunpack.c.0.s8 %v5069
    %v5071 = vlaneseq
    %v5072 = vshrl.u32 %v5071, 7
    %v5073 = vsub.s32 %v5070, %v5072
    %v5074 = vrot.slane %v5060, %v5073
    %v5075 = vcombine.low %v5067, %v5074
    %v5076 = vcombine.low %v2037, %v2044
    %v5077 = vcombine.low %v2051, %v2058
    %v5079 = vunpack.c.l.s4 1983009808
    %v5080 = vunpack.c.0.s8 %v5079
    %v5081 = vlaneseq
    %v5082 = vshrl.u32 %v5081, 7
    %v5083 = vsub.s32 %v5080, %v5082
    %v5084 = vrot.slane %v5076, %v5083
    %v5086 = vunpack.c.l.s4 1983009808
    %v5087 = vunpack.c.0.s8 %v5086
    %v5088 = vlaneseq
    %v5089 = vshrl.u32 %v5088, 7
    %v5090 = vsub.s32 %v5087, %v5089
    %v5091 = vrot.slane %v5077, %v5090
    %v5092 = vcombine.low %v5084, %v5091
    %v5093 = vcombine.low %v2065, %v2072
    %v5094 = vcombine.low %v2079, %v2086
    %v5096 = vunpack.c.l.s4 1983009808
    %v5097 = vunpack.c.0.s8 %v5096
    %v5098 = vlaneseq
    %v5099 = vshrl.u32 %v5098, 7
    %v5100 = vsub.s32 %v5097, %v5099
    %v5101 = vrot.slane %v5093, %v5100
    %v5103 = vunpack.c.l.s4 1983009808
    %v5104 = vunpack.c.0.s8 %v5103
    %v5105 = vlaneseq
    %v5106 = vshrl.u32 %v5105, 7
    %v5107 = vsub.s32 %v5104, %v5106
    %v5108 = vrot.slane %v5094, %v5107
    %v5109 = vcombine.low %v5101, %v5108
    %v5110 = vcombine.low %v2093, %v2100
    %v5111 = vcombine.low %v2107, %v2114
    %v5113 = vunpack.c.l.s4 1983009808
    %v5114 = vunpack.c.0.s8 %v5113
    %v5115 = vlaneseq
    %v5116 = vshrl.u32 %v5115, 7
    %v5117 = vsub.s32 %v5114, %v5116
    %v5118 = vrot.slane %v5110, %v5117
    %v5120 = vunpack.c.l.s4 1983009808
    %v5121 = vunpack.c.0.s8 %v5120
    %v5122 = vlaneseq
    %v5123 = vshrl.u32 %v5122, 7
    %v5124 = vsub.s32 %v5121, %v5123
    %v5125 = vrot.slane %v5111, %v5124
    %v5126 = vcombine.low %v5118, %v5125
    %v5127 = vcombine.low %v2121, %v2128
    %v5128 = vcombine.low %v2135, %v2142
    %v5130 = vunpack.c.l.s4 1983009808
    %v5131 = vunpack.c.0.s8 %v5130
    %v5132 = vlaneseq
    %v5133 = vshrl.u32 %v5132, 7
    %v5134 = vsub.s32 %v5131, %v5133
    %v5135 = vrot.slane %v5127, %v5134
    %v5137 = vunpack.c.l.s4 1983009808
    %v5138 = vunpack.c.0.s8 %v5137
    %v5139 = vlaneseq
    %v5140 = vshrl.u32 %v5139, 7
    %v5141 = vsub.s32 %v5138, %v5140
    %v5142 = vrot.slane %v5128, %v5141
    %v5143 = vcombine.low %v5135, %v5142
    %v5144 = vcombine.low %v2149, %v2156
    %v5145 = vcombine.low %v2163, %v2170
    %v5147 = vunpack.c.l.s4 1983009808
    %v5148 = vunpack.c.0.s8 %v5147
    %v5149 = vlaneseq
    %v5150 = vshrl.u32 %v5149, 7
    %v5151 = vsub.s32 %v5148, %v5150
    %v5152 = vrot.slane %v5144, %v5151
    %v5154 = vunpack.c.l.s4 1983009808
    %v5155 = vunpack.c.0.s8 %v5154
    %v5156 = vlaneseq
    %v5157 = vshrl.u32 %v5156, 7
    %v5158 = vsub.s32 %v5155, %v5157
    %v5159 = vrot.slane %v5145, %v5158
    %v5160 = vcombine.low %v5152, %v5159
    %v5161 = vcombine.low %v2177, %v2184
    %v5162 = vcombine.low %v2191, %v2198
    %v5164 = vunpack.c.l.s4 1983009808
    %v5165 = vunpack.c.0.s8 %v5164
    %v5166 = vlaneseq
    %v5167 = vshrl.u32 %v5166, 7
    %v5168 = vsub.s32 %v5165, %v5167
    %v5169 = vrot.slane %v5161, %v5168
    %v5171 = vunpack.c.l.s4 1983009808
    %v5172 = vunpack.c.0.s8 %v5171
    %v5173 = vlaneseq
    %v5174 = vshrl.u32 %v5173, 7
    %v5175 = vsub.s32 %v5172, %v5174
    %v5176 = vrot.slane %v5162, %v5175
    %v5177 = vcombine.low %v5169, %v5176
    %v5178 = vcombine.low %v2205, %v2212
    %v5179 = vcombine.low %v2219, %v2226
    %v5181 = vunpack.c.l.s4 1983009808
    %v5182 = vunpack.c.0.s8 %v5181
    %v5183 = vlaneseq
    %v5184 = vshrl.u32 %v5183, 7
    %v5185 = vsub.s32 %v5182, %v5184
    %v5186 = vrot.slane %v5178, %v5185
    %v5188 = vunpack.c.l.s4 1983009808
    %v5189 = vunpack.c.0.s8 %v5188
    %v5190 = vlaneseq
    %v5191 = vshrl.u32 %v5190, 7
    %v5192 = vsub.s32 %v5189, %v5191
    %v5193 = vrot.slane %v5179, %v5192
    %v5194 = vcombine.low %v5186, %v5193
    %v5195 = vcombine.low %v2233, %v2240
    %v5196 = vcombine.low %v2247, %v2254
    %v5198 = vunpack.c.l.s4 1983009808
    %v5199 = vunpack.c.0.s8 %v5198
    %v5200 = vlaneseq
    %v5201 = vshrl.u32 %v5200, 7
    %v5202 = vsub.s32 %v5199, %v5201
    %v5203 = vrot.slane %v5195, %v5202
    %v5205 = vunpack.c.l.s4 1983009808
    %v5206 = vunpack.c.0.s8 %v5205
    %v5207 = vlaneseq
    %v5208 = vshrl.u32 %v5207, 7
    %v5209 = vsub.s32 %v5206, %v5208
    %v5210 = vrot.slane %v5196, %v5209
    %v5211 = vcombine.low %v5203, %v5210
    %v5212 = vcombine.low %v2261, %v2268
    %v5213 = vcombine.low %v2275, %v2282
    %v5215 = vunpack.c.l.s4 1983009808
    %v5216 = vunpack.c.0.s8 %v5215
    %v5217 = vlaneseq
    %v5218 = vshrl.u32 %v5217, 7
    %v5219 = vsub.s32 %v5216, %v5218
    %v5220 = vrot.slane %v5212, %v5219
    %v5222 = vunpack.c.l.s4 1983009808
    %v5223 = vunpack.c.0.s8 %v5222
    %v5224 = vlaneseq
    %v5225 = vshrl.u32 %v5224, 7
    %v5226 = vsub.s32 %v5223, %v5225
    %v5227 = vrot.slane %v5213, %v5226
    %v5228 = vcombine.low %v5220, %v5227
    %v5229 = vcombine.low %v2289, %v2296
    %v5230 = vcombine.low %v2303, %v2310
    %v5232 = vunpack.c.l.s4 1983009808
    %v5233 = vunpack.c.0.s8 %v5232
    %v5234 = vlaneseq
    %v5235 = vshrl.u32 %v5234, 7
    %v5236 = vsub.s32 %v5233, %v5235
    %v5237 = vrot.slane %v5229, %v5236
    %v5239 = vunpack.c.l.s4 1983009808
    %v5240 = vunpack.c.0.s8 %v5239
    %v5241 = vlaneseq
    %v5242 = vshrl.u32 %v5241, 7
    %v5243 = vsub.s32 %v5240, %v5242
    %v5244 = vrot.slane %v5230, %v5243
    %v5245 = vcombine.low %v5237, %v5244
    %v5246 = vcombine.low %v2317, %v2324
    %v5247 = vcombine.low %v2331, %v2338
    %v5249 = vunpack.c.l.s4 1983009808
    %v5250 = vunpack.c.0.s8 %v5249
    %v5251 = vlaneseq
    %v5252 = vshrl.u32 %v5251, 7
    %v5253 = vsub.s32 %v5250, %v5252
    %v5254 = vrot.slane %v5246, %v5253
    %v5256 = vunpack.c.l.s4 1983009808
    %v5257 = vunpack.c.0.s8 %v5256
    %v5258 = vlaneseq
    %v5259 = vshrl.u32 %v5258, 7
    %v5260 = vsub.s32 %v5257, %v5259
    %v5261 = vrot.slane %v5247, %v5260
    %v5262 = vcombine.low %v5254, %v5261
    %v5263 = vcombine.low %v2345, %v2352
    %v5264 = vcombine.low %v2359, %v2366
    %v5266 = vunpack.c.l.s4 1983009808
    %v5267 = vunpack.c.0.s8 %v5266
    %v5268 = vlaneseq
    %v5269 = vshrl.u32 %v5268, 7
    %v5270 = vsub.s32 %v5267, %v5269
    %v5271 = vrot.slane %v5263, %v5270
    %v5273 = vunpack.c.l.s4 1983009808
    %v5274 = vunpack.c.0.s8 %v5273
    %v5275 = vlaneseq
    %v5276 = vshrl.u32 %v5275, 7
    %v5277 = vsub.s32 %v5274, %v5276
    %v5278 = vrot.slane %v5264, %v5277
    %v5279 = vcombine.low %v5271, %v5278
    %v5280 = vcombine.low %v2373, %v2380
    %v5281 = vcombine.low %v2387, %v2394
    %v5283 = vunpack.c.l.s4 1983009808
    %v5284 = vunpack.c.0.s8 %v5283
    %v5285 = vlaneseq
    %v5286 = vshrl.u32 %v5285, 7
    %v5287 = vsub.s32 %v5284, %v5286
    %v5288 = vrot.slane %v5280, %v5287
    %v5290 = vunpack.c.l.s4 1983009808
    %v5291 = vunpack.c.0.s8 %v5290
    %v5292 = vlaneseq
    %v5293 = vshrl.u32 %v5292, 7
    %v5294 = vsub.s32 %v5291, %v5293
    %v5295 = vrot.slane %v5281, %v5294
    %v5296 = vcombine.low %v5288, %v5295
    %v5297 = vcombine.low %v2401, %v2408
    %v5298 = vcombine.low %v2415, %v2422
    %v5300 = vunpack.c.l.s4 1983009808
    %v5301 = vunpack.c.0.s8 %v5300
    %v5302 = vlaneseq
    %v5303 = vshrl.u32 %v5302, 7
    %v5304 = vsub.s32 %v5301, %v5303
    %v5305 = vrot.slane %v5297, %v5304
    %v5307 = vunpack.c.l.s4 1983009808
    %v5308 = vunpack.c.0.s8 %v5307
    %v5309 = vlaneseq
    %v5310 = vshrl.u32 %v5309, 7
    %v5311 = vsub.s32 %v5308, %v5310
    %v5312 = vrot.slane %v5298, %v5311
    %v5313 = vcombine.low %v5305, %v5312
    %v5314 = vcombine.low %v2429, %v2436
    %v5315 = vcombine.low %v2443, %v2450
    %v5317 = vunpack.c.l.s4 1983009808
    %v5318 = vunpack.c.0.s8 %v5317
    %v5319 = vlaneseq
    %v5320 = vshrl.u32 %v5319, 7
    %v5321 = vsub.s32 %v5318, %v5320
    %v5322 = vrot.slane %v5314, %v5321
    %v5324 = vunpack.c.l.s4 1983009808
    %v5325 = vunpack.c.0.s8 %v5324
    %v5326 = vlaneseq
    %v5327 = vshrl.u32 %v5326, 7
    %v5328 = vsub.s32 %v5325, %v5327
    %v5329 = vrot.slane %v5315, %v5328
    %v5330 = vcombine.low %v5322, %v5329
    %v5331 = vcombine.low %v2457, %v2464
    %v5332 = vcombine.low %v2471, %v2478
    %v5334 = vunpack.c.l.s4 1983009808
    %v5335 = vunpack.c.0.s8 %v5334
    %v5336 = vlaneseq
    %v5337 = vshrl.u32 %v5336, 7
    %v5338 = vsub.s32 %v5335, %v5337
    %v5339 = vrot.slane %v5331, %v5338
    %v5341 = vunpack.c.l.s4 1983009808
    %v5342 = vunpack.c.0.s8 %v5341
    %v5343 = vlaneseq
    %v5344 = vshrl.u32 %v5343, 7
    %v5345 = vsub.s32 %v5342, %v5344
    %v5346 = vrot.slane %v5332, %v5345
    %v5347 = vcombine.low %v5339, %v5346
    %v5348 = vcombine.low %v2485, %v2492
    %v5349 = vcombine.low %v2499, %v2506
    %v5351 = vunpack.c.l.s4 1983009808
    %v5352 = vunpack.c.0.s8 %v5351
    %v5353 = vlaneseq
    %v5354 = vshrl.u32 %v5353, 7
    %v5355 = vsub.s32 %v5352, %v5354
    %v5356 = vrot.slane %v5348, %v5355
    %v5358 = vunpack.c.l.s4 1983009808
    %v5359 = vunpack.c.0.s8 %v5358
    %v5360 = vlaneseq
    %v5361 = vshrl.u32 %v5360, 7
    %v5362 = vsub.s32 %v5359, %v5361
    %v5363 = vrot.slane %v5349, %v5362
    %v5364 = vcombine.low %v5356, %v5363
    %v5365 = vcombine.low %v2513, %v2520
    %v5366 = vcombine.low %v2527, %v2534
    %v5368 = vunpack.c.l.s4 1983009808
    %v5369 = vunpack.c.0.s8 %v5368
    %v5370 = vlaneseq
    %v5371 = vshrl.u32 %v5370, 7
    %v5372 = vsub.s32 %v5369, %v5371
    %v5373 = vrot.slane %v5365, %v5372
    %v5375 = vunpack.c.l.s4 1983009808
    %v5376 = vunpack.c.0.s8 %v5375
    %v5377 = vlaneseq
    %v5378 = vshrl.u32 %v5377, 7
    %v5379 = vsub.s32 %v5376, %v5378
    %v5380 = vrot.slane %v5366, %v5379
    %v5381 = vcombine.low %v5373, %v5380
    %v5382 = vcombine.low %v2541, %v2548
    %v5383 = vcombine.low %v2555, %v2562
    %v5385 = vunpack.c.l.s4 1983009808
    %v5386 = vunpack.c.0.s8 %v5385
    %v5387 = vlaneseq
    %v5388 = vshrl.u32 %v5387, 7
    %v5389 = vsub.s32 %v5386, %v5388
    %v5390 = vrot.slane %v5382, %v5389
    %v5392 = vunpack.c.l.s4 1983009808
    %v5393 = vunpack.c.0.s8 %v5392
    %v5394 = vlaneseq
    %v5395 = vshrl.u32 %v5394, 7
    %v5396 = vsub.s32 %v5393, %v5395
    %v5397 = vrot.slane %v5383, %v5396
    %v5398 = vcombine.low %v5390, %v5397
    %v5399 = vcombine.low %v2569, %v2576
    %v5400 = vcombine.low %v2583, %v2590
    %v5402 = vunpack.c.l.s4 1983009808
    %v5403 = vunpack.c.0.s8 %v5402
    %v5404 = vlaneseq
    %v5405 = vshrl.u32 %v5404, 7
    %v5406 = vsub.s32 %v5403, %v5405
    %v5407 = vrot.slane %v5399, %v5406
    %v5409 = vunpack.c.l.s4 1983009808
    %v5410 = vunpack.c.0.s8 %v5409
    %v5411 = vlaneseq
    %v5412 = vshrl.u32 %v5411, 7
    %v5413 = vsub.s32 %v5410, %v5412
    %v5414 = vrot.slane %v5400, %v5413
    %v5415 = vcombine.low %v5407, %v5414
    %v5416 = vcombine.low %v2597, %v2604
    %v5417 = vcombine.low %v2611, %v2618
    %v5419 = vunpack.c.l.s4 1983009808
    %v5420 = vunpack.c.0.s8 %v5419
    %v5421 = vlaneseq
    %v5422 = vshrl.u32 %v5421, 7
    %v5423 = vsub.s32 %v5420, %v5422
    %v5424 = vrot.slane %v5416, %v5423
    %v5426 = vunpack.c.l.s4 1983009808
    %v5427 = vunpack.c.0.s8 %v5426
    %v5428 = vlaneseq
    %v5429 = vshrl.u32 %v5428, 7
    %v5430 = vsub.s32 %v5427, %v5429
    %v5431 = vrot.slane %v5417, %v5430
    %v5432 = vcombine.low %v5424, %v5431
    %v5433 = vcombine.low %v2625, %v2632
    %v5434 = vcombine.low %v2639, %v2646
    %v5436 = vunpack.c.l.s4 1983009808
    %v5437 = vunpack.c.0.s8 %v5436
    %v5438 = vlaneseq
    %v5439 = vshrl.u32 %v5438, 7
    %v5440 = vsub.s32 %v5437, %v5439
    %v5441 = vrot.slane %v5433, %v5440
    %v5443 = vunpack.c.l.s4 1983009808
    %v5444 = vunpack.c.0.s8 %v5443
    %v5445 = vlaneseq
    %v5446 = vshrl.u32 %v5445, 7
    %v5447 = vsub.s32 %v5444, %v5446
    %v5448 = vrot.slane %v5434, %v5447
    %v5449 = vcombine.low %v5441, %v5448
    %v5450 = vcombine.low %v2653, %v2660
    %v5451 = vcombine.low %v2667, %v2674
    %v5453 = vunpack.c.l.s4 1983009808
    %v5454 = vunpack.c.0.s8 %v5453
    %v5455 = vlaneseq
    %v5456 = vshrl.u32 %v5455, 7
    %v5457 = vsub.s32 %v5454, %v5456
    %v5458 = vrot.slane %v5450, %v5457
    %v5460 = vunpack.c.l.s4 1983009808
    %v5461 = vunpack.c.0.s8 %v5460
    %v5462 = vlaneseq
    %v5463 = vshrl.u32 %v5462, 7
    %v5464 = vsub.s32 %v5461, %v5463
    %v5465 = vrot.slane %v5451, %v5464
    %v5466 = vcombine.low %v5458, %v5465
    %v5467 = vcombine.low %v2681, %v2688
    %v5468 = vcombine.low %v2695, %v2702
    %v5470 = vunpack.c.l.s4 1983009808
    %v5471 = vunpack.c.0.s8 %v5470
    %v5472 = vlaneseq
    %v5473 = vshrl.u32 %v5472, 7
    %v5474 = vsub.s32 %v5471, %v5473
    %v5475 = vrot.slane %v5467, %v5474
    %v5477 = vunpack.c.l.s4 1983009808
    %v5478 = vunpack.c.0.s8 %v5477
    %v5479 = vlaneseq
    %v5480 = vshrl.u32 %v5479, 7
    %v5481 = vsub.s32 %v5478, %v5480
    %v5482 = vrot.slane %v5468, %v5481
    %v5483 = vcombine.low %v5475, %v5482
    %v5484 = vcombine.low %v2709, %v2716
    %v5485 = vcombine.low %v2723, %v2730
    %v5487 = vunpack.c.l.s4 1983009808
    %v5488 = vunpack.c.0.s8 %v5487
    %v5489 = vlaneseq
    %v5490 = vshrl.u32 %v5489, 7
    %v5491 = vsub.s32 %v5488, %v5490
    %v5492 = vrot.slane %v5484, %v5491
    %v5494 = vunpack.c.l.s4 1983009808
    %v5495 = vunpack.c.0.s8 %v5494
    %v5496 = vlaneseq
    %v5497 = vshrl.u32 %v5496, 7
    %v5498 = vsub.s32 %v5495, %v5497
    %v5499 = vrot.slane %v5485, %v5498
    %v5500 = vcombine.low %v5492, %v5499
    %v5501 = vcombine.low %v2737, %v2744
    %v5502 = vcombine.low %v2751, %v2758
    %v5504 = vunpack.c.l.s4 1983009808
    %v5505 = vunpack.c.0.s8 %v5504
    %v5506 = vlaneseq
    %v5507 = vshrl.u32 %v5506, 7
    %v5508 = vsub.s32 %v5505, %v5507
    %v5509 = vrot.slane %v5501, %v5508
    %v5511 = vunpack.c.l.s4 1983009808
    %v5512 = vunpack.c.0.s8 %v5511
    %v5513 = vlaneseq
    %v5514 = vshrl.u32 %v5513, 7
    %v5515 = vsub.s32 %v5512, %v5514
    %v5516 = vrot.slane %v5502, %v5515
    %v5517 = vcombine.low %v5509, %v5516
    %v5518 = vcombine.low %v2765, %v2772
    %v5519 = vcombine.low %v2779, %v2786
    %v5521 = vunpack.c.l.s4 1983009808
    %v5522 = vunpack.c.0.s8 %v5521
    %v5523 = vlaneseq
    %v5524 = vshrl.u32 %v5523, 7
    %v5525 = vsub.s32 %v5522, %v5524
    %v5526 = vrot.slane %v5518, %v5525
    %v5528 = vunpack.c.l.s4 1983009808
    %v5529 = vunpack.c.0.s8 %v5528
    %v5530 = vlaneseq
    %v5531 = vshrl.u32 %v5530, 7
    %v5532 = vsub.s32 %v5529, %v5531
    %v5533 = vrot.slane %v5519, %v5532
    %v5534 = vcombine.low %v5526, %v5533
    %v5535 = vcombine.low %v2793, %v2800
    %v5536 = vcombine.low %v2807, %v2814
    %v5538 = vunpack.c.l.s4 1983009808
    %v5539 = vunpack.c.0.s8 %v5538
    %v5540 = vlaneseq
    %v5541 = vshrl.u32 %v5540, 7
    %v5542 = vsub.s32 %v5539, %v5541
    %v5543 = vrot.slane %v5535, %v5542
    %v5545 = vunpack.c.l.s4 1983009808
    %v5546 = vunpack.c.0.s8 %v5545
    %v5547 = vlaneseq
    %v5548 = vshrl.u32 %v5547, 7
    %v5549 = vsub.s32 %v5546, %v5548
    %v5550 = vrot.slane %v5536, %v5549
    %v5551 = vcombine.low %v5543, %v5550
    %v5552 = vcombine.low %v2821, %v2828
    %v5553 = vcombine.low %v2835, %v2842
    %v5555 = vunpack.c.l.s4 1983009808
    %v5556 = vunpack.c.0.s8 %v5555
    %v5557 = vlaneseq
    %v5558 = vshrl.u32 %v5557, 7
    %v5559 = vsub.s32 %v5556, %v5558
    %v5560 = vrot.slane %v5552, %v5559
    %v5562 = vunpack.c.l.s4 1983009808
    %v5563 = vunpack.c.0.s8 %v5562
    %v5564 = vlaneseq
    %v5565 = vshrl.u32 %v5564, 7
    %v5566 = vsub.s32 %v5563, %v5565
    %v5567 = vrot.slane %v5553, %v5566
    %v5568 = vcombine.low %v5560, %v5567
    %v5569 = vcombine.low %v2849, %v2856
    %v5570 = vcombine.low %v2863, %v2870
    %v5572 = vunpack.c.l.s4 1983009808
    %v5573 = vunpack.c.0.s8 %v5572
    %v5574 = vlaneseq
    %v5575 = vshrl.u32 %v5574, 7
    %v5576 = vsub.s32 %v5573, %v5575
    %v5577 = vrot.slane %v5569, %v5576
    %v5579 = vunpack.c.l.s4 1983009808
    %v5580 = vunpack.c.0.s8 %v5579
    %v5581 = vlaneseq
    %v5582 = vshrl.u32 %v5581, 7
    %v5583 = vsub.s32 %v5580, %v5582
    %v5584 = vrot.slane %v5570, %v5583
    %v5585 = vcombine.low %v5577, %v5584
    %v5586 = vcombine.low %v2877, %v2884
    %v5587 = vcombine.low %v2891, %v2898
    %v5589 = vunpack.c.l.s4 1983009808
    %v5590 = vunpack.c.0.s8 %v5589
    %v5591 = vlaneseq
    %v5592 = vshrl.u32 %v5591, 7
    %v5593 = vsub.s32 %v5590, %v5592
    %v5594 = vrot.slane %v5586, %v5593
    %v5596 = vunpack.c.l.s4 1983009808
    %v5597 = vunpack.c.0.s8 %v5596
    %v5598 = vlaneseq
    %v5599 = vshrl.u32 %v5598, 7
    %v5600 = vsub.s32 %v5597, %v5599
    %v5601 = vrot.slane %v5587, %v5600
    %v5602 = vcombine.low %v5594, %v5601
    %v5603 = vcombine.low %v2905, %v2912
    %v5604 = vcombine.low %v2919, %v2926
    %v5606 = vunpack.c.l.s4 1983009808
    %v5607 = vunpack.c.0.s8 %v5606
    %v5608 = vlaneseq
    %v5609 = vshrl.u32 %v5608, 7
    %v5610 = vsub.s32 %v5607, %v5609
    %v5611 = vrot.slane %v5603, %v5610
    %v5613 = vunpack.c.l.s4 1983009808
    %v5614 = vunpack.c.0.s8 %v5613
    %v5615 = vlaneseq
    %v5616 = vshrl.u32 %v5615, 7
    %v5617 = vsub.s32 %v5614, %v5616
    %v5618 = vrot.slane %v5604, %v5617
    %v5619 = vcombine.low %v5611, %v5618
    %v5620 = vcombine.low %v2933, %v2940
    %v5621 = vcombine.low %v2947, %v2954
    %v5623 = vunpack.c.l.s4 1983009808
    %v5624 = vunpack.c.0.s8 %v5623
    %v5625 = vlaneseq
    %v5626 = vshrl.u32 %v5625, 7
    %v5627 = vsub.s32 %v5624, %v5626
    %v5628 = vrot.slane %v5620, %v5627
    %v5630 = vunpack.c.l.s4 1983009808
    %v5631 = vunpack.c.0.s8 %v5630
    %v5632 = vlaneseq
    %v5633 = vshrl.u32 %v5632, 7
    %v5634 = vsub.s32 %v5631, %v5633
    %v5635 = vrot.slane %v5621, %v5634
    %v5636 = vcombine.low %v5628, %v5635
    %v5637 = vcombine.low %v2961, %v2968
    %v5638 = vcombine.low %v2975, %v2982
    %v5640 = vunpack.c.l.s4 1983009808
    %v5641 = vunpack.c.0.s8 %v5640
    %v5642 = vlaneseq
    %v5643 = vshrl.u32 %v5642, 7
    %v5644 = vsub.s32 %v5641, %v5643
    %v5645 = vrot.slane %v5637, %v5644
    %v5647 = vunpack.c.l.s4 1983009808
    %v5648 = vunpack.c.0.s8 %v5647
    %v5649 = vlaneseq
    %v5650 = vshrl.u32 %v5649, 7
    %v5651 = vsub.s32 %v5648, %v5650
    %v5652 = vrot.slane %v5638, %v5651
    %v5653 = vcombine.low %v5645, %v5652
    %v5654 = vcombine.low %v2989, %v2996
    %v5655 = vcombine.low %v3003, %v3010
    %v5657 = vunpack.c.l.s4 1983009808
    %v5658 = vunpack.c.0.s8 %v5657
    %v5659 = vlaneseq
    %v5660 = vshrl.u32 %v5659, 7
    %v5661 = vsub.s32 %v5658, %v5660
    %v5662 = vrot.slane %v5654, %v5661
    %v5664 = vunpack.c.l.s4 1983009808
    %v5665 = vunpack.c.0.s8 %v5664
    %v5666 = vlaneseq
    %v5667 = vshrl.u32 %v5666, 7
    %v5668 = vsub.s32 %v5665, %v5667
    %v5669 = vrot.slane %v5655, %v5668
    %v5670 = vcombine.low %v5662, %v5669
    %v5671 = vcombine.low %v3017, %v3024
    %v5672 = vcombine.low %v3031, %v3038
    %v5674 = vunpack.c.l.s4 1983009808
    %v5675 = vunpack.c.0.s8 %v5674
    %v5676 = vlaneseq
    %v5677 = vshrl.u32 %v5676, 7
    %v5678 = vsub.s32 %v5675, %v5677
    %v5679 = vrot.slane %v5671, %v5678
    %v5681 = vunpack.c.l.s4 1983009808
    %v5682 = vunpack.c.0.s8 %v5681
    %v5683 = vlaneseq
    %v5684 = vshrl.u32 %v5683, 7
    %v5685 = vsub.s32 %v5682, %v5684
    %v5686 = vrot.slane %v5672, %v5685
    %v5687 = vcombine.low %v5679, %v5686
    %v5688 = vcombine.low %v3045, %v3052
    %v5689 = vcombine.low %v3059, %v3066
    %v5691 = vunpack.c.l.s4 1983009808
    %v5692 = vunpack.c.0.s8 %v5691
    %v5693 = vlaneseq
    %v5694 = vshrl.u32 %v5693, 7
    %v5695 = vsub.s32 %v5692, %v5694
    %v5696 = vrot.slane %v5688, %v5695
    %v5698 = vunpack.c.l.s4 1983009808
    %v5699 = vunpack.c.0.s8 %v5698
    %v5700 = vlaneseq
    %v5701 = vshrl.u32 %v5700, 7
    %v5702 = vsub.s32 %v5699, %v5701
    %v5703 = vrot.slane %v5689, %v5702
    %v5704 = vcombine.low %v5696, %v5703
    %v5705 = vcombine.low %v3073, %v3080
    %v5706 = vcombine.low %v3087, %v3094
    %v5708 = vunpack.c.l.s4 1983009808
    %v5709 = vunpack.c.0.s8 %v5708
    %v5710 = vlaneseq
    %v5711 = vshrl.u32 %v5710, 7
    %v5712 = vsub.s32 %v5709, %v5711
    %v5713 = vrot.slane %v5705, %v5712
    %v5715 = vunpack.c.l.s4 1983009808
    %v5716 = vunpack.c.0.s8 %v5715
    %v5717 = vlaneseq
    %v5718 = vshrl.u32 %v5717, 7
    %v5719 = vsub.s32 %v5716, %v5718
    %v5720 = vrot.slane %v5706, %v5719
    %v5721 = vcombine.low %v5713, %v5720
    %v5722 = vcombine.low %v3101, %v3108
    %v5723 = vcombine.low %v3115, %v3122
    %v5725 = vunpack.c.l.s4 1983009808
    %v5726 = vunpack.c.0.s8 %v5725
    %v5727 = vlaneseq
    %v5728 = vshrl.u32 %v5727, 7
    %v5729 = vsub.s32 %v5726, %v5728
    %v5730 = vrot.slane %v5722, %v5729
    %v5732 = vunpack.c.l.s4 1983009808
    %v5733 = vunpack.c.0.s8 %v5732
    %v5734 = vlaneseq
    %v5735 = vshrl.u32 %v5734, 7
    %v5736 = vsub.s32 %v5733, %v5735
    %v5737 = vrot.slane %v5723, %v5736
    %v5738 = vcombine.low %v5730, %v5737
    %v5739 = vcombine.low %v3129, %v3136
    %v5740 = vcombine.low %v3143, %v3150
    %v5742 = vunpack.c.l.s4 1983009808
    %v5743 = vunpack.c.0.s8 %v5742
    %v5744 = vlaneseq
    %v5745 = vshrl.u32 %v5744, 7
    %v5746 = vsub.s32 %v5743, %v5745
    %v5747 = vrot.slane %v5739, %v5746
    %v5749 = vunpack.c.l.s4 1983009808
    %v5750 = vunpack.c.0.s8 %v5749
    %v5751 = vlaneseq
    %v5752 = vshrl.u32 %v5751, 7
    %v5753 = vsub.s32 %v5750, %v5752
    %v5754 = vrot.slane %v5740, %v5753
    %v5755 = vcombine.low %v5747, %v5754
    %v5756 = vcombine.low %v3157, %v3164
    %v5757 = vcombine.low %v3171, %v3178
    %v5759 = vunpack.c.l.s4 1983009808
    %v5760 = vunpack.c.0.s8 %v5759
    %v5761 = vlaneseq
    %v5762 = vshrl.u32 %v5761, 7
    %v5763 = vsub.s32 %v5760, %v5762
    %v5764 = vrot.slane %v5756, %v5763
    %v5766 = vunpack.c.l.s4 1983009808
    %v5767 = vunpack.c.0.s8 %v5766
    %v5768 = vlaneseq
    %v5769 = vshrl.u32 %v5768, 7
    %v5770 = vsub.s32 %v5767, %v5769
    %v5771 = vrot.slane %v5757, %v5770
    %v5772 = vcombine.low %v5764, %v5771
    %v5773 = vcombine.low %v3185, %v3192
    %v5774 = vcombine.low %v3199, %v3206
    %v5776 = vunpack.c.l.s4 1983009808
    %v5777 = vunpack.c.0.s8 %v5776
    %v5778 = vlaneseq
    %v5779 = vshrl.u32 %v5778, 7
    %v5780 = vsub.s32 %v5777, %v5779
    %v5781 = vrot.slane %v5773, %v5780
    %v5783 = vunpack.c.l.s4 1983009808
    %v5784 = vunpack.c.0.s8 %v5783
    %v5785 = vlaneseq
    %v5786 = vshrl.u32 %v5785, 7
    %v5787 = vsub.s32 %v5784, %v5786
    %v5788 = vrot.slane %v5774, %v5787
    %v5789 = vcombine.low %v5781, %v5788
    %v5790 = vcombine.low %v3213, %v3220
    %v5791 = vcombine.low %v3227, %v3234
    %v5793 = vunpack.c.l.s4 1983009808
    %v5794 = vunpack.c.0.s8 %v5793
    %v5795 = vlaneseq
    %v5796 = vshrl.u32 %v5795, 7
    %v5797 = vsub.s32 %v5794, %v5796
    %v5798 = vrot.slane %v5790, %v5797
    %v5800 = vunpack.c.l.s4 1983009808
    %v5801 = vunpack.c.0.s8 %v5800
    %v5802 = vlaneseq
    %v5803 = vshrl.u32 %v5802, 7
    %v5804 = vsub.s32 %v5801, %v5803
    %v5805 = vrot.slane %v5791, %v5804
    %v5806 = vcombine.low %v5798, %v5805
    %v5807 = vcombine.low %v3241, %v3248
    %v5808 = vcombine.low %v3255, %v3262
    %v5810 = vunpack.c.l.s4 1983009808
    %v5811 = vunpack.c.0.s8 %v5810
    %v5812 = vlaneseq
    %v5813 = vshrl.u32 %v5812, 7
    %v5814 = vsub.s32 %v5811, %v5813
    %v5815 = vrot.slane %v5807, %v5814
    %v5817 = vunpack.c.l.s4 1983009808
    %v5818 = vunpack.c.0.s8 %v5817
    %v5819 = vlaneseq
    %v5820 = vshrl.u32 %v5819, 7
    %v5821 = vsub.s32 %v5818, %v5820
    %v5822 = vrot.slane %v5808, %v5821
    %v5823 = vcombine.low %v5815, %v5822
    %v5824 = vcombine.low %v3269, %v3276
    %v5825 = vcombine.low %v3283, %v3290
    %v5827 = vunpack.c.l.s4 1983009808
    %v5828 = vunpack.c.0.s8 %v5827
    %v5829 = vlaneseq
    %v5830 = vshrl.u32 %v5829, 7
    %v5831 = vsub.s32 %v5828, %v5830
    %v5832 = vrot.slane %v5824, %v5831
    %v5834 = vunpack.c.l.s4 1983009808
    %v5835 = vunpack.c.0.s8 %v5834
    %v5836 = vlaneseq
    %v5837 = vshrl.u32 %v5836, 7
    %v5838 = vsub.s32 %v5835, %v5837
    %v5839 = vrot.slane %v5825, %v5838
    %v5840 = vcombine.low %v5832, %v5839
    %v5841 = vcombine.low %v3297, %v3304
    %v5842 = vcombine.low %v3311, %v3318
    %v5844 = vunpack.c.l.s4 1983009808
    %v5845 = vunpack.c.0.s8 %v5844
    %v5846 = vlaneseq
    %v5847 = vshrl.u32 %v5846, 7
    %v5848 = vsub.s32 %v5845, %v5847
    %v5849 = vrot.slane %v5841, %v5848
    %v5851 = vunpack.c.l.s4 1983009808
    %v5852 = vunpack.c.0.s8 %v5851
    %v5853 = vlaneseq
    %v5854 = vshrl.u32 %v5853, 7
    %v5855 = vsub.s32 %v5852, %v5854
    %v5856 = vrot.slane %v5842, %v5855
    %v5857 = vcombine.low %v5849, %v5856
    %v5858 = vcombine.low %v3325, %v3332
    %v5859 = vcombine.low %v3339, %v3346
    %v5861 = vunpack.c.l.s4 1983009808
    %v5862 = vunpack.c.0.s8 %v5861
    %v5863 = vlaneseq
    %v5864 = vshrl.u32 %v5863, 7
    %v5865 = vsub.s32 %v5862, %v5864
    %v5866 = vrot.slane %v5858, %v5865
    %v5868 = vunpack.c.l.s4 1983009808
    %v5869 = vunpack.c.0.s8 %v5868
    %v5870 = vlaneseq
    %v5871 = vshrl.u32 %v5870, 7
    %v5872 = vsub.s32 %v5869, %v5871
    %v5873 = vrot.slane %v5859, %v5872
    %v5874 = vcombine.low %v5866, %v5873
    %v5875 = vcombine.low %v3353, %v3360
    %v5876 = vcombine.low %v3367, %v3374
    %v5878 = vunpack.c.l.s4 1983009808
    %v5879 = vunpack.c.0.s8 %v5878
    %v5880 = vlaneseq
    %v5881 = vshrl.u32 %v5880, 7
    %v5882 = vsub.s32 %v5879, %v5881
    %v5883 = vrot.slane %v5875, %v5882
    %v5885 = vunpack.c.l.s4 1983009808
    %v5886 = vunpack.c.0.s8 %v5885
    %v5887 = vlaneseq
    %v5888 = vshrl.u32 %v5887, 7
    %v5889 = vsub.s32 %v5886, %v5888
    %v5890 = vrot.slane %v5876, %v5889
    %v5891 = vcombine.low %v5883, %v5890
    %v5892 = vcombine.low %v3381, %v3388
    %v5893 = vcombine.low %v3395, %v3402
    %v5895 = vunpack.c.l.s4 1983009808
    %v5896 = vunpack.c.0.s8 %v5895
    %v5897 = vlaneseq
    %v5898 = vshrl.u32 %v5897, 7
    %v5899 = vsub.s32 %v5896, %v5898
    %v5900 = vrot.slane %v5892, %v5899
    %v5902 = vunpack.c.l.s4 1983009808
    %v5903 = vunpack.c.0.s8 %v5902
    %v5904 = vlaneseq
    %v5905 = vshrl.u32 %v5904, 7
    %v5906 = vsub.s32 %v5903, %v5905
    %v5907 = vrot.slane %v5893, %v5906
    %v5908 = vcombine.low %v5900, %v5907
    %v5909 = vcombine.low %v3409, %v3416
    %v5910 = vcombine.low %v3423, %v3430
    %v5912 = vunpack.c.l.s4 1983009808
    %v5913 = vunpack.c.0.s8 %v5912
    %v5914 = vlaneseq
    %v5915 = vshrl.u32 %v5914, 7
    %v5916 = vsub.s32 %v5913, %v5915
    %v5917 = vrot.slane %v5909, %v5916
    %v5919 = vunpack.c.l.s4 1983009808
    %v5920 = vunpack.c.0.s8 %v5919
    %v5921 = vlaneseq
    %v5922 = vshrl.u32 %v5921, 7
    %v5923 = vsub.s32 %v5920, %v5922
    %v5924 = vrot.slane %v5910, %v5923
    %v5925 = vcombine.low %v5917, %v5924
    %v5926 = vcombine.low %v3437, %v3444
    %v5927 = vcombine.low %v3451, %v3458
    %v5929 = vunpack.c.l.s4 1983009808
    %v5930 = vunpack.c.0.s8 %v5929
    %v5931 = vlaneseq
    %v5932 = vshrl.u32 %v5931, 7
    %v5933 = vsub.s32 %v5930, %v5932
    %v5934 = vrot.slane %v5926, %v5933
    %v5936 = vunpack.c.l.s4 1983009808
    %v5937 = vunpack.c.0.s8 %v5936
    %v5938 = vlaneseq
    %v5939 = vshrl.u32 %v5938, 7
    %v5940 = vsub.s32 %v5937, %v5939
    %v5941 = vrot.slane %v5927, %v5940
    %v5942 = vcombine.low %v5934, %v5941
    %v5943 = vcombine.low %v3465, %v3472
    %v5944 = vcombine.low %v3479, %v3486
    %v5946 = vunpack.c.l.s4 1983009808
    %v5947 = vunpack.c.0.s8 %v5946
    %v5948 = vlaneseq
    %v5949 = vshrl.u32 %v5948, 7
    %v5950 = vsub.s32 %v5947, %v5949
    %v5951 = vrot.slane %v5943, %v5950
    %v5953 = vunpack.c.l.s4 1983009808
    %v5954 = vunpack.c.0.s8 %v5953
    %v5955 = vlaneseq
    %v5956 = vshrl.u32 %v5955, 7
    %v5957 = vsub.s32 %v5954, %v5956
    %v5958 = vrot.slane %v5944, %v5957
    %v5959 = vcombine.low %v5951, %v5958
    %v5960 = vcombine.low %v3493, %v3500
    %v5961 = vcombine.low %v3507, %v3514
    %v5963 = vunpack.c.l.s4 1983009808
    %v5964 = vunpack.c.0.s8 %v5963
    %v5965 = vlaneseq
    %v5966 = vshrl.u32 %v5965, 7
    %v5967 = vsub.s32 %v5964, %v5966
    %v5968 = vrot.slane %v5960, %v5967
    %v5970 = vunpack.c.l.s4 1983009808
    %v5971 = vunpack.c.0.s8 %v5970
    %v5972 = vlaneseq
    %v5973 = vshrl.u32 %v5972, 7
    %v5974 = vsub.s32 %v5971, %v5973
    %v5975 = vrot.slane %v5961, %v5974
    %v5976 = vcombine.low %v5968, %v5975
    %v5977 = vcombine.low %v3521, %v3528
    %v5978 = vcombine.low %v3535, %v3542
    %v5980 = vunpack.c.l.s4 1983009808
    %v5981 = vunpack.c.0.s8 %v5980
    %v5982 = vlaneseq
    %v5983 = vshrl.u32 %v5982, 7
    %v5984 = vsub.s32 %v5981, %v5983
    %v5985 = vrot.slane %v5977, %v5984
    %v5987 = vunpack.c.l.s4 1983009808
    %v5988 = vunpack.c.0.s8 %v5987
    %v5989 = vlaneseq
    %v5990 = vshrl.u32 %v5989, 7
    %v5991 = vsub.s32 %v5988, %v5990
    %v5992 = vrot.slane %v5978, %v5991
    %v5993 = vcombine.low %v5985, %v5992
    %v5994 = vcombine.low %v3549, %v3556
    %v5995 = vcombine.low %v3563, %v3570
    %v5997 = vunpack.c.l.s4 1983009808
    %v5998 = vunpack.c.0.s8 %v5997
    %v5999 = vlaneseq
    %v6000 = vshrl.u32 %v5999, 7
    %v6001 = vsub.s32 %v5998, %v6000
    %v6002 = vrot.slane %v5994, %v6001
    %v6004 = vunpack.c.l.s4 1983009808
    %v6005 = vunpack.c.0.s8 %v6004
    %v6006 = vlaneseq
    %v6007 = vshrl.u32 %v6006, 7
    %v6008 = vsub.s32 %v6005, %v6007
    %v6009 = vrot.slane %v5995, %v6008
    %v6010 = vcombine.low %v6002, %v6009
    %v6011 = vcombine.low %v3577, %v3584
    %v6012 = vcombine.low %v3591, %v3598
    %v6014 = vunpack.c.l.s4 1983009808
    %v6015 = vunpack.c.0.s8 %v6014
    %v6016 = vlaneseq
    %v6017 = vshrl.u32 %v6016, 7
    %v6018 = vsub.s32 %v6015, %v6017
    %v6019 = vrot.slane %v6011, %v6018
    %v6021 = vunpack.c.l.s4 1983009808
    %v6022 = vunpack.c.0.s8 %v6021
    %v6023 = vlaneseq
    %v6024 = vshrl.u32 %v6023, 7
    %v6025 = vsub.s32 %v6022, %v6024
    %v6026 = vrot.slane %v6012, %v6025
    %v6027 = vcombine.low %v6019, %v6026
    %v6028 = vcombine.low %v3605, %v3612
    %v6029 = vcombine.low %v3619, %v3626
    %v6031 = vunpack.c.l.s4 1983009808
    %v6032 = vunpack.c.0.s8 %v6031
    %v6033 = vlaneseq
    %v6034 = vshrl.u32 %v6033, 7
    %v6035 = vsub.s32 %v6032, %v6034
    %v6036 = vrot.slane %v6028, %v6035
    %v6038 = vunpack.c.l.s4 1983009808
    %v6039 = vunpack.c.0.s8 %v6038
    %v6040 = vlaneseq
    %v6041 = vshrl.u32 %v6040, 7
    %v6042 = vsub.s32 %v6039, %v6041
    %v6043 = vrot.slane %v6029, %v6042
    %v6044 = vcombine.low %v6036, %v6043
    %v6045 = vcombine.low %v3633, %v3640
    %v6046 = vcombine.low %v3647, %v3654
    %v6048 = vunpack.c.l.s4 1983009808
    %v6049 = vunpack.c.0.s8 %v6048
    %v6050 = vlaneseq
    %v6051 = vshrl.u32 %v6050, 7
    %v6052 = vsub.s32 %v6049, %v6051
    %v6053 = vrot.slane %v6045, %v6052
    %v6055 = vunpack.c.l.s4 1983009808
    %v6056 = vunpack.c.0.s8 %v6055
    %v6057 = vlaneseq
    %v6058 = vshrl.u32 %v6057, 7
    %v6059 = vsub.s32 %v6056, %v6058
    %v6060 = vrot.slane %v6046, %v6059
    %v6061 = vcombine.low %v6053, %v6060
    %v6062 = vcombine.low %v3661, %v3668
    %v6063 = vcombine.low %v3675, %v3682
    %v6065 = vunpack.c.l.s4 1983009808
    %v6066 = vunpack.c.0.s8 %v6065
    %v6067 = vlaneseq
    %v6068 = vshrl.u32 %v6067, 7
    %v6069 = vsub.s32 %v6066, %v6068
    %v6070 = vrot.slane %v6062, %v6069
    %v6072 = vunpack.c.l.s4 1983009808
    %v6073 = vunpack.c.0.s8 %v6072
    %v6074 = vlaneseq
    %v6075 = vshrl.u32 %v6074, 7
    %v6076 = vsub.s32 %v6073, %v6075
    %v6077 = vrot.slane %v6063, %v6076
    %v6078 = vcombine.low %v6070, %v6077
    %v6079 = vcombine.low %v3689, %v3696
    %v6080 = vcombine.low %v3703, %v3710
    %v6082 = vunpack.c.l.s4 1983009808
    %v6083 = vunpack.c.0.s8 %v6082
    %v6084 = vlaneseq
    %v6085 = vshrl.u32 %v6084, 7
    %v6086 = vsub.s32 %v6083, %v6085
    %v6087 = vrot.slane %v6079, %v6086
    %v6089 = vunpack.c.l.s4 1983009808
    %v6090 = vunpack.c.0.s8 %v6089
    %v6091 = vlaneseq
    %v6092 = vshrl.u32 %v6091, 7
    %v6093 = vsub.s32 %v6090, %v6092
    %v6094 = vrot.slane %v6080, %v6093
    %v6095 = vcombine.low %v6087, %v6094
    %v6096 = vcombine.low %v3717, %v3724
    %v6097 = vcombine.low %v3731, %v3738
    %v6099 = vunpack.c.l.s4 1983009808
    %v6100 = vunpack.c.0.s8 %v6099
    %v6101 = vlaneseq
    %v6102 = vshrl.u32 %v6101, 7
    %v6103 = vsub.s32 %v6100, %v6102
    %v6104 = vrot.slane %v6096, %v6103
    %v6106 = vunpack.c.l.s4 1983009808
    %v6107 = vunpack.c.0.s8 %v6106
    %v6108 = vlaneseq
    %v6109 = vshrl.u32 %v6108, 7
    %v6110 = vsub.s32 %v6107, %v6109
    %v6111 = vrot.slane %v6097, %v6110
    %v6112 = vcombine.low %v6104, %v6111
    %v6113 = vcombine.low %v3745, %v3752
    %v6114 = vcombine.low %v3759, %v3766
    %v6116 = vunpack.c.l.s4 1983009808
    %v6117 = vunpack.c.0.s8 %v6116
    %v6118 = vlaneseq
    %v6119 = vshrl.u32 %v6118, 7
    %v6120 = vsub.s32 %v6117, %v6119
    %v6121 = vrot.slane %v6113, %v6120
    %v6123 = vunpack.c.l.s4 1983009808
    %v6124 = vunpack.c.0.s8 %v6123
    %v6125 = vlaneseq
    %v6126 = vshrl.u32 %v6125, 7
    %v6127 = vsub.s32 %v6124, %v6126
    %v6128 = vrot.slane %v6114, %v6127
    %v6129 = vcombine.low %v6121, %v6128
    %v6130 = vcombine.low %v3773, %v3780
    %v6131 = vcombine.low %v3787, %v3794
    %v6133 = vunpack.c.l.s4 1983009808
    %v6134 = vunpack.c.0.s8 %v6133
    %v6135 = vlaneseq
    %v6136 = vshrl.u32 %v6135, 7
    %v6137 = vsub.s32 %v6134, %v6136
    %v6138 = vrot.slane %v6130, %v6137
    %v6140 = vunpack.c.l.s4 1983009808
    %v6141 = vunpack.c.0.s8 %v6140
    %v6142 = vlaneseq
    %v6143 = vshrl.u32 %v6142, 7
    %v6144 = vsub.s32 %v6141, %v6143
    %v6145 = vrot.slane %v6131, %v6144
    %v6146 = vcombine.low %v6138, %v6145
    %v6147 = vcombine.low %v3801, %v3808
    %v6148 = vcombine.low %v3815, %v3822
    %v6150 = vunpack.c.l.s4 1983009808
    %v6151 = vunpack.c.0.s8 %v6150
    %v6152 = vlaneseq
    %v6153 = vshrl.u32 %v6152, 7
    %v6154 = vsub.s32 %v6151, %v6153
    %v6155 = vrot.slane %v6147, %v6154
    %v6157 = vunpack.c.l.s4 1983009808
    %v6158 = vunpack.c.0.s8 %v6157
    %v6159 = vlaneseq
    %v6160 = vshrl.u32 %v6159, 7
    %v6161 = vsub.s32 %v6158, %v6160
    %v6162 = vrot.slane %v6148, %v6161
    %v6163 = vcombine.low %v6155, %v6162
    %v6164 = vcombine.low %v3829, %v3836
    %v6165 = vcombine.low %v3843, %v3850
    %v6167 = vunpack.c.l.s4 1983009808
    %v6168 = vunpack.c.0.s8 %v6167
    %v6169 = vlaneseq
    %v6170 = vshrl.u32 %v6169, 7
    %v6171 = vsub.s32 %v6168, %v6170
    %v6172 = vrot.slane %v6164, %v6171
    %v6174 = vunpack.c.l.s4 1983009808
    %v6175 = vunpack.c.0.s8 %v6174
    %v6176 = vlaneseq
    %v6177 = vshrl.u32 %v6176, 7
    %v6178 = vsub.s32 %v6175, %v6177
    %v6179 = vrot.slane %v6165, %v6178
    %v6180 = vcombine.low %v6172, %v6179
    %v6181 = vcombine.low %v3857, %v3864
    %v6182 = vcombine.low %v3871, %v3878
    %v6184 = vunpack.c.l.s4 1983009808
    %v6185 = vunpack.c.0.s8 %v6184
    %v6186 = vlaneseq
    %v6187 = vshrl.u32 %v6186, 7
    %v6188 = vsub.s32 %v6185, %v6187
    %v6189 = vrot.slane %v6181, %v6188
    %v6191 = vunpack.c.l.s4 1983009808
    %v6192 = vunpack.c.0.s8 %v6191
    %v6193 = vlaneseq
    %v6194 = vshrl.u32 %v6193, 7
    %v6195 = vsub.s32 %v6192, %v6194
    %v6196 = vrot.slane %v6182, %v6195
    %v6197 = vcombine.low %v6189, %v6196
    %v6198 = vcombine.low %v3885, %v3892
    %v6199 = vcombine.low %v3899, %v3906
    %v6201 = vunpack.c.l.s4 1983009808
    %v6202 = vunpack.c.0.s8 %v6201
    %v6203 = vlaneseq
    %v6204 = vshrl.u32 %v6203, 7
    %v6205 = vsub.s32 %v6202, %v6204
    %v6206 = vrot.slane %v6198, %v6205
    %v6208 = vunpack.c.l.s4 1983009808
    %v6209 = vunpack.c.0.s8 %v6208
    %v6210 = vlaneseq
    %v6211 = vshrl.u32 %v6210, 7
    %v6212 = vsub.s32 %v6209, %v6211
    %v6213 = vrot.slane %v6199, %v6212
    %v6214 = vcombine.low %v6206, %v6213
    %v6215 = vcombine.low %v3913, %v3920
    %v6216 = vcombine.low %v3927, %v3934
    %v6218 = vunpack.c.l.s4 1983009808
    %v6219 = vunpack.c.0.s8 %v6218
    %v6220 = vlaneseq
    %v6221 = vshrl.u32 %v6220, 7
    %v6222 = vsub.s32 %v6219, %v6221
    %v6223 = vrot.slane %v6215, %v6222
    %v6225 = vunpack.c.l.s4 1983009808
    %v6226 = vunpack.c.0.s8 %v6225
    %v6227 = vlaneseq
    %v6228 = vshrl.u32 %v6227, 7
    %v6229 = vsub.s32 %v6226, %v6228
    %v6230 = vrot.slane %v6216, %v6229
    %v6231 = vcombine.low %v6223, %v6230
    %v6232 = vcombine.low %v3941, %v3948
    %v6233 = vcombine.low %v3955, %v3962
    %v6235 = vunpack.c.l.s4 1983009808
    %v6236 = vunpack.c.0.s8 %v6235
    %v6237 = vlaneseq
    %v6238 = vshrl.u32 %v6237, 7
    %v6239 = vsub.s32 %v6236, %v6238
    %v6240 = vrot.slane %v6232, %v6239
    %v6242 = vunpack.c.l.s4 1983009808
    %v6243 = vunpack.c.0.s8 %v6242
    %v6244 = vlaneseq
    %v6245 = vshrl.u32 %v6244, 7
    %v6246 = vsub.s32 %v6243, %v6245
    %v6247 = vrot.slane %v6233, %v6246
    %v6248 = vcombine.low %v6240, %v6247
    %v6249 = vcombine.low %v3969, %v3976
    %v6250 = vcombine.low %v3983, %v3990
    %v6252 = vunpack.c.l.s4 1983009808
    %v6253 = vunpack.c.0.s8 %v6252
    %v6254 = vlaneseq
    %v6255 = vshrl.u32 %v6254, 7
    %v6256 = vsub.s32 %v6253, %v6255
    %v6257 = vrot.slane %v6249, %v6256
    %v6259 = vunpack.c.l.s4 1983009808
    %v6260 = vunpack.c.0.s8 %v6259
    %v6261 = vlaneseq
    %v6262 = vshrl.u32 %v6261, 7
    %v6263 = vsub.s32 %v6260, %v6262
    %v6264 = vrot.slane %v6250, %v6263
    %v6265 = vcombine.low %v6257, %v6264
    %v6266 = vcombine.low %v3997, %v4004
    %v6267 = vcombine.low %v4011, %v4018
    %v6269 = vunpack.c.l.s4 1983009808
    %v6270 = vunpack.c.0.s8 %v6269
    %v6271 = vlaneseq
    %v6272 = vshrl.u32 %v6271, 7
    %v6273 = vsub.s32 %v6270, %v6272
    %v6274 = vrot.slane %v6266, %v6273
    %v6276 = vunpack.c.l.s4 1983009808
    %v6277 = vunpack.c.0.s8 %v6276
    %v6278 = vlaneseq
    %v6279 = vshrl.u32 %v6278, 7
    %v6280 = vsub.s32 %v6277, %v6279
    %v6281 = vrot.slane %v6267, %v6280
    %v6282 = vcombine.low %v6274, %v6281
    %v6283 = vcombine.low %v4025, %v4032
    %v6284 = vcombine.low %v4039, %v4046
    %v6286 = vunpack.c.l.s4 1983009808
    %v6287 = vunpack.c.0.s8 %v6286
    %v6288 = vlaneseq
    %v6289 = vshrl.u32 %v6288, 7
    %v6290 = vsub.s32 %v6287, %v6289
    %v6291 = vrot.slane %v6283, %v6290
    %v6293 = vunpack.c.l.s4 1983009808
    %v6294 = vunpack.c.0.s8 %v6293
    %v6295 = vlaneseq
    %v6296 = vshrl.u32 %v6295, 7
    %v6297 = vsub.s32 %v6294, %v6296
    %v6298 = vrot.slane %v6284, %v6297
    %v6299 = vcombine.low %v6291, %v6298
    %v6300 = vcombine.low %v4053, %v4060
    %v6301 = vcombine.low %v4067, %v4074
    %v6303 = vunpack.c.l.s4 1983009808
    %v6304 = vunpack.c.0.s8 %v6303
    %v6305 = vlaneseq
    %v6306 = vshrl.u32 %v6305, 7
    %v6307 = vsub.s32 %v6304, %v6306
    %v6308 = vrot.slane %v6300, %v6307
    %v6310 = vunpack.c.l.s4 1983009808
    %v6311 = vunpack.c.0.s8 %v6310
    %v6312 = vlaneseq
    %v6313 = vshrl.u32 %v6312, 7
    %v6314 = vsub.s32 %v6311, %v6313
    %v6315 = vrot.slane %v6301, %v6314
    %v6316 = vcombine.low %v6308, %v6315
    %v6317 = vcombine.low %v4081, %v4088
    %v6318 = vcombine.low %v4095, %v4102
    %v6320 = vunpack.c.l.s4 1983009808
    %v6321 = vunpack.c.0.s8 %v6320
    %v6322 = vlaneseq
    %v6323 = vshrl.u32 %v6322, 7
    %v6324 = vsub.s32 %v6321, %v6323
    %v6325 = vrot.slane %v6317, %v6324
    %v6327 = vunpack.c.l.s4 1983009808
    %v6328 = vunpack.c.0.s8 %v6327
    %v6329 = vlaneseq
    %v6330 = vshrl.u32 %v6329, 7
    %v6331 = vsub.s32 %v6328, %v6330
    %v6332 = vrot.slane %v6318, %v6331
    %v6333 = vcombine.low %v6325, %v6332
    %v6334 = vcombine.low %v4109, %v4116
    %v6335 = vcombine.low %v4123, %v4130
    %v6337 = vunpack.c.l.s4 1983009808
    %v6338 = vunpack.c.0.s8 %v6337
    %v6339 = vlaneseq
    %v6340 = vshrl.u32 %v6339, 7
    %v6341 = vsub.s32 %v6338, %v6340
    %v6342 = vrot.slane %v6334, %v6341
    %v6344 = vunpack.c.l.s4 1983009808
    %v6345 = vunpack.c.0.s8 %v6344
    %v6346 = vlaneseq
    %v6347 = vshrl.u32 %v6346, 7
    %v6348 = vsub.s32 %v6345, %v6347
    %v6349 = vrot.slane %v6335, %v6348
    %v6350 = vcombine.low %v6342, %v6349
    %v6351 = vcombine.low %v4137, %v4144
    %v6352 = vcombine.low %v4151, %v4158
    %v6354 = vunpack.c.l.s4 1983009808
    %v6355 = vunpack.c.0.s8 %v6354
    %v6356 = vlaneseq
    %v6357 = vshrl.u32 %v6356, 7
    %v6358 = vsub.s32 %v6355, %v6357
    %v6359 = vrot.slane %v6351, %v6358
    %v6361 = vunpack.c.l.s4 1983009808
    %v6362 = vunpack.c.0.s8 %v6361
    %v6363 = vlaneseq
    %v6364 = vshrl.u32 %v6363, 7
    %v6365 = vsub.s32 %v6362, %v6364
    %v6366 = vrot.slane %v6352, %v6365
    %v6367 = vcombine.low %v6359, %v6366
    %v6368 = vcombine.low %v4165, %v4172
    %v6369 = vcombine.low %v4179, %v4186
    %v6371 = vunpack.c.l.s4 1983009808
    %v6372 = vunpack.c.0.s8 %v6371
    %v6373 = vlaneseq
    %v6374 = vshrl.u32 %v6373, 7
    %v6375 = vsub.s32 %v6372, %v6374
    %v6376 = vrot.slane %v6368, %v6375
    %v6378 = vunpack.c.l.s4 1983009808
    %v6379 = vunpack.c.0.s8 %v6378
    %v6380 = vlaneseq
    %v6381 = vshrl.u32 %v6380, 7
    %v6382 = vsub.s32 %v6379, %v6381
    %v6383 = vrot.slane %v6369, %v6382
    %v6384 = vcombine.low %v6376, %v6383
    %v6385 = vcombine.low %v4193, %v4200
    %v6386 = vcombine.low %v4207, %v4214
    %v6388 = vunpack.c.l.s4 1983009808
    %v6389 = vunpack.c.0.s8 %v6388
    %v6390 = vlaneseq
    %v6391 = vshrl.u32 %v6390, 7
    %v6392 = vsub.s32 %v6389, %v6391
    %v6393 = vrot.slane %v6385, %v6392
    %v6395 = vunpack.c.l.s4 1983009808
    %v6396 = vunpack.c.0.s8 %v6395
    %v6397 = vlaneseq
    %v6398 = vshrl.u32 %v6397, 7
    %v6399 = vsub.s32 %v6396, %v6398
    %v6400 = vrot.slane %v6386, %v6399
    %v6401 = vcombine.low %v6393, %v6400
    %v6402 = vcombine.low %v4221, %v4228
    %v6403 = vcombine.low %v4235, %v4242
    %v6405 = vunpack.c.l.s4 1983009808
    %v6406 = vunpack.c.0.s8 %v6405
    %v6407 = vlaneseq
    %v6408 = vshrl.u32 %v6407, 7
    %v6409 = vsub.s32 %v6406, %v6408
    %v6410 = vrot.slane %v6402, %v6409
    %v6412 = vunpack.c.l.s4 1983009808
    %v6413 = vunpack.c.0.s8 %v6412
    %v6414 = vlaneseq
    %v6415 = vshrl.u32 %v6414, 7
    %v6416 = vsub.s32 %v6413, %v6415
    %v6417 = vrot.slane %v6403, %v6416
    %v6418 = vcombine.low %v6410, %v6417
    %6419 = vset.pattern.permute.xlu0 0
    %6420 = vperm.xlu0 %6419, %v4259
    %v6421 = vpop.permute.xlu0 %6420
    %6422 = vset.pattern.permute.xlu0 0
    %6423 = vperm.xlu0 %6422, %v4276
    %v6424 = vpop.permute.xlu0 %6423
    %6425 = vset.pattern.permute.xlu0 0
    %6426 = vperm.xlu0 %6425, %v4293
    %v6427 = vpop.permute.xlu0 %6426
    %6428 = vset.pattern.permute.xlu0 0
    %6429 = vperm.xlu0 %6428, %v4310
    %v6430 = vpop.permute.xlu0 %6429
    %6431 = vset.pattern.permute.xlu0 0
    %6432 = vperm.xlu0 %6431, %v4327
    %v6433 = vpop.permute.xlu0 %6432
    %6434 = vset.pattern.permute.xlu0 0
    %6435 = vperm.xlu0 %6434, %v4344
    %v6436 = vpop.permute.xlu0 %6435
    %6437 = vset.pattern.permute.xlu0 0
    %6438 = vperm.xlu0 %6437, %v4361
    %v6439 = vpop.permute.xlu0 %6438
    %6440 = vset.pattern.permute.xlu0 0
    %6441 = vperm.xlu0 %6440, %v4378
    %v6442 = vpop.permute.xlu0 %6441
    %6443 = vset.pattern.permute.xlu0 0
    %6444 = vperm.xlu0 %6443, %v4395
    %v6445 = vpop.permute.xlu0 %6444
    %6446 = vset.pattern.permute.xlu0 0
    %6447 = vperm.xlu0 %6446, %v4412
    %v6448 = vpop.permute.xlu0 %6447
    %6449 = vset.pattern.permute.xlu0 0
    %6450 = vperm.xlu0 %6449, %v4429
    %v6451 = vpop.permute.xlu0 %6450
    %6452 = vset.pattern.permute.xlu0 0
    %6453 = vperm.xlu0 %6452, %v4446
    %v6454 = vpop.permute.xlu0 %6453
    %6455 = vset.pattern.permute.xlu0 0
    %6456 = vperm.xlu0 %6455, %v4463
    %v6457 = vpop.permute.xlu0 %6456
    %6458 = vset.pattern.permute.xlu0 0
    %6459 = vperm.xlu0 %6458, %v4480
    %v6460 = vpop.permute.xlu0 %6459
    %6461 = vset.pattern.permute.xlu0 0
    %6462 = vperm.xlu0 %6461, %v4497
    %v6463 = vpop.permute.xlu0 %6462
    %6464 = vset.pattern.permute.xlu0 0
    %6465 = vperm.xlu0 %6464, %v4514
    %v6466 = vpop.permute.xlu0 %6465
    %6467 = vset.pattern.permute.xlu0 0
    %6468 = vperm.xlu0 %6467, %v4531
    %v6469 = vpop.permute.xlu0 %6468
    %6470 = vset.pattern.permute.xlu0 0
    %6471 = vperm.xlu0 %6470, %v4548
    %v6472 = vpop.permute.xlu0 %6471
    %6473 = vset.pattern.permute.xlu0 0
    %6474 = vperm.xlu0 %6473, %v4565
    %v6475 = vpop.permute.xlu0 %6474
    %6476 = vset.pattern.permute.xlu0 0
    %6477 = vperm.xlu0 %6476, %v4582
    %v6478 = vpop.permute.xlu0 %6477
    %6479 = vset.pattern.permute.xlu0 0
    %6480 = vperm.xlu0 %6479, %v4599
    %v6481 = vpop.permute.xlu0 %6480
    %6482 = vset.pattern.permute.xlu0 0
    %6483 = vperm.xlu0 %6482, %v4616
    %v6484 = vpop.permute.xlu0 %6483
    %6485 = vset.pattern.permute.xlu0 0
    %6486 = vperm.xlu0 %6485, %v4633
    %v6487 = vpop.permute.xlu0 %6486
    %6488 = vset.pattern.permute.xlu0 0
    %6489 = vperm.xlu0 %6488, %v4650
    %v6490 = vpop.permute.xlu0 %6489
    %6491 = vset.pattern.permute.xlu0 0
    %6492 = vperm.xlu0 %6491, %v4667
    %v6493 = vpop.permute.xlu0 %6492
    %6494 = vset.pattern.permute.xlu0 0
    %6495 = vperm.xlu0 %6494, %v4684
    %v6496 = vpop.permute.xlu0 %6495
    %6497 = vset.pattern.permute.xlu0 0
    %6498 = vperm.xlu0 %6497, %v4701
    %v6499 = vpop.permute.xlu0 %6498
    %6500 = vset.pattern.permute.xlu0 0
    %6501 = vperm.xlu0 %6500, %v4718
    %v6502 = vpop.permute.xlu0 %6501
    %6503 = vset.pattern.permute.xlu0 0
    %6504 = vperm.xlu0 %6503, %v4735
    %v6505 = vpop.permute.xlu0 %6504
    %6506 = vset.pattern.permute.xlu0 0
    %6507 = vperm.xlu0 %6506, %v4752
    %v6508 = vpop.permute.xlu0 %6507
    %6509 = vset.pattern.permute.xlu0 0
    %6510 = vperm.xlu0 %6509, %v4769
    %v6511 = vpop.permute.xlu0 %6510
    %6512 = vset.pattern.permute.xlu0 0
    %6513 = vperm.xlu0 %6512, %v4786
    %v6514 = vpop.permute.xlu0 %6513
    %6515 = vset.pattern.permute.xlu0 0
    %6516 = vperm.xlu0 %6515, %v4803
    %v6517 = vpop.permute.xlu0 %6516
    %6518 = vset.pattern.permute.xlu0 0
    %6519 = vperm.xlu0 %6518, %v4820
    %v6520 = vpop.permute.xlu0 %6519
    %6521 = vset.pattern.permute.xlu0 0
    %6522 = vperm.xlu0 %6521, %v4837
    %v6523 = vpop.permute.xlu0 %6522
    %6524 = vset.pattern.permute.xlu0 0
    %6525 = vperm.xlu0 %6524, %v4854
    %v6526 = vpop.permute.xlu0 %6525
    %6527 = vset.pattern.permute.xlu0 0
    %6528 = vperm.xlu0 %6527, %v4871
    %v6529 = vpop.permute.xlu0 %6528
    %6530 = vset.pattern.permute.xlu0 0
    %6531 = vperm.xlu0 %6530, %v4888
    %v6532 = vpop.permute.xlu0 %6531
    %6533 = vset.pattern.permute.xlu0 0
    %6534 = vperm.xlu0 %6533, %v4905
    %v6535 = vpop.permute.xlu0 %6534
    %6536 = vset.pattern.permute.xlu0 0
    %6537 = vperm.xlu0 %6536, %v4922
    %v6538 = vpop.permute.xlu0 %6537
    %6539 = vset.pattern.permute.xlu0 0
    %6540 = vperm.xlu0 %6539, %v4939
    %v6541 = vpop.permute.xlu0 %6540
    %6542 = vset.pattern.permute.xlu0 0
    %6543 = vperm.xlu0 %6542, %v4956
    %v6544 = vpop.permute.xlu0 %6543
    %6545 = vset.pattern.permute.xlu0 0
    %6546 = vperm.xlu0 %6545, %v4973
    %v6547 = vpop.permute.xlu0 %6546
    %6548 = vset.pattern.permute.xlu0 0
    %6549 = vperm.xlu0 %6548, %v4990
    %v6550 = vpop.permute.xlu0 %6549
    %6551 = vset.pattern.permute.xlu0 0
    %6552 = vperm.xlu0 %6551, %v5007
    %v6553 = vpop.permute.xlu0 %6552
    %6554 = vset.pattern.permute.xlu0 0
    %6555 = vperm.xlu0 %6554, %v5024
    %v6556 = vpop.permute.xlu0 %6555
    %6557 = vset.pattern.permute.xlu0 0
    %6558 = vperm.xlu0 %6557, %v5041
    %v6559 = vpop.permute.xlu0 %6558
    %6560 = vset.pattern.permute.xlu0 0
    %6561 = vperm.xlu0 %6560, %v5058
    %v6562 = vpop.permute.xlu0 %6561
    %6563 = vset.pattern.permute.xlu0 0
    %6564 = vperm.xlu0 %6563, %v5075
    %v6565 = vpop.permute.xlu0 %6564
    %6566 = vset.pattern.permute.xlu0 0
    %6567 = vperm.xlu0 %6566, %v5092
    %v6568 = vpop.permute.xlu0 %6567
    %6569 = vset.pattern.permute.xlu0 0
    %6570 = vperm.xlu0 %6569, %v5109
    %v6571 = vpop.permute.xlu0 %6570
    %6572 = vset.pattern.permute.xlu0 0
    %6573 = vperm.xlu0 %6572, %v5126
    %v6574 = vpop.permute.xlu0 %6573
    %6575 = vset.pattern.permute.xlu0 0
    %6576 = vperm.xlu0 %6575, %v5143
    %v6577 = vpop.permute.xlu0 %6576
    %6578 = vset.pattern.permute.xlu0 0
    %6579 = vperm.xlu0 %6578, %v5160
    %v6580 = vpop.permute.xlu0 %6579
    %6581 = vset.pattern.permute.xlu0 0
    %6582 = vperm.xlu0 %6581, %v5177
    %v6583 = vpop.permute.xlu0 %6582
    %6584 = vset.pattern.permute.xlu0 0
    %6585 = vperm.xlu0 %6584, %v5194
    %v6586 = vpop.permute.xlu0 %6585
    %6587 = vset.pattern.permute.xlu0 0
    %6588 = vperm.xlu0 %6587, %v5211
    %v6589 = vpop.permute.xlu0 %6588
    %6590 = vset.pattern.permute.xlu0 0
    %6591 = vperm.xlu0 %6590, %v5228
    %v6592 = vpop.permute.xlu0 %6591
    %6593 = vset.pattern.permute.xlu0 0
    %6594 = vperm.xlu0 %6593, %v5245
    %v6595 = vpop.permute.xlu0 %6594
    %6596 = vset.pattern.permute.xlu0 0
    %6597 = vperm.xlu0 %6596, %v5262
    %v6598 = vpop.permute.xlu0 %6597
    %6599 = vset.pattern.permute.xlu0 0
    %6600 = vperm.xlu0 %6599, %v5279
    %v6601 = vpop.permute.xlu0 %6600
    %6602 = vset.pattern.permute.xlu0 0
    %6603 = vperm.xlu0 %6602, %v5296
    %v6604 = vpop.permute.xlu0 %6603
    %6605 = vset.pattern.permute.xlu0 0
    %6606 = vperm.xlu0 %6605, %v5313
    %v6607 = vpop.permute.xlu0 %6606
    %6608 = vset.pattern.permute.xlu0 0
    %6609 = vperm.xlu0 %6608, %v5330
    %v6610 = vpop.permute.xlu0 %6609
    %6611 = vset.pattern.permute.xlu0 0
    %6612 = vperm.xlu0 %6611, %v5347
    %v6613 = vpop.permute.xlu0 %6612
    %6614 = vset.pattern.permute.xlu0 0
    %6615 = vperm.xlu0 %6614, %v5364
    %v6616 = vpop.permute.xlu0 %6615
    %6617 = vset.pattern.permute.xlu0 0
    %6618 = vperm.xlu0 %6617, %v5381
    %v6619 = vpop.permute.xlu0 %6618
    %6620 = vset.pattern.permute.xlu0 0
    %6621 = vperm.xlu0 %6620, %v5398
    %v6622 = vpop.permute.xlu0 %6621
    %6623 = vset.pattern.permute.xlu0 0
    %6624 = vperm.xlu0 %6623, %v5415
    %v6625 = vpop.permute.xlu0 %6624
    %6626 = vset.pattern.permute.xlu0 0
    %6627 = vperm.xlu0 %6626, %v5432
    %v6628 = vpop.permute.xlu0 %6627
    %6629 = vset.pattern.permute.xlu0 0
    %6630 = vperm.xlu0 %6629, %v5449
    %v6631 = vpop.permute.xlu0 %6630
    %6632 = vset.pattern.permute.xlu0 0
    %6633 = vperm.xlu0 %6632, %v5466
    %v6634 = vpop.permute.xlu0 %6633
    %6635 = vset.pattern.permute.xlu0 0
    %6636 = vperm.xlu0 %6635, %v5483
    %v6637 = vpop.permute.xlu0 %6636
    %6638 = vset.pattern.permute.xlu0 0
    %6639 = vperm.xlu0 %6638, %v5500
    %v6640 = vpop.permute.xlu0 %6639
    %6641 = vset.pattern.permute.xlu0 0
    %6642 = vperm.xlu0 %6641, %v5517
    %v6643 = vpop.permute.xlu0 %6642
    %6644 = vset.pattern.permute.xlu0 0
    %6645 = vperm.xlu0 %6644, %v5534
    %v6646 = vpop.permute.xlu0 %6645
    %6647 = vset.pattern.permute.xlu0 0
    %6648 = vperm.xlu0 %6647, %v5551
    %v6649 = vpop.permute.xlu0 %6648
    %6650 = vset.pattern.permute.xlu0 0
    %6651 = vperm.xlu0 %6650, %v5568
    %v6652 = vpop.permute.xlu0 %6651
    %6653 = vset.pattern.permute.xlu0 0
    %6654 = vperm.xlu0 %6653, %v5585
    %v6655 = vpop.permute.xlu0 %6654
    %6656 = vset.pattern.permute.xlu0 0
    %6657 = vperm.xlu0 %6656, %v5602
    %v6658 = vpop.permute.xlu0 %6657
    %6659 = vset.pattern.permute.xlu0 0
    %6660 = vperm.xlu0 %6659, %v5619
    %v6661 = vpop.permute.xlu0 %6660
    %6662 = vset.pattern.permute.xlu0 0
    %6663 = vperm.xlu0 %6662, %v5636
    %v6664 = vpop.permute.xlu0 %6663
    %6665 = vset.pattern.permute.xlu0 0
    %6666 = vperm.xlu0 %6665, %v5653
    %v6667 = vpop.permute.xlu0 %6666
    %6668 = vset.pattern.permute.xlu0 0
    %6669 = vperm.xlu0 %6668, %v5670
    %v6670 = vpop.permute.xlu0 %6669
    %6671 = vset.pattern.permute.xlu0 0
    %6672 = vperm.xlu0 %6671, %v5687
    %v6673 = vpop.permute.xlu0 %6672
    %6674 = vset.pattern.permute.xlu0 0
    %6675 = vperm.xlu0 %6674, %v5704
    %v6676 = vpop.permute.xlu0 %6675
    %6677 = vset.pattern.permute.xlu0 0
    %6678 = vperm.xlu0 %6677, %v5721
    %v6679 = vpop.permute.xlu0 %6678
    %6680 = vset.pattern.permute.xlu0 0
    %6681 = vperm.xlu0 %6680, %v5738
    %v6682 = vpop.permute.xlu0 %6681
    %6683 = vset.pattern.permute.xlu0 0
    %6684 = vperm.xlu0 %6683, %v5755
    %v6685 = vpop.permute.xlu0 %6684
    %6686 = vset.pattern.permute.xlu0 0
    %6687 = vperm.xlu0 %6686, %v5772
    %v6688 = vpop.permute.xlu0 %6687
    %6689 = vset.pattern.permute.xlu0 0
    %6690 = vperm.xlu0 %6689, %v5789
    %v6691 = vpop.permute.xlu0 %6690
    %6692 = vset.pattern.permute.xlu0 0
    %6693 = vperm.xlu0 %6692, %v5806
    %v6694 = vpop.permute.xlu0 %6693
    %6695 = vset.pattern.permute.xlu0 0
    %6696 = vperm.xlu0 %6695, %v5823
    %v6697 = vpop.permute.xlu0 %6696
    %6698 = vset.pattern.permute.xlu0 0
    %6699 = vperm.xlu0 %6698, %v5840
    %v6700 = vpop.permute.xlu0 %6699
    %6701 = vset.pattern.permute.xlu0 0
    %6702 = vperm.xlu0 %6701, %v5857
    %v6703 = vpop.permute.xlu0 %6702
    %6704 = vset.pattern.permute.xlu0 0
    %6705 = vperm.xlu0 %6704, %v5874
    %v6706 = vpop.permute.xlu0 %6705
    %6707 = vset.pattern.permute.xlu0 0
    %6708 = vperm.xlu0 %6707, %v5891
    %v6709 = vpop.permute.xlu0 %6708
    %6710 = vset.pattern.permute.xlu0 0
    %6711 = vperm.xlu0 %6710, %v5908
    %v6712 = vpop.permute.xlu0 %6711
    %6713 = vset.pattern.permute.xlu0 0
    %6714 = vperm.xlu0 %6713, %v5925
    %v6715 = vpop.permute.xlu0 %6714
    %6716 = vset.pattern.permute.xlu0 0
    %6717 = vperm.xlu0 %6716, %v5942
    %v6718 = vpop.permute.xlu0 %6717
    %6719 = vset.pattern.permute.xlu0 0
    %6720 = vperm.xlu0 %6719, %v5959
    %v6721 = vpop.permute.xlu0 %6720
    %6722 = vset.pattern.permute.xlu0 0
    %6723 = vperm.xlu0 %6722, %v5976
    %v6724 = vpop.permute.xlu0 %6723
    %6725 = vset.pattern.permute.xlu0 0
    %6726 = vperm.xlu0 %6725, %v5993
    %v6727 = vpop.permute.xlu0 %6726
    %6728 = vset.pattern.permute.xlu0 0
    %6729 = vperm.xlu0 %6728, %v6010
    %v6730 = vpop.permute.xlu0 %6729
    %6731 = vset.pattern.permute.xlu0 0
    %6732 = vperm.xlu0 %6731, %v6027
    %v6733 = vpop.permute.xlu0 %6732
    %6734 = vset.pattern.permute.xlu0 0
    %6735 = vperm.xlu0 %6734, %v6044
    %v6736 = vpop.permute.xlu0 %6735
    %6737 = vset.pattern.permute.xlu0 0
    %6738 = vperm.xlu0 %6737, %v6061
    %v6739 = vpop.permute.xlu0 %6738
    %6740 = vset.pattern.permute.xlu0 0
    %6741 = vperm.xlu0 %6740, %v6078
    %v6742 = vpop.permute.xlu0 %6741
    %6743 = vset.pattern.permute.xlu0 0
    %6744 = vperm.xlu0 %6743, %v6095
    %v6745 = vpop.permute.xlu0 %6744
    %6746 = vset.pattern.permute.xlu0 0
    %6747 = vperm.xlu0 %6746, %v6112
    %v6748 = vpop.permute.xlu0 %6747
    %6749 = vset.pattern.permute.xlu0 0
    %6750 = vperm.xlu0 %6749, %v6129
    %v6751 = vpop.permute.xlu0 %6750
    %6752 = vset.pattern.permute.xlu0 0
    %6753 = vperm.xlu0 %6752, %v6146
    %v6754 = vpop.permute.xlu0 %6753
    %6755 = vset.pattern.permute.xlu0 0
    %6756 = vperm.xlu0 %6755, %v6163
    %v6757 = vpop.permute.xlu0 %6756
    %6758 = vset.pattern.permute.xlu0 0
    %6759 = vperm.xlu0 %6758, %v6180
    %v6760 = vpop.permute.xlu0 %6759
    %6761 = vset.pattern.permute.xlu0 0
    %6762 = vperm.xlu0 %6761, %v6197
    %v6763 = vpop.permute.xlu0 %6762
    %6764 = vset.pattern.permute.xlu0 0
    %6765 = vperm.xlu0 %6764, %v6214
    %v6766 = vpop.permute.xlu0 %6765
    %6767 = vset.pattern.permute.xlu0 0
    %6768 = vperm.xlu0 %6767, %v6231
    %v6769 = vpop.permute.xlu0 %6768
    %6770 = vset.pattern.permute.xlu0 0
    %6771 = vperm.xlu0 %6770, %v6248
    %v6772 = vpop.permute.xlu0 %6771
    %6773 = vset.pattern.permute.xlu0 0
    %6774 = vperm.xlu0 %6773, %v6265
    %v6775 = vpop.permute.xlu0 %6774
    %6776 = vset.pattern.permute.xlu0 0
    %6777 = vperm.xlu0 %6776, %v6282
    %v6778 = vpop.permute.xlu0 %6777
    %6779 = vset.pattern.permute.xlu0 0
    %6780 = vperm.xlu0 %6779, %v6299
    %v6781 = vpop.permute.xlu0 %6780
    %6782 = vset.pattern.permute.xlu0 0
    %6783 = vperm.xlu0 %6782, %v6316
    %v6784 = vpop.permute.xlu0 %6783
    %6785 = vset.pattern.permute.xlu0 0
    %6786 = vperm.xlu0 %6785, %v6333
    %v6787 = vpop.permute.xlu0 %6786
    %6788 = vset.pattern.permute.xlu0 0
    %6789 = vperm.xlu0 %6788, %v6350
    %v6790 = vpop.permute.xlu0 %6789
    %6791 = vset.pattern.permute.xlu0 0
    %6792 = vperm.xlu0 %6791, %v6367
    %v6793 = vpop.permute.xlu0 %6792
    %6794 = vset.pattern.permute.xlu0 0
    %6795 = vperm.xlu0 %6794, %v6384
    %v6796 = vpop.permute.xlu0 %6795
    %6797 = vset.pattern.permute.xlu0 0
    %6798 = vperm.xlu0 %6797, %v6401
    %v6799 = vpop.permute.xlu0 %6798
    %6800 = vset.pattern.permute.xlu0 0
    %6801 = vperm.xlu0 %6800, %v6418
    %v6802 = vpop.permute.xlu0 %6801
    %v6803 = vlaneseq
    %v6804 = vand.u32 %v6803, 127
    %v6805 = vlaneseq
    %v6806 = vshrl.u32 %v6805, 7
    %v6807 = vsub.s32 %v6804, %v6806
    %v6808 = vrot.slane %v6421, %v6807
    %v6809 = vadd.s32 %v6804, 4294967288
    %v6810 = vlaneseq
    %v6811 = vshrl.u32 %v6810, 7
    %v6812 = vsub.s32 %v6809, %v6811
    %v6813 = vrot.slane %v6424, %v6812
    %vm6814 = vcmask 130112
    %v6815 = vsel %vm6814, %v6813, %v6808
    %v6816 = vadd.s32 %v6804, 4294967280
    %v6817 = vlaneseq
    %v6818 = vshrl.u32 %v6817, 7
    %v6819 = vsub.s32 %v6816, %v6818
    %v6820 = vrot.slane %v6427, %v6819
    %vm6821 = vcmask 195712
    %v6822 = vsel %vm6821, %v6820, %v6815
    %v6823 = vadd.s32 %v6804, 4294967272
    %v6824 = vlaneseq
    %v6825 = vshrl.u32 %v6824, 7
    %v6826 = vsub.s32 %v6823, %v6825
    %v6827 = vrot.slane %v6430, %v6826
    %vm6828 = vcmask 261312
    %v6829 = vsel %vm6828, %v6827, %v6822
    %v6830 = vadd.s32 %v6804, 4294967264
    %v6831 = vlaneseq
    %v6832 = vshrl.u32 %v6831, 7
    %v6833 = vsub.s32 %v6830, %v6832
    %v6834 = vrot.slane %v6433, %v6833
    %vm6835 = vcmask 326912
    %v6836 = vsel %vm6835, %v6834, %v6829
    %v6837 = vadd.s32 %v6804, 4294967256
    %v6838 = vlaneseq
    %v6839 = vshrl.u32 %v6838, 7
    %v6840 = vsub.s32 %v6837, %v6839
    %v6841 = vrot.slane %v6436, %v6840
    %vm6842 = vcmask 392512
    %v6843 = vsel %vm6842, %v6841, %v6836
    %v6844 = vadd.s32 %v6804, 4294967248
    %v6845 = vlaneseq
    %v6846 = vshrl.u32 %v6845, 7
    %v6847 = vsub.s32 %v6844, %v6846
    %v6848 = vrot.slane %v6439, %v6847
    %vm6849 = vcmask 458112
    %v6850 = vsel %vm6849, %v6848, %v6843
    %v6851 = vadd.s32 %v6804, 4294967240
    %v6852 = vlaneseq
    %v6853 = vshrl.u32 %v6852, 7
    %v6854 = vsub.s32 %v6851, %v6853
    %v6855 = vrot.slane %v6442, %v6854
    %vm6856 = vcmask 523712
    %v6857 = vsel %vm6856, %v6855, %v6850
    %v6858 = vadd.s32 %v6804, 4294967232
    %v6859 = vlaneseq
    %v6860 = vshrl.u32 %v6859, 7
    %v6861 = vsub.s32 %v6858, %v6860
    %v6862 = vrot.slane %v6445, %v6861
    %vm6863 = vcmask 589312
    %v6864 = vsel %vm6863, %v6862, %v6857
    %v6865 = vadd.s32 %v6804, 4294967224
    %v6866 = vlaneseq
    %v6867 = vshrl.u32 %v6866, 7
    %v6868 = vsub.s32 %v6865, %v6867
    %v6869 = vrot.slane %v6448, %v6868
    %vm6870 = vcmask 654912
    %v6871 = vsel %vm6870, %v6869, %v6864
    %v6872 = vadd.s32 %v6804, 4294967216
    %v6873 = vlaneseq
    %v6874 = vshrl.u32 %v6873, 7
    %v6875 = vsub.s32 %v6872, %v6874
    %v6876 = vrot.slane %v6451, %v6875
    %vm6877 = vcmask 720512
    %v6878 = vsel %vm6877, %v6876, %v6871
    %v6879 = vadd.s32 %v6804, 4294967208
    %v6880 = vlaneseq
    %v6881 = vshrl.u32 %v6880, 7
    %v6882 = vsub.s32 %v6879, %v6881
    %v6883 = vrot.slane %v6454, %v6882
    %vm6884 = vcmask 786112
    %v6885 = vsel %vm6884, %v6883, %v6878
    %v6886 = vadd.s32 %v6804, 4294967200
    %v6887 = vlaneseq
    %v6888 = vshrl.u32 %v6887, 7
    %v6889 = vsub.s32 %v6886, %v6888
    %v6890 = vrot.slane %v6457, %v6889
    %vm6891 = vcmask 851712
    %v6892 = vsel %vm6891, %v6890, %v6885
    %v6893 = vadd.s32 %v6804, 4294967192
    %v6894 = vlaneseq
    %v6895 = vshrl.u32 %v6894, 7
    %v6896 = vsub.s32 %v6893, %v6895
    %v6897 = vrot.slane %v6460, %v6896
    %vm6898 = vcmask 917312
    %v6899 = vsel %vm6898, %v6897, %v6892
    %v6900 = vadd.s32 %v6804, 4294967184
    %v6901 = vlaneseq
    %v6902 = vshrl.u32 %v6901, 7
    %v6903 = vsub.s32 %v6900, %v6902
    %v6904 = vrot.slane %v6463, %v6903
    %vm6905 = vcmask 982912
    %v6906 = vsel %vm6905, %v6904, %v6899
    %v6907 = vadd.s32 %v6804, 4294967176
    %v6908 = vlaneseq
    %v6909 = vshrl.u32 %v6908, 7
    %v6910 = vsub.s32 %v6907, %v6909
    %v6911 = vrot.slane %v6466, %v6910
    %vm6912 = vcmask 1048512
    %v6913 = vsel %vm6912, %v6911, %v6906
    %v6914 = vlaneseq
    %v6915 = vshrl.u32 %v6914, 7
    %v6916 = vsub.s32 %v6804, %v6915
    %v6917 = vrot.slane %v6469, %v6916
    %v6918 = vlaneseq
    %v6919 = vshrl.u32 %v6918, 7
    %v6920 = vsub.s32 %v6809, %v6919
    %v6921 = vrot.slane %v6472, %v6920
    %v6922 = vsel %vm6814, %v6921, %v6917
    %v6923 = vlaneseq
    %v6924 = vshrl.u32 %v6923, 7
    %v6925 = vsub.s32 %v6816, %v6924
    %v6926 = vrot.slane %v6475, %v6925
    %v6927 = vsel %vm6821, %v6926, %v6922
    %v6928 = vlaneseq
    %v6929 = vshrl.u32 %v6928, 7
    %v6930 = vsub.s32 %v6823, %v6929
    %v6931 = vrot.slane %v6478, %v6930
    %v6932 = vsel %vm6828, %v6931, %v6927
    %v6933 = vlaneseq
    %v6934 = vshrl.u32 %v6933, 7
    %v6935 = vsub.s32 %v6830, %v6934
    %v6936 = vrot.slane %v6481, %v6935
    %v6937 = vsel %vm6835, %v6936, %v6932
    %v6938 = vlaneseq
    %v6939 = vshrl.u32 %v6938, 7
    %v6940 = vsub.s32 %v6837, %v6939
    %v6941 = vrot.slane %v6484, %v6940
    %v6942 = vsel %vm6842, %v6941, %v6937
    %v6943 = vlaneseq
    %v6944 = vshrl.u32 %v6943, 7
    %v6945 = vsub.s32 %v6844, %v6944
    %v6946 = vrot.slane %v6487, %v6945
    %v6947 = vsel %vm6849, %v6946, %v6942
    %v6948 = vlaneseq
    %v6949 = vshrl.u32 %v6948, 7
    %v6950 = vsub.s32 %v6851, %v6949
    %v6951 = vrot.slane %v6490, %v6950
    %v6952 = vsel %vm6856, %v6951, %v6947
    %v6953 = vlaneseq
    %v6954 = vshrl.u32 %v6953, 7
    %v6955 = vsub.s32 %v6858, %v6954
    %v6956 = vrot.slane %v6493, %v6955
    %v6957 = vsel %vm6863, %v6956, %v6952
    %v6958 = vlaneseq
    %v6959 = vshrl.u32 %v6958, 7
    %v6960 = vsub.s32 %v6865, %v6959
    %v6961 = vrot.slane %v6496, %v6960
    %v6962 = vsel %vm6870, %v6961, %v6957
    %v6963 = vlaneseq
    %v6964 = vshrl.u32 %v6963, 7
    %v6965 = vsub.s32 %v6872, %v6964
    %v6966 = vrot.slane %v6499, %v6965
    %v6967 = vsel %vm6877, %v6966, %v6962
    %v6968 = vlaneseq
    %v6969 = vshrl.u32 %v6968, 7
    %v6970 = vsub.s32 %v6879, %v6969
    %v6971 = vrot.slane %v6502, %v6970
    %v6972 = vsel %vm6884, %v6971, %v6967
    %v6973 = vlaneseq
    %v6974 = vshrl.u32 %v6973, 7
    %v6975 = vsub.s32 %v6886, %v6974
    %v6976 = vrot.slane %v6505, %v6975
    %v6977 = vsel %vm6891, %v6976, %v6972
    %v6978 = vlaneseq
    %v6979 = vshrl.u32 %v6978, 7
    %v6980 = vsub.s32 %v6893, %v6979
    %v6981 = vrot.slane %v6508, %v6980
    %v6982 = vsel %vm6898, %v6981, %v6977
    %v6983 = vlaneseq
    %v6984 = vshrl.u32 %v6983, 7
    %v6985 = vsub.s32 %v6900, %v6984
    %v6986 = vrot.slane %v6511, %v6985
    %v6987 = vsel %vm6905, %v6986, %v6982
    %v6988 = vlaneseq
    %v6989 = vshrl.u32 %v6988, 7
    %v6990 = vsub.s32 %v6907, %v6989
    %v6991 = vrot.slane %v6514, %v6990
    %v6992 = vsel %vm6912, %v6991, %v6987
    %v6993 = vlaneseq
    %v6994 = vshrl.u32 %v6993, 7
    %v6995 = vsub.s32 %v6804, %v6994
    %v6996 = vrot.slane %v6517, %v6995
    %v6997 = vlaneseq
    %v6998 = vshrl.u32 %v6997, 7
    %v6999 = vsub.s32 %v6809, %v6998
    %v7000 = vrot.slane %v6520, %v6999
    %v7001 = vsel %vm6814, %v7000, %v6996
    %v7002 = vlaneseq
    %v7003 = vshrl.u32 %v7002, 7
    %v7004 = vsub.s32 %v6816, %v7003
    %v7005 = vrot.slane %v6523, %v7004
    %v7006 = vsel %vm6821, %v7005, %v7001
    %v7007 = vlaneseq
    %v7008 = vshrl.u32 %v7007, 7
    %v7009 = vsub.s32 %v6823, %v7008
    %v7010 = vrot.slane %v6526, %v7009
    %v7011 = vsel %vm6828, %v7010, %v7006
    %v7012 = vlaneseq
    %v7013 = vshrl.u32 %v7012, 7
    %v7014 = vsub.s32 %v6830, %v7013
    %v7015 = vrot.slane %v6529, %v7014
    %v7016 = vsel %vm6835, %v7015, %v7011
    %v7017 = vlaneseq
    %v7018 = vshrl.u32 %v7017, 7
    %v7019 = vsub.s32 %v6837, %v7018
    %v7020 = vrot.slane %v6532, %v7019
    %v7021 = vsel %vm6842, %v7020, %v7016
    %v7022 = vlaneseq
    %v7023 = vshrl.u32 %v7022, 7
    %v7024 = vsub.s32 %v6844, %v7023
    %v7025 = vrot.slane %v6535, %v7024
    %v7026 = vsel %vm6849, %v7025, %v7021
    %v7027 = vlaneseq
    %v7028 = vshrl.u32 %v7027, 7
    %v7029 = vsub.s32 %v6851, %v7028
    %v7030 = vrot.slane %v6538, %v7029
    %v7031 = vsel %vm6856, %v7030, %v7026
    %v7032 = vlaneseq
    %v7033 = vshrl.u32 %v7032, 7
    %v7034 = vsub.s32 %v6858, %v7033
    %v7035 = vrot.slane %v6541, %v7034
    %v7036 = vsel %vm6863, %v7035, %v7031
    %v7037 = vlaneseq
    %v7038 = vshrl.u32 %v7037, 7
    %v7039 = vsub.s32 %v6865, %v7038
    %v7040 = vrot.slane %v6544, %v7039
    %v7041 = vsel %vm6870, %v7040, %v7036
    %v7042 = vlaneseq
    %v7043 = vshrl.u32 %v7042, 7
    %v7044 = vsub.s32 %v6872, %v7043
    %v7045 = vrot.slane %v6547, %v7044
    %v7046 = vsel %vm6877, %v7045, %v7041
    %v7047 = vlaneseq
    %v7048 = vshrl.u32 %v7047, 7
    %v7049 = vsub.s32 %v6879, %v7048
    %v7050 = vrot.slane %v6550, %v7049
    %v7051 = vsel %vm6884, %v7050, %v7046
    %v7052 = vlaneseq
    %v7053 = vshrl.u32 %v7052, 7
    %v7054 = vsub.s32 %v6886, %v7053
    %v7055 = vrot.slane %v6553, %v7054
    %v7056 = vsel %vm6891, %v7055, %v7051
    %v7057 = vlaneseq
    %v7058 = vshrl.u32 %v7057, 7
    %v7059 = vsub.s32 %v6893, %v7058
    %v7060 = vrot.slane %v6556, %v7059
    %v7061 = vsel %vm6898, %v7060, %v7056
    %v7062 = vlaneseq
    %v7063 = vshrl.u32 %v7062, 7
    %v7064 = vsub.s32 %v6900, %v7063
    %v7065 = vrot.slane %v6559, %v7064
    %v7066 = vsel %vm6905, %v7065, %v7061
    %v7067 = vlaneseq
    %v7068 = vshrl.u32 %v7067, 7
    %v7069 = vsub.s32 %v6907, %v7068
    %v7070 = vrot.slane %v6562, %v7069
    %v7071 = vsel %vm6912, %v7070, %v7066
    %v7072 = vlaneseq
    %v7073 = vshrl.u32 %v7072, 7
    %v7074 = vsub.s32 %v6804, %v7073
    %v7075 = vrot.slane %v6565, %v7074
    %v7076 = vlaneseq
    %v7077 = vshrl.u32 %v7076, 7
    %v7078 = vsub.s32 %v6809, %v7077
    %v7079 = vrot.slane %v6568, %v7078
    %v7080 = vsel %vm6814, %v7079, %v7075
    %v7081 = vlaneseq
    %v7082 = vshrl.u32 %v7081, 7
    %v7083 = vsub.s32 %v6816, %v7082
    %v7084 = vrot.slane %v6571, %v7083
    %v7085 = vsel %vm6821, %v7084, %v7080
    %v7086 = vlaneseq
    %v7087 = vshrl.u32 %v7086, 7
    %v7088 = vsub.s32 %v6823, %v7087
    %v7089 = vrot.slane %v6574, %v7088
    %v7090 = vsel %vm6828, %v7089, %v7085
    %v7091 = vlaneseq
    %v7092 = vshrl.u32 %v7091, 7
    %v7093 = vsub.s32 %v6830, %v7092
    %v7094 = vrot.slane %v6577, %v7093
    %v7095 = vsel %vm6835, %v7094, %v7090
    %v7096 = vlaneseq
    %v7097 = vshrl.u32 %v7096, 7
    %v7098 = vsub.s32 %v6837, %v7097
    %v7099 = vrot.slane %v6580, %v7098
    %v7100 = vsel %vm6842, %v7099, %v7095
    %v7101 = vlaneseq
    %v7102 = vshrl.u32 %v7101, 7
    %v7103 = vsub.s32 %v6844, %v7102
    %v7104 = vrot.slane %v6583, %v7103
    %v7105 = vsel %vm6849, %v7104, %v7100
    %v7106 = vlaneseq
    %v7107 = vshrl.u32 %v7106, 7
    %v7108 = vsub.s32 %v6851, %v7107
    %v7109 = vrot.slane %v6586, %v7108
    %v7110 = vsel %vm6856, %v7109, %v7105
    %v7111 = vlaneseq
    %v7112 = vshrl.u32 %v7111, 7
    %v7113 = vsub.s32 %v6858, %v7112
    %v7114 = vrot.slane %v6589, %v7113
    %v7115 = vsel %vm6863, %v7114, %v7110
    %v7116 = vlaneseq
    %v7117 = vshrl.u32 %v7116, 7
    %v7118 = vsub.s32 %v6865, %v7117
    %v7119 = vrot.slane %v6592, %v7118
    %v7120 = vsel %vm6870, %v7119, %v7115
    %v7121 = vlaneseq
    %v7122 = vshrl.u32 %v7121, 7
    %v7123 = vsub.s32 %v6872, %v7122
    %v7124 = vrot.slane %v6595, %v7123
    %v7125 = vsel %vm6877, %v7124, %v7120
    %v7126 = vlaneseq
    %v7127 = vshrl.u32 %v7126, 7
    %v7128 = vsub.s32 %v6879, %v7127
    %v7129 = vrot.slane %v6598, %v7128
    %v7130 = vsel %vm6884, %v7129, %v7125
    %v7131 = vlaneseq
    %v7132 = vshrl.u32 %v7131, 7
    %v7133 = vsub.s32 %v6886, %v7132
    %v7134 = vrot.slane %v6601, %v7133
    %v7135 = vsel %vm6891, %v7134, %v7130
    %v7136 = vlaneseq
    %v7137 = vshrl.u32 %v7136, 7
    %v7138 = vsub.s32 %v6893, %v7137
    %v7139 = vrot.slane %v6604, %v7138
    %v7140 = vsel %vm6898, %v7139, %v7135
    %v7141 = vlaneseq
    %v7142 = vshrl.u32 %v7141, 7
    %v7143 = vsub.s32 %v6900, %v7142
    %v7144 = vrot.slane %v6607, %v7143
    %v7145 = vsel %vm6905, %v7144, %v7140
    %v7146 = vlaneseq
    %v7147 = vshrl.u32 %v7146, 7
    %v7148 = vsub.s32 %v6907, %v7147
    %v7149 = vrot.slane %v6610, %v7148
    %v7150 = vsel %vm6912, %v7149, %v7145
    %v7151 = vlaneseq
    %v7152 = vshrl.u32 %v7151, 7
    %v7153 = vsub.s32 %v6804, %v7152
    %v7154 = vrot.slane %v6613, %v7153
    %v7155 = vlaneseq
    %v7156 = vshrl.u32 %v7155, 7
    %v7157 = vsub.s32 %v6809, %v7156
    %v7158 = vrot.slane %v6616, %v7157
    %v7159 = vsel %vm6814, %v7158, %v7154
    %v7160 = vlaneseq
    %v7161 = vshrl.u32 %v7160, 7
    %v7162 = vsub.s32 %v6816, %v7161
    %v7163 = vrot.slane %v6619, %v7162
    %v7164 = vsel %vm6821, %v7163, %v7159
    %v7165 = vlaneseq
    %v7166 = vshrl.u32 %v7165, 7
    %v7167 = vsub.s32 %v6823, %v7166
    %v7168 = vrot.slane %v6622, %v7167
    %v7169 = vsel %vm6828, %v7168, %v7164
    %v7170 = vlaneseq
    %v7171 = vshrl.u32 %v7170, 7
    %v7172 = vsub.s32 %v6830, %v7171
    %v7173 = vrot.slane %v6625, %v7172
    %v7174 = vsel %vm6835, %v7173, %v7169
    %v7175 = vlaneseq
    %v7176 = vshrl.u32 %v7175, 7
    %v7177 = vsub.s32 %v6837, %v7176
    %v7178 = vrot.slane %v6628, %v7177
    %v7179 = vsel %vm6842, %v7178, %v7174
    %v7180 = vlaneseq
    %v7181 = vshrl.u32 %v7180, 7
    %v7182 = vsub.s32 %v6844, %v7181
    %v7183 = vrot.slane %v6631, %v7182
    %v7184 = vsel %vm6849, %v7183, %v7179
    %v7185 = vlaneseq
    %v7186 = vshrl.u32 %v7185, 7
    %v7187 = vsub.s32 %v6851, %v7186
    %v7188 = vrot.slane %v6634, %v7187
    %v7189 = vsel %vm6856, %v7188, %v7184
    %v7190 = vlaneseq
    %v7191 = vshrl.u32 %v7190, 7
    %v7192 = vsub.s32 %v6858, %v7191
    %v7193 = vrot.slane %v6637, %v7192
    %v7194 = vsel %vm6863, %v7193, %v7189
    %v7195 = vlaneseq
    %v7196 = vshrl.u32 %v7195, 7
    %v7197 = vsub.s32 %v6865, %v7196
    %v7198 = vrot.slane %v6640, %v7197
    %v7199 = vsel %vm6870, %v7198, %v7194
    %v7200 = vlaneseq
    %v7201 = vshrl.u32 %v7200, 7
    %v7202 = vsub.s32 %v6872, %v7201
    %v7203 = vrot.slane %v6643, %v7202
    %v7204 = vsel %vm6877, %v7203, %v7199
    %v7205 = vlaneseq
    %v7206 = vshrl.u32 %v7205, 7
    %v7207 = vsub.s32 %v6879, %v7206
    %v7208 = vrot.slane %v6646, %v7207
    %v7209 = vsel %vm6884, %v7208, %v7204
    %v7210 = vlaneseq
    %v7211 = vshrl.u32 %v7210, 7
    %v7212 = vsub.s32 %v6886, %v7211
    %v7213 = vrot.slane %v6649, %v7212
    %v7214 = vsel %vm6891, %v7213, %v7209
    %v7215 = vlaneseq
    %v7216 = vshrl.u32 %v7215, 7
    %v7217 = vsub.s32 %v6893, %v7216
    %v7218 = vrot.slane %v6652, %v7217
    %v7219 = vsel %vm6898, %v7218, %v7214
    %v7220 = vlaneseq
    %v7221 = vshrl.u32 %v7220, 7
    %v7222 = vsub.s32 %v6900, %v7221
    %v7223 = vrot.slane %v6655, %v7222
    %v7224 = vsel %vm6905, %v7223, %v7219
    %v7225 = vlaneseq
    %v7226 = vshrl.u32 %v7225, 7
    %v7227 = vsub.s32 %v6907, %v7226
    %v7228 = vrot.slane %v6658, %v7227
    %v7229 = vsel %vm6912, %v7228, %v7224
    %v7230 = vlaneseq
    %v7231 = vshrl.u32 %v7230, 7
    %v7232 = vsub.s32 %v6804, %v7231
    %v7233 = vrot.slane %v6661, %v7232
    %v7234 = vlaneseq
    %v7235 = vshrl.u32 %v7234, 7
    %v7236 = vsub.s32 %v6809, %v7235
    %v7237 = vrot.slane %v6664, %v7236
    %v7238 = vsel %vm6814, %v7237, %v7233
    %v7239 = vlaneseq
    %v7240 = vshrl.u32 %v7239, 7
    %v7241 = vsub.s32 %v6816, %v7240
    %v7242 = vrot.slane %v6667, %v7241
    %v7243 = vsel %vm6821, %v7242, %v7238
    %v7244 = vlaneseq
    %v7245 = vshrl.u32 %v7244, 7
    %v7246 = vsub.s32 %v6823, %v7245
    %v7247 = vrot.slane %v6670, %v7246
    %v7248 = vsel %vm6828, %v7247, %v7243
    %v7249 = vlaneseq
    %v7250 = vshrl.u32 %v7249, 7
    %v7251 = vsub.s32 %v6830, %v7250
    %v7252 = vrot.slane %v6673, %v7251
    %v7253 = vsel %vm6835, %v7252, %v7248
    %v7254 = vlaneseq
    %v7255 = vshrl.u32 %v7254, 7
    %v7256 = vsub.s32 %v6837, %v7255
    %v7257 = vrot.slane %v6676, %v7256
    %v7258 = vsel %vm6842, %v7257, %v7253
    %v7259 = vlaneseq
    %v7260 = vshrl.u32 %v7259, 7
    %v7261 = vsub.s32 %v6844, %v7260
    %v7262 = vrot.slane %v6679, %v7261
    %v7263 = vsel %vm6849, %v7262, %v7258
    %v7264 = vlaneseq
    %v7265 = vshrl.u32 %v7264, 7
    %v7266 = vsub.s32 %v6851, %v7265
    %v7267 = vrot.slane %v6682, %v7266
    %v7268 = vsel %vm6856, %v7267, %v7263
    %v7269 = vlaneseq
    %v7270 = vshrl.u32 %v7269, 7
    %v7271 = vsub.s32 %v6858, %v7270
    %v7272 = vrot.slane %v6685, %v7271
    %v7273 = vsel %vm6863, %v7272, %v7268
    %v7274 = vlaneseq
    %v7275 = vshrl.u32 %v7274, 7
    %v7276 = vsub.s32 %v6865, %v7275
    %v7277 = vrot.slane %v6688, %v7276
    %v7278 = vsel %vm6870, %v7277, %v7273
    %v7279 = vlaneseq
    %v7280 = vshrl.u32 %v7279, 7
    %v7281 = vsub.s32 %v6872, %v7280
    %v7282 = vrot.slane %v6691, %v7281
    %v7283 = vsel %vm6877, %v7282, %v7278
    %v7284 = vlaneseq
    %v7285 = vshrl.u32 %v7284, 7
    %v7286 = vsub.s32 %v6879, %v7285
    %v7287 = vrot.slane %v6694, %v7286
    %v7288 = vsel %vm6884, %v7287, %v7283
    %v7289 = vlaneseq
    %v7290 = vshrl.u32 %v7289, 7
    %v7291 = vsub.s32 %v6886, %v7290
    %v7292 = vrot.slane %v6697, %v7291
    %v7293 = vsel %vm6891, %v7292, %v7288
    %v7294 = vlaneseq
    %v7295 = vshrl.u32 %v7294, 7
    %v7296 = vsub.s32 %v6893, %v7295
    %v7297 = vrot.slane %v6700, %v7296
    %v7298 = vsel %vm6898, %v7297, %v7293
    %v7299 = vlaneseq
    %v7300 = vshrl.u32 %v7299, 7
    %v7301 = vsub.s32 %v6900, %v7300
    %v7302 = vrot.slane %v6703, %v7301
    %v7303 = vsel %vm6905, %v7302, %v7298
    %v7304 = vlaneseq
    %v7305 = vshrl.u32 %v7304, 7
    %v7306 = vsub.s32 %v6907, %v7305
    %v7307 = vrot.slane %v6706, %v7306
    %v7308 = vsel %vm6912, %v7307, %v7303
    %v7309 = vlaneseq
    %v7310 = vshrl.u32 %v7309, 7
    %v7311 = vsub.s32 %v6804, %v7310
    %v7312 = vrot.slane %v6709, %v7311
    %v7313 = vlaneseq
    %v7314 = vshrl.u32 %v7313, 7
    %v7315 = vsub.s32 %v6809, %v7314
    %v7316 = vrot.slane %v6712, %v7315
    %v7317 = vsel %vm6814, %v7316, %v7312
    %v7318 = vlaneseq
    %v7319 = vshrl.u32 %v7318, 7
    %v7320 = vsub.s32 %v6816, %v7319
    %v7321 = vrot.slane %v6715, %v7320
    %v7322 = vsel %vm6821, %v7321, %v7317
    %v7323 = vlaneseq
    %v7324 = vshrl.u32 %v7323, 7
    %v7325 = vsub.s32 %v6823, %v7324
    %v7326 = vrot.slane %v6718, %v7325
    %v7327 = vsel %vm6828, %v7326, %v7322
    %v7328 = vlaneseq
    %v7329 = vshrl.u32 %v7328, 7
    %v7330 = vsub.s32 %v6830, %v7329
    %v7331 = vrot.slane %v6721, %v7330
    %v7332 = vsel %vm6835, %v7331, %v7327
    %v7333 = vlaneseq
    %v7334 = vshrl.u32 %v7333, 7
    %v7335 = vsub.s32 %v6837, %v7334
    %v7336 = vrot.slane %v6724, %v7335
    %v7337 = vsel %vm6842, %v7336, %v7332
    %v7338 = vlaneseq
    %v7339 = vshrl.u32 %v7338, 7
    %v7340 = vsub.s32 %v6844, %v7339
    %v7341 = vrot.slane %v6727, %v7340
    %v7342 = vsel %vm6849, %v7341, %v7337
    %v7343 = vlaneseq
    %v7344 = vshrl.u32 %v7343, 7
    %v7345 = vsub.s32 %v6851, %v7344
    %v7346 = vrot.slane %v6730, %v7345
    %v7347 = vsel %vm6856, %v7346, %v7342
    %v7348 = vlaneseq
    %v7349 = vshrl.u32 %v7348, 7
    %v7350 = vsub.s32 %v6858, %v7349
    %v7351 = vrot.slane %v6733, %v7350
    %v7352 = vsel %vm6863, %v7351, %v7347
    %v7353 = vlaneseq
    %v7354 = vshrl.u32 %v7353, 7
    %v7355 = vsub.s32 %v6865, %v7354
    %v7356 = vrot.slane %v6736, %v7355
    %v7357 = vsel %vm6870, %v7356, %v7352
    %v7358 = vlaneseq
    %v7359 = vshrl.u32 %v7358, 7
    %v7360 = vsub.s32 %v6872, %v7359
    %v7361 = vrot.slane %v6739, %v7360
    %v7362 = vsel %vm6877, %v7361, %v7357
    %v7363 = vlaneseq
    %v7364 = vshrl.u32 %v7363, 7
    %v7365 = vsub.s32 %v6879, %v7364
    %v7366 = vrot.slane %v6742, %v7365
    %v7367 = vsel %vm6884, %v7366, %v7362
    %v7368 = vlaneseq
    %v7369 = vshrl.u32 %v7368, 7
    %v7370 = vsub.s32 %v6886, %v7369
    %v7371 = vrot.slane %v6745, %v7370
    %v7372 = vsel %vm6891, %v7371, %v7367
    %v7373 = vlaneseq
    %v7374 = vshrl.u32 %v7373, 7
    %v7375 = vsub.s32 %v6893, %v7374
    %v7376 = vrot.slane %v6748, %v7375
    %v7377 = vsel %vm6898, %v7376, %v7372
    %v7378 = vlaneseq
    %v7379 = vshrl.u32 %v7378, 7
    %v7380 = vsub.s32 %v6900, %v7379
    %v7381 = vrot.slane %v6751, %v7380
    %v7382 = vsel %vm6905, %v7381, %v7377
    %v7383 = vlaneseq
    %v7384 = vshrl.u32 %v7383, 7
    %v7385 = vsub.s32 %v6907, %v7384
    %v7386 = vrot.slane %v6754, %v7385
    %v7387 = vsel %vm6912, %v7386, %v7382
    %v7388 = vlaneseq
    %v7389 = vshrl.u32 %v7388, 7
    %v7390 = vsub.s32 %v6804, %v7389
    %v7391 = vrot.slane %v6757, %v7390
    %v7392 = vlaneseq
    %v7393 = vshrl.u32 %v7392, 7
    %v7394 = vsub.s32 %v6809, %v7393
    %v7395 = vrot.slane %v6760, %v7394
    %v7396 = vsel %vm6814, %v7395, %v7391
    %v7397 = vlaneseq
    %v7398 = vshrl.u32 %v7397, 7
    %v7399 = vsub.s32 %v6816, %v7398
    %v7400 = vrot.slane %v6763, %v7399
    %v7401 = vsel %vm6821, %v7400, %v7396
    %v7402 = vlaneseq
    %v7403 = vshrl.u32 %v7402, 7
    %v7404 = vsub.s32 %v6823, %v7403
    %v7405 = vrot.slane %v6766, %v7404
    %v7406 = vsel %vm6828, %v7405, %v7401
    %v7407 = vlaneseq
    %v7408 = vshrl.u32 %v7407, 7
    %v7409 = vsub.s32 %v6830, %v7408
    %v7410 = vrot.slane %v6769, %v7409
    %v7411 = vsel %vm6835, %v7410, %v7406
    %v7412 = vlaneseq
    %v7413 = vshrl.u32 %v7412, 7
    %v7414 = vsub.s32 %v6837, %v7413
    %v7415 = vrot.slane %v6772, %v7414
    %v7416 = vsel %vm6842, %v7415, %v7411
    %v7417 = vlaneseq
    %v7418 = vshrl.u32 %v7417, 7
    %v7419 = vsub.s32 %v6844, %v7418
    %v7420 = vrot.slane %v6775, %v7419
    %v7421 = vsel %vm6849, %v7420, %v7416
    %v7422 = vlaneseq
    %v7423 = vshrl.u32 %v7422, 7
    %v7424 = vsub.s32 %v6851, %v7423
    %v7425 = vrot.slane %v6778, %v7424
    %v7426 = vsel %vm6856, %v7425, %v7421
    %v7427 = vlaneseq
    %v7428 = vshrl.u32 %v7427, 7
    %v7429 = vsub.s32 %v6858, %v7428
    %v7430 = vrot.slane %v6781, %v7429
    %v7431 = vsel %vm6863, %v7430, %v7426
    %v7432 = vlaneseq
    %v7433 = vshrl.u32 %v7432, 7
    %v7434 = vsub.s32 %v6865, %v7433
    %v7435 = vrot.slane %v6784, %v7434
    %v7436 = vsel %vm6870, %v7435, %v7431
    %v7437 = vlaneseq
    %v7438 = vshrl.u32 %v7437, 7
    %v7439 = vsub.s32 %v6872, %v7438
    %v7440 = vrot.slane %v6787, %v7439
    %v7441 = vsel %vm6877, %v7440, %v7436
    %v7442 = vlaneseq
    %v7443 = vshrl.u32 %v7442, 7
    %v7444 = vsub.s32 %v6879, %v7443
    %v7445 = vrot.slane %v6790, %v7444
    %v7446 = vsel %vm6884, %v7445, %v7441
    %v7447 = vlaneseq
    %v7448 = vshrl.u32 %v7447, 7
    %v7449 = vsub.s32 %v6886, %v7448
    %v7450 = vrot.slane %v6793, %v7449
    %v7451 = vsel %vm6891, %v7450, %v7446
    %v7452 = vlaneseq
    %v7453 = vshrl.u32 %v7452, 7
    %v7454 = vsub.s32 %v6893, %v7453
    %v7455 = vrot.slane %v6796, %v7454
    %v7456 = vsel %vm6898, %v7455, %v7451
    %v7457 = vlaneseq
    %v7458 = vshrl.u32 %v7457, 7
    %v7459 = vsub.s32 %v6900, %v7458
    %v7460 = vrot.slane %v6799, %v7459
    %v7461 = vsel %vm6905, %v7460, %v7456
    %v7462 = vlaneseq
    %v7463 = vshrl.u32 %v7462, 7
    %v7464 = vsub.s32 %v6907, %v7463
    %v7465 = vrot.slane %v6802, %v7464
    %v7466 = vsel %vm6912, %v7465, %v7461
    %vm7467 = vcmask 1041409
    %v7468 = vsel %vm7467, %v7229, %v6913
    %v7469 = vsel %vm7467, %v7308, %v6992
    %v7470 = vsel %vm7467, %v7387, %v7071
    %v7471 = vsel %vm7467, %v7466, %v7150
    %v7472 = vcombine.low %v7468, %v7469
    %v7473 = vcombine.low %v7470, %v7471
    %v7475 = vunpack.c.l.s4 1983009808
    %v7476 = vunpack.c.0.s8 %v7475
    %v7477 = vlaneseq
    %v7478 = vshrl.u32 %v7477, 7
    %v7479 = vsub.s32 %v7476, %v7478
    %v7480 = vrot.slane %v7472, %v7479
    %v7482 = vunpack.c.l.s4 1983009808
    %v7483 = vunpack.c.0.s8 %v7482
    %v7484 = vlaneseq
    %v7485 = vshrl.u32 %v7484, 7
    %v7486 = vsub.s32 %v7483, %v7485
    %v7487 = vrot.slane %v7473, %v7486
    %v7488 = vcombine.low %v7480, %v7487
    %v7490 = vadd.f32 %v145, %v7488
    %7491 = vst [vmem:[#allocation2] sm:$0xff] %v7490
    // Predicated region
    $region14: #{tpu_custom_call.1} parent=1 // pred_check
      %p7492 = pneg %p12
    $region15: #{tpu_custom_call.1} parent=1 // pred_check_branch
      %7494 = sbr.rel (%p7492) target = $region17
    $region16: #{tpu_custom_call.1} parent=1 // pred_region
      %v7495 = vld [vmem:[#allocation2] sm:$0xff]
      %v7496 = vld [vmem:[%s1] sm:$0xff]
      %v7497 = vld [vmem:[%s1 + $0x8] sm:$0xff]
      %v7498 = vld [vmem:[%s1 + $0x10] sm:$0xff]
      %v7499 = vld [vmem:[%s1 + $0x18] sm:$0xff]
      %v7500 = vld [vmem:[%s1 + $0x20] sm:$0xff]
      %v7501 = vld [vmem:[%s1 + $0x28] sm:$0xff]
      %v7502 = vld [vmem:[%s1 + $0x30] sm:$0xff]
      %v7503 = vld [vmem:[%s1 + $0x38] sm:$0xff]
      %v7504 = vld [vmem:[%s1 + $0x40] sm:$0xff]
      %v7505 = vld [vmem:[%s1 + $0x48] sm:$0xff]
      %v7506 = vld [vmem:[%s1 + $0x50] sm:$0xff]
      %v7507 = vld [vmem:[%s1 + $0x58] sm:$0xff]
      %v7508 = vld [vmem:[%s1 + $0x60] sm:$0xff]
      %v7509 = vld [vmem:[%s1 + $0x68] sm:$0xff]
      %v7510 = vld [vmem:[%s1 + $0x70] sm:$0xff]
      %v7511 = vld [vmem:[%s1 + $0x78] sm:$0xff]
      %v7512 = vld [vmem:[%s1 + $0x80] sm:$0xff]
      %v7513 = vld [vmem:[%s1 + $0x88] sm:$0xff]
      %v7514 = vld [vmem:[%s1 + $0x90] sm:$0xff]
      %v7515 = vld [vmem:[%s1 + $0x98] sm:$0xff]
      %v7516 = vld [vmem:[%s1 + $0xa0] sm:$0xff]
      %v7517 = vld [vmem:[%s1 + $0xa8] sm:$0xff]
      %v7518 = vld [vmem:[%s1 + $0xb0] sm:$0xff]
      %v7519 = vld [vmem:[%s1 + $0xb8] sm:$0xff]
      %v7520 = vld [vmem:[%s1 + $0xc0] sm:$0xff]
      %v7521 = vld [vmem:[%s1 + $0xc8] sm:$0xff]
      %v7522 = vld [vmem:[%s1 + $0xd0] sm:$0xff]
      %v7523 = vld [vmem:[%s1 + $0xd8] sm:$0xff]
      %v7524 = vld [vmem:[%s1 + $0xe0] sm:$0xff]
      %v7525 = vld [vmem:[%s1 + $0xe8] sm:$0xff]
      %v7526 = vld [vmem:[%s1 + $0xf0] sm:$0xff]
      %v7527 = vld [vmem:[%s1 + $0xf8] sm:$0xff]
      %v7528 = vld [vmem:[%s1 + $0x100] sm:$0xff]
      %v7529 = vld [vmem:[%s1 + $0x108] sm:$0xff]
      %v7530 = vld [vmem:[%s1 + $0x110] sm:$0xff]
      %v7531 = vld [vmem:[%s1 + $0x118] sm:$0xff]
      %v7532 = vld [vmem:[%s1 + $0x120] sm:$0xff]
      %v7533 = vld [vmem:[%s1 + $0x128] sm:$0xff]
      %v7534 = vld [vmem:[%s1 + $0x130] sm:$0xff]
      %v7535 = vld [vmem:[%s1 + $0x138] sm:$0xff]
      %v7536 = vld [vmem:[%s1 + $0x140] sm:$0xff]
      %v7537 = vld [vmem:[%s1 + $0x148] sm:$0xff]
      %v7538 = vld [vmem:[%s1 + $0x150] sm:$0xff]
      %v7539 = vld [vmem:[%s1 + $0x158] sm:$0xff]
      %v7540 = vld [vmem:[%s1 + $0x160] sm:$0xff]
      %v7541 = vld [vmem:[%s1 + $0x168] sm:$0xff]
      %v7542 = vld [vmem:[%s1 + $0x170] sm:$0xff]
      %v7543 = vld [vmem:[%s1 + $0x178] sm:$0xff]
      %v7544 = vld [vmem:[%s1 + $0x180] sm:$0xff]
      %v7545 = vld [vmem:[%s1 + $0x188] sm:$0xff]
      %v7546 = vld [vmem:[%s1 + $0x190] sm:$0xff]
      %v7547 = vld [vmem:[%s1 + $0x198] sm:$0xff]
      %v7548 = vld [vmem:[%s1 + $0x1a0] sm:$0xff]
      %v7549 = vld [vmem:[%s1 + $0x1a8] sm:$0xff]
      %v7550 = vld [vmem:[%s1 + $0x1b0] sm:$0xff]
      %v7551 = vld [vmem:[%s1 + $0x1b8] sm:$0xff]
      %v7552 = vld [vmem:[%s1 + $0x1c0] sm:$0xff]
      %v7553 = vld [vmem:[%s1 + $0x1c8] sm:$0xff]
      %v7554 = vld [vmem:[%s1 + $0x1d0] sm:$0xff]
      %v7555 = vld [vmem:[%s1 + $0x1d8] sm:$0xff]
      %v7556 = vld [vmem:[%s1 + $0x1e0] sm:$0xff]
      %v7557 = vld [vmem:[%s1 + $0x1e8] sm:$0xff]
      %v7558 = vld [vmem:[%s1 + $0x1f0] sm:$0xff]
      %v7559 = vld [vmem:[%s1 + $0x1f8] sm:$0xff]
      %v7561 = vcombine.high %v7495, %v7495
      %v7563 = vunpack.c.l.s4 1983009808
      %v7564 = vunpack.c.0.s8 %v7563
      %v7565 = vlaneseq
      %v7566 = vshrl.u32 %v7565, 7
      %v7567 = vsub.s32 %v7564, %v7566
      %v7568 = vrot.slane %v7495, %v7567
      %v7570 = vunpack.c.l.s4 1983009808
      %v7571 = vunpack.c.0.s8 %v7570
      %v7572 = vlaneseq
      %v7573 = vshrl.u32 %v7572, 7
      %v7574 = vsub.s32 %v7571, %v7573
      %v7575 = vrot.slane %v7561, %v7574
      %v7576 = vcombine.high %v7568, %v7568
      %v7577 = vcombine.high %v7575, %v7575
      %7582 = vmatprep.subr.mxu0 0.0
      %7583 = vmatpush1.msra.mxu0 %v7496
      %7584 = vmatprep.subr.mxu0 0.0
      %7585 = vmatpush1.msra.mxu0 %v7497
      %7586 = vmatprep.subr.mxu0 0.0
      %7587 = vmatpush1.msra.mxu0 %v7498
      %7588 = vmatprep.subr.mxu0 0.0
      %7589 = vmatpush1.msra.mxu0 %v7499
      %7590 = vmatprep.subr.mxu0 0.0
      %7591 = vmatpush1.msra.mxu0 %v7500
      %7592 = vmatprep.subr.mxu0 0.0
      %7593 = vmatpush1.msra.mxu0 %v7501
      %7594 = vmatprep.subr.mxu0 0.0
      %7595 = vmatpush1.msra.mxu0 %v7502
      %7596 = vmatprep.subr.mxu0 0.0
      %7597 = vmatpush1.msra.mxu0 %v7503
      %7598 = vmatprep.subr.mxu0 0.0
      %7599 = vmatpush1.msra.mxu0 %v7504
      %7600 = vmatprep.subr.mxu0 0.0
      %7601 = vmatpush1.msra.mxu0 %v7505
      %7602 = vmatprep.subr.mxu0 0.0
      %7603 = vmatpush1.msra.mxu0 %v7506
      %7604 = vmatprep.subr.mxu0 0.0
      %7605 = vmatpush1.msra.mxu0 %v7507
      %7606 = vmatprep.subr.mxu0 0.0
      %7607 = vmatpush1.msra.mxu0 %v7508
      %7608 = vmatprep.subr.mxu0 0.0
      %7609 = vmatpush1.msra.mxu0 %v7509
      %7610 = vmatprep.subr.mxu0 0.0
      %7611 = vmatpush1.msra.mxu0 %v7510
      %7612 = vmatprep.subr.mxu0 0.0
      %7613 = vmatpush1.msra.mxu0 %v7511
      %7614 = vmatprep.subr.mxu0 0.0
      %7615 = vmatpush1.msra.mxu0 %v7512
      %7616 = vmatprep.subr.mxu0 0.0
      %7617 = vmatpush1.msra.mxu0 %v7513
      %7618 = vmatprep.subr.mxu0 0.0
      %7619 = vmatpush1.msra.mxu0 %v7514
      %7620 = vmatprep.subr.mxu0 0.0
      %7621 = vmatpush1.msra.mxu0 %v7515
      %7622 = vmatprep.subr.mxu0 0.0
      %7623 = vmatpush1.msra.mxu0 %v7516
      %7624 = vmatprep.subr.mxu0 0.0
      %7625 = vmatpush1.msra.mxu0 %v7517
      %7626 = vmatprep.subr.mxu0 0.0
      %7627 = vmatpush1.msra.mxu0 %v7518
      %7628 = vmatprep.subr.mxu0 0.0
      %7629 = vmatpush1.msra.mxu0 %v7519
      %7630 = vmatprep.subr.mxu0 0.0
      %7631 = vmatpush1.msra.mxu0 %v7520
      %7632 = vmatprep.subr.mxu0 0.0
      %7633 = vmatpush1.msra.mxu0 %v7521
      %7634 = vmatprep.subr.mxu0 0.0
      %7635 = vmatpush1.msra.mxu0 %v7522
      %7636 = vmatprep.subr.mxu0 0.0
      %7637 = vmatpush1.msra.mxu0 %v7523
      %7638 = vmatprep.subr.mxu0 0.0
      %7639 = vmatpush1.msra.mxu0 %v7524
      %7640 = vmatprep.subr.mxu0 0.0
      %7641 = vmatpush1.msra.mxu0 %v7525
      %7642 = vmatprep.subr.mxu0 0.0
      %7643 = vmatpush1.msra.mxu0 %v7526
      %7644 = vmatprep.subr.mxu0 0.0
      %7645 = vmatpush1.msra.mxu0 %v7527
      %7646 = vmatprep.mubr.f32.mxu0 %v7576
      %7647 = vmatmul.mubr.f32.gmra.mrb[0].mxu0 %v7568
      %v7648 = vpop.f32.mrb[0].mxu0
      %v7649 = vadd.f32 0.0, %v7648
      %v7650 = vpop.f32.mrb[0].mxu0
      %7651 = vdwg.mxu0
      %7652 = vmatprep.subr.mxu0 0.0
      %7653 = vmatpush1.msra.mxu0 %v7528
      %7654 = vmatprep.subr.mxu0 0.0
      %7655 = vmatpush1.msra.mxu0 %v7529
      %7656 = vmatprep.subr.mxu0 0.0
      %7657 = vmatpush1.msra.mxu0 %v7530
      %7658 = vmatprep.subr.mxu0 0.0
      %7659 = vmatpush1.msra.mxu0 %v7531
      %7660 = vmatprep.subr.mxu0 0.0
      %7661 = vmatpush1.msra.mxu0 %v7532
      %7662 = vmatprep.subr.mxu0 0.0
      %7663 = vmatpush1.msra.mxu0 %v7533
      %7664 = vmatprep.subr.mxu0 0.0
      %7665 = vmatpush1.msra.mxu0 %v7534
      %7666 = vmatprep.subr.mxu0 0.0
      %7667 = vmatpush1.msra.mxu0 %v7535
      %7668 = vmatprep.subr.mxu0 0.0
      %7669 = vmatpush1.msra.mxu0 %v7536
      %7670 = vmatprep.subr.mxu0 0.0
      %7671 = vmatpush1.msra.mxu0 %v7537
      %7672 = vmatprep.subr.mxu0 0.0
      %7673 = vmatpush1.msra.mxu0 %v7538
      %7674 = vmatprep.subr.mxu0 0.0
      %7675 = vmatpush1.msra.mxu0 %v7539
      %7676 = vmatprep.subr.mxu0 0.0
      %7677 = vmatpush1.msra.mxu0 %v7540
      %7678 = vmatprep.subr.mxu0 0.0
      %7679 = vmatpush1.msra.mxu0 %v7541
      %7680 = vmatprep.subr.mxu0 0.0
      %7681 = vmatpush1.msra.mxu0 %v7542
      %7682 = vmatprep.subr.mxu0 0.0
      %7683 = vmatpush1.msra.mxu0 %v7543
      %7684 = vmatprep.subr.mxu0 0.0
      %7685 = vmatpush1.msra.mxu0 %v7544
      %7686 = vmatprep.subr.mxu0 0.0
      %7687 = vmatpush1.msra.mxu0 %v7545
      %7688 = vmatprep.subr.mxu0 0.0
      %7689 = vmatpush1.msra.mxu0 %v7546
      %7690 = vmatprep.subr.mxu0 0.0
      %7691 = vmatpush1.msra.mxu0 %v7547
      %7692 = vmatprep.subr.mxu0 0.0
      %7693 = vmatpush1.msra.mxu0 %v7548
      %7694 = vmatprep.subr.mxu0 0.0
      %7695 = vmatpush1.msra.mxu0 %v7549
      %7696 = vmatprep.subr.mxu0 0.0
      %7697 = vmatpush1.msra.mxu0 %v7550
      %7698 = vmatprep.subr.mxu0 0.0
      %7699 = vmatpush1.msra.mxu0 %v7551
      %7700 = vmatprep.subr.mxu0 0.0
      %7701 = vmatpush1.msra.mxu0 %v7552
      %7702 = vmatprep.subr.mxu0 0.0
      %7703 = vmatpush1.msra.mxu0 %v7553
      %7704 = vmatprep.subr.mxu0 0.0
      %7705 = vmatpush1.msra.mxu0 %v7554
      %7706 = vmatprep.subr.mxu0 0.0
      %7707 = vmatpush1.msra.mxu0 %v7555
      %7708 = vmatprep.subr.mxu0 0.0
      %7709 = vmatpush1.msra.mxu0 %v7556
      %7710 = vmatprep.subr.mxu0 0.0
      %7711 = vmatpush1.msra.mxu0 %v7557
      %7712 = vmatprep.subr.mxu0 0.0
      %7713 = vmatpush1.msra.mxu0 %v7558
      %7714 = vmatprep.subr.mxu0 0.0
      %7715 = vmatpush1.msra.mxu0 %v7559
      %7716 = vmatprep.mubr.f32.mxu0 %v7577
      %7717 = vmatmul.mubr.f32.gmra.mrb[0].mxu0 %v7575
      %v7718 = vpop.f32.mrb[0].mxu0
      %v7719 = vadd.f32 %v7649, %v7718
      %v7720 = vpop.f32.mrb[0].mxu0
      %7721 = vdwg.mxu0
      %7722 = vst [vmem:[#allocation3] sm:$0x3] %v7719
    $region17: #{tpu_custom_call.1} parent=1 // pred_fallthru
      _
    // Predicated region
    $region18: #{tpu_custom_call.1} parent=1 // pred_check
      _
    $region19: #{tpu_custom_call.1} parent=1 // pred_check_branch
      %7724 = sbr.rel (0) target = $region21
    $region20: #{tpu_custom_call.1} parent=1 // pred_region
      %s7726 = ssub.s32 32, 32
      %7727 = vsyncadd [#allocation4], %s7726
      %s7729 = sshll.u32 [#allocation3], 4
      %s7730 = int_to_ptr.vmem [resolvable:$true] %s7729
      %7732 = dma.vmem_to_hbm [thread:$0]  %s7730, 32, %s2, [#allocation4]
    $region21: #{tpu_custom_call.1} parent=1 // pred_fallthru
      _
    // Predicated region
    $region22: #{tpu_custom_call.1} parent=1 // pred_check
      _
    $region23: #{tpu_custom_call.1} parent=1 // pred_check_branch
      %7734 = sbr.rel (0) target = $region25
    $region24: #{tpu_custom_call.1} parent=1 // pred_region
      %7735 = dma.done [#allocation4], 32
    $region25: #{tpu_custom_call.1} parent=1 // pred_fallthru
      _
    %7736 = vsyncpa [#allocation4], 1

</llo_original>
